<compile_context>
chip_gen: v7x
topology: tpu7x:2x2x1
jax: 0.10.0
libtpu: 0.0.40
codegen_flags: <defaults>
</compile_context>

<pallas_src>
import jax
import jax.numpy as jnp
from jax.experimental import pallas as pl
from jax.experimental.pallas import tpu as pltpu


def polygnn_adj_kernel(x_ref, e_ref, a_ref, w_ref,
                       wv_ref, bv_ref, we_ref, be_ref,
                       wun_ref, wue_ref, wux_ref, bu_ref,
                       o_ref):
    tb, m, nh = x_ref.shape
    meh = e_ref.shape[-1]
    eh = meh // m
    mnh = m * nh
    f32 = jnp.float32
    bf16 = jnp.bfloat16

    x3 = x_ref[...]          # (tb, m, nh)      f32
    e3 = e_ref[...]          # (tb, m, m*eh)    f32, lane-dense
    a3 = a_ref[...]          # (tb, m, m)       f32
    w2 = w_ref[...]          # (tb, m)          f32

    def expand_cols(v, width):
        # v: (tb, m) -> (tb, m*width); column j replicated over `width` lanes.
        return jnp.concatenate(
            [jnp.broadcast_to(v[:, j:j + 1], (tb, width)) for j in range(m)],
            axis=1)

    # ---- expand A along lanes so the i-contraction is a lane-dense VPU
    #      multiply + sublane reduce (no tiny batched matmuls, all f32).
    #      a_exp_e[g, i, j*eh + f] = A[g, i, j]
    a_exp_e = jnp.concatenate(
        [jnp.broadcast_to(a3[:, :, j:j + 1], (tb, m, eh)) for j in range(m)],
        axis=2)                                                   # (tb, m, m*eh)
    if nh == eh:
        a_exp_n = a_exp_e
    else:
        a_exp_n = jnp.concatenate(
            [jnp.broadcast_to(a3[:, :, j:j + 1], (tb, m, nh)) for j in range(m)],
            axis=2)                                               # (tb, m, m*nh)

    # ---- edge path (linearity rewrite): aggregate raw E over source i first,
    #      apply W_e once per graph-row; degree-scaled bias keeps it exact.
    edge_raw = jnp.sum(a_exp_e * e3, axis=1)                      # (tb, m*eh)

    # ---- node path (same rewrite on raw X): tile X over target node j.
    x_rep = jnp.concatenate([x3] * m, axis=2)                     # (tb, m, m*nh)
    node_raw = jnp.sum(a_exp_n * x_rep, axis=1)                   # (tb, m*nh)

    # degree sum_i A[g,i,j], expanded per lane block for the exact bias term.
    deg = jnp.sum(a3, axis=1)                                     # (tb, m)
    deg_e = expand_cols(deg, eh)                                  # (tb, m*eh)
    deg_n = deg_e if nh == eh else expand_cols(deg, nh)           # (tb, m*nh)

    # graph-row copy of X (x_row[g, j*nh+f] = X[g, j, f]) for the W_u x-term.
    x_row = jnp.concatenate([x3[:, i, :] for i in range(m)], axis=1)   # (tb, m*nh)

    # ---- block-diagonal weight matmuls: rows == graphs, K == N == m*hidden.
    #      bf16 only on the MXU operands, f32 accumulation + f32 epilogue.
    edge_agg = (jnp.dot(edge_raw.astype(bf16), we_ref[...],
                        preferred_element_type=f32)
                + deg_e * be_ref[...])                            # (tb, m*eh)
    node_agg = (jnp.dot(node_raw.astype(bf16), wv_ref[...],
                        preferred_element_type=f32)
                + deg_n * bv_ref[...])                            # (tb, m*nh)

    # ---- output head:  W_u(ReLU(cat(node_agg, edge_agg, X))) * w
    #      (W_u split by input block; exact since ReLU precedes the concat.)
    h = (jnp.dot(jnp.maximum(node_agg, 0.0).astype(bf16), wun_ref[...],
                 preferred_element_type=f32)
         + jnp.dot(jnp.maximum(edge_agg, 0.0).astype(bf16), wue_ref[...],
                   preferred_element_type=f32)
         + jnp.dot(jnp.maximum(x_row, 0.0).astype(bf16), wux_ref[...],
                   preferred_element_type=f32)
         + bu_ref[...])                                           # (tb, m*nh)

    # lane-dense (256-wide) output store.
    o_ref[...] = (h * expand_cols(w2, nh)).astype(o_ref.dtype)


def _choose_tb(B, m, eh, target_block_bytes=2 * 1024 * 1024):
    """Graphs per grid step: ~2 MiB E blocks (perf review: 1-4 MiB => TB~256
    for m=8, eh=32), >=2 grid steps when the batch allows it (v7x megacore),
    and a multiple of 8 for the (8,128) block-shape rule."""
    per_graph = m * m * eh * 4                    # f32 bytes of E per graph
    tb = max(1, target_block_bytes // per_graph)
    tb = min(tb, B)
    if B >= 16 and tb > B // 2:
        tb = B // 2
    if tb >= 8:
        tb = (tb // 8) * 8
    else:
        tb = B                                    # tiny batch: one full step
    return max(tb, 1)


def _vmem_limit_bytes():
    """Generation-aware scoped-VMEM limit: ~48 MiB on v7x (64 MiB physical),
    ~96 MiB on v5e/v6e (128 MiB physical)."""
    default = 48 * 1024 * 1024
    try:
        cap = getattr(pltpu.get_tpu_info(), "vmem_capacity_bytes", None)
        if cap:
            return int(min(96 * 1024 * 1024,
                           max(32 * 1024 * 1024, (cap * 3) // 4)))
    except Exception:
        pass
    return default


def polygnn_adj(X, E, A, w, params, tb=None):
    """Pallas-backed POLYGNN_adj.forward."""
    Wv, bv, We, be, Wu, bu = params
    B, m, nh = X.shape
    eh = E.shape[-1]
    mnh, meh = m * nh, m * eh

    if tb is None:
        tb = _choose_tb(B, m, eh)
    tb = max(1, min(tb, B))
    if tb >= 8:
        tb = (tb // 8) * 8
    bpad = ((B + tb - 1) // tb) * tb

    # lane-dense layouts (free, contiguous reshapes in HBM).
    E_d = E.reshape(B, m, meh)
    w2 = w.reshape(B, m)
    Xp, Ap = X, A
    if bpad != B:
        pad = bpad - B
        Xp = jnp.pad(Xp, ((0, pad), (0, 0), (0, 0)))
        E_d = jnp.pad(E_d, ((0, pad), (0, 0), (0, 0)))
        Ap = jnp.pad(Ap, ((0, pad), (0, 0), (0, 0)))
        w2 = jnp.pad(w2, ((0, pad), (0, 0)))

    # Block-diagonal weights (kron(I_m, W)) in bf16; biases tiled per node, f32.
    bf16 = jnp.bfloat16
    eye_m = jnp.eye(m, dtype=jnp.float32)
    Wu_n, Wu_e, Wu_x = Wu[:nh, :], Wu[nh:nh + eh, :], Wu[nh + eh:, :]
    Wv_bd = jnp.kron(eye_m, Wv).astype(bf16)       # (m*nh, m*nh)
    We_bd = jnp.kron(eye_m, We).astype(bf16)       # (m*eh, m*eh)
    Wun_bd = jnp.kron(eye_m, Wu_n).astype(bf16)    # (m*nh, m*nh)
    Wue_bd = jnp.kron(eye_m, Wu_e).astype(bf16)    # (m*eh, m*nh)
    Wux_bd = jnp.kron(eye_m, Wu_x).astype(bf16)    # (m*nh, m*nh)
    bv_t = jnp.tile(bv.reshape(1, nh), (1, m))     # (1, m*nh)
    be_t = jnp.tile(be.reshape(1, eh), (1, m))     # (1, m*eh)
    bu_t = jnp.tile(bu.reshape(1, nh), (1, m))     # (1, m*nh)

    grid = (bpad // tb,)
    in_specs = [
        pl.BlockSpec((tb, m, nh), lambda g: (g, 0, 0)),    # X
        pl.BlockSpec((tb, m, meh), lambda g: (g, 0, 0)),   # E (lane-dense)
        pl.BlockSpec((tb, m, m), lambda g: (g, 0, 0)),     # A
        pl.BlockSpec((tb, m), lambda g: (g, 0)),           # w
        pl.BlockSpec((mnh, mnh), lambda g: (0, 0)),        # Wv  (block-diag, bf16)
        pl.BlockSpec((1, mnh), lambda g: (0, 0)),          # bv  (tiled, f32)
        pl.BlockSpec((meh, meh), lambda g: (0, 0)),        # We  (block-diag, bf16)
        pl.BlockSpec((1, meh), lambda g: (0, 0)),          # be
        pl.BlockSpec((mnh, mnh), lambda g: (0, 0)),        # Wu_n (block-diag, bf16)
        pl.BlockSpec((meh, mnh), lambda g: (0, 0)),        # Wu_e (block-diag, bf16)
        pl.BlockSpec((mnh, mnh), lambda g: (0, 0)),        # Wu_x (block-diag, bf16)
        pl.BlockSpec((1, mnh), lambda g: (0, 0)),          # bu
    ]
    out_specs = pl.BlockSpec((tb, mnh), lambda g: (g, 0))  # lane-dense output

    out = pl.pallas_call(
        polygnn_adj_kernel,
        out_shape=jax.ShapeDtypeStruct((bpad, mnh), jnp.float32),
        grid=grid,
        in_specs=in_specs,
        out_specs=out_specs,
        compiler_params=pltpu.CompilerParams(
            dimension_semantics=("parallel",),
            vmem_limit_bytes=_vmem_limit_bytes()),
    )(Xp, E_d, Ap, w2, Wv_bd, bv_t, We_bd, be_t, Wun_bd, Wue_bd, Wux_bd, bu_t)

    return out.reshape(bpad, m, nh)[:B]


def polygnn_adj_reference(X, E, A, w, params):
    """Plain-JAX (f32) reference mirroring the PyTorch forward exactly."""
    Wv, bv, We, be, Wu, bu = params
    B, m, nh = X.shape
    node_map = X @ Wv + bv                                        # [B,m,nh]
    node_map = jnp.broadcast_to(node_map[:, :, None, :], (B, m, m, nh))
    edge_map = jnp.einsum('bije,ef->bijf', E, We) + be            # [B,m,m,eh]
    out = A[..., None] * jnp.concatenate([node_map, edge_map], axis=3)
    out = jnp.sum(out, axis=1)                                    # [B,m,nh+eh]
    h = jnp.maximum(jnp.concatenate([out, X], axis=2), 0.0)       # ReLU
    return (h @ Wu + bu) * w


def make_params(key, nh, eh):
    ks = jax.random.split(key, 6)
    Wv = jax.random.normal(ks[0], (nh, nh), jnp.float32) * 0.1
    bv = jax.random.normal(ks[1], (1, nh), jnp.float32) * 0.1
    We = jax.random.normal(ks[2], (eh, eh), jnp.float32) * 0.1
    be = jax.random.normal(ks[3], (1, eh), jnp.float32) * 0.1
    Wu = jax.random.normal(ks[4], (2 * nh + eh, nh), jnp.float32) * 0.1
    bu = jax.random.normal(ks[5], (1, nh), jnp.float32) * 0.1
    return (Wv, bv, We, be, Wu, bu)


if __name__ == "__main__":
    B, m, nh, eh = 32, 8, 32, 32      # small demo; prod batches use TB ~ 256
    key = jax.random.PRNGKey(0)
    kx, ke, ka, kw, kp = jax.random.split(key, 5)

    X = jax.random.normal(kx, (B, m, nh), jnp.float32)
    E = jax.random.normal(ke, (B, m, m, eh), jnp.float32)
    A = (jax.random.uniform(ka, (B, m, m), jnp.float32) > 0.5).astype(jnp.float32)
    w = jax.random.uniform(kw, (B, m, 1), jnp.float32)
    params = make_params(kp, nh, eh)

    out = jax.block_until_ready(polygnn_adj(X, E, A, w, params))
    ref = jax.block_until_ready(polygnn_adj_reference(X, E, A, w, params))

    assert out.shape == (B, m, nh)
    err = float(jnp.max(jnp.abs(out - ref)))
    assert jnp.allclose(out, ref, atol=5e-2, rtol=5e-2), f"max abs err {err}"
    print("KERNEL_OK")
</pallas_src>

<mosaic_0001>
module attributes {stable_mosaic.version = 11 : i64} {
  func.func @polygnn_adj_kernel(%arg0: i32, %arg1: memref<16x8x32xf32, #tpu.memory_space<vmem>>, %arg2: memref<16x8x256xf32, #tpu.memory_space<vmem>>, %arg3: memref<16x8x8xf32, #tpu.memory_space<vmem>>, %arg4: memref<16x8xf32, #tpu.memory_space<vmem>>, %arg5: memref<256x256xbf16, #tpu.memory_space<vmem>>, %arg6: memref<1x256xf32, #tpu.memory_space<vmem>>, %arg7: memref<256x256xbf16, #tpu.memory_space<vmem>>, %arg8: memref<1x256xf32, #tpu.memory_space<vmem>>, %arg9: memref<256x256xbf16, #tpu.memory_space<vmem>>, %arg10: memref<256x256xbf16, #tpu.memory_space<vmem>>, %arg11: memref<256x256xbf16, #tpu.memory_space<vmem>>, %arg12: memref<1x256xf32, #tpu.memory_space<vmem>>, %arg13: memref<16x256xf32, #tpu.memory_space<vmem>>) attributes {dimension_semantics = [#tpu.dimension_semantics<parallel>], iteration_bounds = array<i64: 2>, scalar_prefetch = 0 : i64, scratch_operands = 0 : i64, tpu.core_type = #tpu.core_type<tc>, window_params = [{transform_indices = @transform_0, window_bounds = array<i64: 16, 8, 32>}, {transform_indices = @transform_1, window_bounds = array<i64: 16, 8, 256>}, {transform_indices = @transform_2, window_bounds = array<i64: 16, 8, 8>}, {transform_indices = @transform_3, window_bounds = array<i64: 16, 8>}, {pipeline_mode = #tpu.pipeline_mode<synchronous>, transform_indices = @transform_4, window_bounds = array<i64: 256, 256>}, {pipeline_mode = #tpu.pipeline_mode<synchronous>, transform_indices = @transform_5, window_bounds = array<i64: 1, 256>}, {pipeline_mode = #tpu.pipeline_mode<synchronous>, transform_indices = @transform_6, window_bounds = array<i64: 256, 256>}, {pipeline_mode = #tpu.pipeline_mode<synchronous>, transform_indices = @transform_7, window_bounds = array<i64: 1, 256>}, {pipeline_mode = #tpu.pipeline_mode<synchronous>, transform_indices = @transform_8, window_bounds = array<i64: 256, 256>}, {pipeline_mode = #tpu.pipeline_mode<synchronous>, transform_indices = @transform_9, window_bounds = array<i64: 256, 256>}, {pipeline_mode = #tpu.pipeline_mode<synchronous>, transform_indices = @transform_10, window_bounds = array<i64: 256, 256>}, {pipeline_mode = #tpu.pipeline_mode<synchronous>, transform_indices = @transform_11, window_bounds = array<i64: 1, 256>}, {transform_indices = @transform_12, window_bounds = array<i64: 16, 256>}]} {
    %c0 = arith.constant 0 : index
    %c0_0 = arith.constant 0 : index
    %c0_1 = arith.constant 0 : index
    %0 = vector.load %arg1[%c0, %c0_0, %c0_1] : memref<16x8x32xf32, #tpu.memory_space<vmem>>, vector<16x8x32xf32>
    %c0_2 = arith.constant 0 : index
    %c0_3 = arith.constant 0 : index
    %c0_4 = arith.constant 0 : index
    %1 = vector.load %arg2[%c0_2, %c0_3, %c0_4] : memref<16x8x256xf32, #tpu.memory_space<vmem>>, vector<16x8x256xf32>
    %c0_5 = arith.constant 0 : index
    %c0_6 = arith.constant 0 : index
    %c0_7 = arith.constant 0 : index
    %2 = vector.load %arg3[%c0_5, %c0_6, %c0_7] : memref<16x8x8xf32, #tpu.memory_space<vmem>>, vector<16x8x8xf32>
    %c0_8 = arith.constant 0 : index
    %c0_9 = arith.constant 0 : index
    %3 = vector.load %arg4[%c0_8, %c0_9] : memref<16x8xf32, #tpu.memory_space<vmem>>, vector<16x8xf32>
    %4 = vector.extract_strided_slice %2 {offsets = [0, 0, 0], sizes = [16, 8, 1], strides = [1, 1, 1]} : vector<16x8x8xf32> to vector<16x8x1xf32>
    %5 = vector.shape_cast %4 : vector<16x8x1xf32> to vector<16x8x1xf32>
    %6 = vector.broadcast %5 : vector<16x8x1xf32> to vector<16x8x32xf32>
    %7 = vector.extract_strided_slice %2 {offsets = [0, 0, 1], sizes = [16, 8, 1], strides = [1, 1, 1]} : vector<16x8x8xf32> to vector<16x8x1xf32>
    %8 = vector.shape_cast %7 : vector<16x8x1xf32> to vector<16x8x1xf32>
    %9 = vector.broadcast %8 : vector<16x8x1xf32> to vector<16x8x32xf32>
    %10 = vector.extract_strided_slice %2 {offsets = [0, 0, 2], sizes = [16, 8, 1], strides = [1, 1, 1]} : vector<16x8x8xf32> to vector<16x8x1xf32>
    %11 = vector.shape_cast %10 : vector<16x8x1xf32> to vector<16x8x1xf32>
    %12 = vector.broadcast %11 : vector<16x8x1xf32> to vector<16x8x32xf32>
    %13 = vector.extract_strided_slice %2 {offsets = [0, 0, 3], sizes = [16, 8, 1], strides = [1, 1, 1]} : vector<16x8x8xf32> to vector<16x8x1xf32>
    %14 = vector.shape_cast %13 : vector<16x8x1xf32> to vector<16x8x1xf32>
    %15 = vector.broadcast %14 : vector<16x8x1xf32> to vector<16x8x32xf32>
    %16 = vector.extract_strided_slice %2 {offsets = [0, 0, 4], sizes = [16, 8, 1], strides = [1, 1, 1]} : vector<16x8x8xf32> to vector<16x8x1xf32>
    %17 = vector.shape_cast %16 : vector<16x8x1xf32> to vector<16x8x1xf32>
    %18 = vector.broadcast %17 : vector<16x8x1xf32> to vector<16x8x32xf32>
    %19 = vector.extract_strided_slice %2 {offsets = [0, 0, 5], sizes = [16, 8, 1], strides = [1, 1, 1]} : vector<16x8x8xf32> to vector<16x8x1xf32>
    %20 = vector.shape_cast %19 : vector<16x8x1xf32> to vector<16x8x1xf32>
    %21 = vector.broadcast %20 : vector<16x8x1xf32> to vector<16x8x32xf32>
    %22 = vector.extract_strided_slice %2 {offsets = [0, 0, 6], sizes = [16, 8, 1], strides = [1, 1, 1]} : vector<16x8x8xf32> to vector<16x8x1xf32>
    %23 = vector.shape_cast %22 : vector<16x8x1xf32> to vector<16x8x1xf32>
    %24 = vector.broadcast %23 : vector<16x8x1xf32> to vector<16x8x32xf32>
    %25 = vector.extract_strided_slice %2 {offsets = [0, 0, 7], sizes = [16, 8, 1], strides = [1, 1, 1]} : vector<16x8x8xf32> to vector<16x8x1xf32>
    %26 = vector.shape_cast %25 : vector<16x8x1xf32> to vector<16x8x1xf32>
    %27 = vector.broadcast %26 : vector<16x8x1xf32> to vector<16x8x32xf32>
    %28 = tpu.concatenate %6, %9, %12, %15, %18, %21, %24, %27 in 2 : vector<16x8x32xf32>, vector<16x8x32xf32>, vector<16x8x32xf32>, vector<16x8x32xf32>, vector<16x8x32xf32>, vector<16x8x32xf32>, vector<16x8x32xf32>, vector<16x8x32xf32> -> vector<16x8x256xf32>
    %29 = arith.mulf %28, %1 : vector<16x8x256xf32>
    %cst = arith.constant dense<0.000000e+00> : vector<16x256xf32>
    %30 = vector.multi_reduction <add>, %29, %cst [1] : vector<16x8x256xf32> to vector<16x256xf32>
    %31 = tpu.concatenate %0, %0, %0, %0, %0, %0, %0, %0 in 2 : vector<16x8x32xf32>, vector<16x8x32xf32>, vector<16x8x32xf32>, vector<16x8x32xf32>, vector<16x8x32xf32>, vector<16x8x32xf32>, vector<16x8x32xf32>, vector<16x8x32xf32> -> vector<16x8x256xf32>
    %32 = arith.mulf %28, %31 : vector<16x8x256xf32>
    %cst_10 = arith.constant dense<0.000000e+00> : vector<16x256xf32>
    %33 = vector.multi_reduction <add>, %32, %cst_10 [1] : vector<16x8x256xf32> to vector<16x256xf32>
    %cst_11 = arith.constant dense<0.000000e+00> : vector<16x8xf32>
    %34 = vector.multi_reduction <add>, %2, %cst_11 [1] : vector<16x8x8xf32> to vector<16x8xf32>
    %35 = vector.extract_strided_slice %34 {offsets = [0, 0], sizes = [16, 1], strides = [1, 1]} : vector<16x8xf32> to vector<16x1xf32>
    %36 = vector.shape_cast %35 : vector<16x1xf32> to vector<16x1xf32>
    %37 = vector.broadcast %36 : vector<16x1xf32> to vector<16x32xf32>
    %38 = vector.extract_strided_slice %34 {offsets = [0, 1], sizes = [16, 1], strides = [1, 1]} : vector<16x8xf32> to vector<16x1xf32>
    %39 = vector.shape_cast %38 : vector<16x1xf32> to vector<16x1xf32>
    %40 = vector.broadcast %39 : vector<16x1xf32> to vector<16x32xf32>
    %41 = vector.extract_strided_slice %34 {offsets = [0, 2], sizes = [16, 1], strides = [1, 1]} : vector<16x8xf32> to vector<16x1xf32>
    %42 = vector.shape_cast %41 : vector<16x1xf32> to vector<16x1xf32>
    %43 = vector.broadcast %42 : vector<16x1xf32> to vector<16x32xf32>
    %44 = vector.extract_strided_slice %34 {offsets = [0, 3], sizes = [16, 1], strides = [1, 1]} : vector<16x8xf32> to vector<16x1xf32>
    %45 = vector.shape_cast %44 : vector<16x1xf32> to vector<16x1xf32>
    %46 = vector.broadcast %45 : vector<16x1xf32> to vector<16x32xf32>
    %47 = vector.extract_strided_slice %34 {offsets = [0, 4], sizes = [16, 1], strides = [1, 1]} : vector<16x8xf32> to vector<16x1xf32>
    %48 = vector.shape_cast %47 : vector<16x1xf32> to vector<16x1xf32>
    %49 = vector.broadcast %48 : vector<16x1xf32> to vector<16x32xf32>
    %50 = vector.extract_strided_slice %34 {offsets = [0, 5], sizes = [16, 1], strides = [1, 1]} : vector<16x8xf32> to vector<16x1xf32>
    %51 = vector.shape_cast %50 : vector<16x1xf32> to vector<16x1xf32>
    %52 = vector.broadcast %51 : vector<16x1xf32> to vector<16x32xf32>
    %53 = vector.extract_strided_slice %34 {offsets = [0, 6], sizes = [16, 1], strides = [1, 1]} : vector<16x8xf32> to vector<16x1xf32>
    %54 = vector.shape_cast %53 : vector<16x1xf32> to vector<16x1xf32>
    %55 = vector.broadcast %54 : vector<16x1xf32> to vector<16x32xf32>
    %56 = vector.extract_strided_slice %34 {offsets = [0, 7], sizes = [16, 1], strides = [1, 1]} : vector<16x8xf32> to vector<16x1xf32>
    %57 = vector.shape_cast %56 : vector<16x1xf32> to vector<16x1xf32>
    %58 = vector.broadcast %57 : vector<16x1xf32> to vector<16x32xf32>
    %59 = tpu.concatenate %37, %40, %43, %46, %49, %52, %55, %58 in 1 : vector<16x32xf32>, vector<16x32xf32>, vector<16x32xf32>, vector<16x32xf32>, vector<16x32xf32>, vector<16x32xf32>, vector<16x32xf32>, vector<16x32xf32> -> vector<16x256xf32>
    %60 = vector.extract_strided_slice %0 {offsets = [0, 0, 0], sizes = [16, 1, 32], strides = [1, 1, 1]} : vector<16x8x32xf32> to vector<16x1x32xf32>
    %61 = vector.shape_cast %60 : vector<16x1x32xf32> to vector<16x32xf32>
    %62 = vector.extract_strided_slice %0 {offsets = [0, 1, 0], sizes = [16, 1, 32], strides = [1, 1, 1]} : vector<16x8x32xf32> to vector<16x1x32xf32>
    %63 = vector.shape_cast %62 : vector<16x1x32xf32> to vector<16x32xf32>
    %64 = vector.extract_strided_slice %0 {offsets = [0, 2, 0], sizes = [16, 1, 32], strides = [1, 1, 1]} : vector<16x8x32xf32> to vector<16x1x32xf32>
    %65 = vector.shape_cast %64 : vector<16x1x32xf32> to vector<16x32xf32>
    %66 = vector.extract_strided_slice %0 {offsets = [0, 3, 0], sizes = [16, 1, 32], strides = [1, 1, 1]} : vector<16x8x32xf32> to vector<16x1x32xf32>
    %67 = vector.shape_cast %66 : vector<16x1x32xf32> to vector<16x32xf32>
    %68 = vector.extract_strided_slice %0 {offsets = [0, 4, 0], sizes = [16, 1, 32], strides = [1, 1, 1]} : vector<16x8x32xf32> to vector<16x1x32xf32>
    %69 = vector.shape_cast %68 : vector<16x1x32xf32> to vector<16x32xf32>
    %70 = vector.extract_strided_slice %0 {offsets = [0, 5, 0], sizes = [16, 1, 32], strides = [1, 1, 1]} : vector<16x8x32xf32> to vector<16x1x32xf32>
    %71 = vector.shape_cast %70 : vector<16x1x32xf32> to vector<16x32xf32>
    %72 = vector.extract_strided_slice %0 {offsets = [0, 6, 0], sizes = [16, 1, 32], strides = [1, 1, 1]} : vector<16x8x32xf32> to vector<16x1x32xf32>
    %73 = vector.shape_cast %72 : vector<16x1x32xf32> to vector<16x32xf32>
    %74 = vector.extract_strided_slice %0 {offsets = [0, 7, 0], sizes = [16, 1, 32], strides = [1, 1, 1]} : vector<16x8x32xf32> to vector<16x1x32xf32>
    %75 = vector.shape_cast %74 : vector<16x1x32xf32> to vector<16x32xf32>
    %76 = tpu.concatenate %61, %63, %65, %67, %69, %71, %73, %75 in 1 : vector<16x32xf32>, vector<16x32xf32>, vector<16x32xf32>, vector<16x32xf32>, vector<16x32xf32>, vector<16x32xf32>, vector<16x32xf32>, vector<16x32xf32> -> vector<16x256xf32>
    %77 = arith.truncf %30 : vector<16x256xf32> to vector<16x256xbf16>
    %c0_12 = arith.constant 0 : index
    %c0_13 = arith.constant 0 : index
    %78 = vector.load %arg7[%c0_12, %c0_13] : memref<256x256xbf16, #tpu.memory_space<vmem>>, vector<256x256xbf16>
    %cst_14 = arith.constant dense<0.000000e+00> : vector<16x256xf32>
    %79 = tpu.matmul %77, %78, %cst_14 {dimension_numbers = #tpu.dot_dimension_numbers<[1], [0], [0], [1], [0, 0, 1, 1], [], []>} : vector<16x256xbf16>, vector<256x256xbf16>, vector<16x256xf32> -> vector<16x256xf32>
    %c0_15 = arith.constant 0 : index
    %c0_16 = arith.constant 0 : index
    %80 = vector.load %arg8[%c0_15, %c0_16] : memref<1x256xf32, #tpu.memory_space<vmem>>, vector<1x256xf32>
    %81 = vector.broadcast %80 : vector<1x256xf32> to vector<16x256xf32>
    %82 = arith.mulf %59, %81 : vector<16x256xf32>
    %83 = arith.addf %79, %82 : vector<16x256xf32>
    %84 = arith.truncf %33 : vector<16x256xf32> to vector<16x256xbf16>
    %c0_17 = arith.constant 0 : index
    %c0_18 = arith.constant 0 : index
    %85 = vector.load %arg5[%c0_17, %c0_18] : memref<256x256xbf16, #tpu.memory_space<vmem>>, vector<256x256xbf16>
    %cst_19 = arith.constant dense<0.000000e+00> : vector<16x256xf32>
    %86 = tpu.matmul %84, %85, %cst_19 {dimension_numbers = #tpu.dot_dimension_numbers<[1], [0], [0], [1], [0, 0, 1, 1], [], []>} : vector<16x256xbf16>, vector<256x256xbf16>, vector<16x256xf32> -> vector<16x256xf32>
    %c0_20 = arith.constant 0 : index
    %c0_21 = arith.constant 0 : index
    %87 = vector.load %arg6[%c0_20, %c0_21] : memref<1x256xf32, #tpu.memory_space<vmem>>, vector<1x256xf32>
    %88 = vector.broadcast %87 : vector<1x256xf32> to vector<16x256xf32>
    %89 = arith.mulf %59, %88 : vector<16x256xf32>
    %90 = arith.addf %86, %89 : vector<16x256xf32>
    %cst_22 = arith.constant 0.000000e+00 : f32
    %91 = vector.broadcast %cst_22 : f32 to vector<16x256xf32>
    %92 = arith.maximumf %90, %91 : vector<16x256xf32>
    %93 = arith.truncf %92 : vector<16x256xf32> to vector<16x256xbf16>
    %c0_23 = arith.constant 0 : index
    %c0_24 = arith.constant 0 : index
    %94 = vector.load %arg9[%c0_23, %c0_24] : memref<256x256xbf16, #tpu.memory_space<vmem>>, vector<256x256xbf16>
    %cst_25 = arith.constant dense<0.000000e+00> : vector<16x256xf32>
    %95 = tpu.matmul %93, %94, %cst_25 {dimension_numbers = #tpu.dot_dimension_numbers<[1], [0], [0], [1], [0, 0, 1, 1], [], []>} : vector<16x256xbf16>, vector<256x256xbf16>, vector<16x256xf32> -> vector<16x256xf32>
    %cst_26 = arith.constant 0.000000e+00 : f32
    %96 = vector.broadcast %cst_26 : f32 to vector<16x256xf32>
    %97 = arith.maximumf %83, %96 : vector<16x256xf32>
    %98 = arith.truncf %97 : vector<16x256xf32> to vector<16x256xbf16>
    %c0_27 = arith.constant 0 : index
    %c0_28 = arith.constant 0 : index
    %99 = vector.load %arg10[%c0_27, %c0_28] : memref<256x256xbf16, #tpu.memory_space<vmem>>, vector<256x256xbf16>
    %cst_29 = arith.constant dense<0.000000e+00> : vector<16x256xf32>
    %100 = tpu.matmul %98, %99, %cst_29 {dimension_numbers = #tpu.dot_dimension_numbers<[1], [0], [0], [1], [0, 0, 1, 1], [], []>} : vector<16x256xbf16>, vector<256x256xbf16>, vector<16x256xf32> -> vector<16x256xf32>
    %101 = arith.addf %95, %100 : vector<16x256xf32>
    %cst_30 = arith.constant 0.000000e+00 : f32
    %102 = vector.broadcast %cst_30 : f32 to vector<16x256xf32>
    %103 = arith.maximumf %76, %102 : vector<16x256xf32>
    %104 = arith.truncf %103 : vector<16x256xf32> to vector<16x256xbf16>
    %c0_31 = arith.constant 0 : index
    %c0_32 = arith.constant 0 : index
    %105 = vector.load %arg11[%c0_31, %c0_32] : memref<256x256xbf16, #tpu.memory_space<vmem>>, vector<256x256xbf16>
    %cst_33 = arith.constant dense<0.000000e+00> : vector<16x256xf32>
    %106 = tpu.matmul %104, %105, %cst_33 {dimension_numbers = #tpu.dot_dimension_numbers<[1], [0], [0], [1], [0, 0, 1, 1], [], []>} : vector<16x256xbf16>, vector<256x256xbf16>, vector<16x256xf32> -> vector<16x256xf32>
    %107 = arith.addf %101, %106 : vector<16x256xf32>
    %c0_34 = arith.constant 0 : index
    %c0_35 = arith.constant 0 : index
    %108 = vector.load %arg12[%c0_34, %c0_35] : memref<1x256xf32, #tpu.memory_space<vmem>>, vector<1x256xf32>
    %109 = vector.broadcast %108 : vector<1x256xf32> to vector<16x256xf32>
    %110 = arith.addf %107, %109 : vector<16x256xf32>
    %111 = vector.extract_strided_slice %3 {offsets = [0, 0], sizes = [16, 1], strides = [1, 1]} : vector<16x8xf32> to vector<16x1xf32>
    %112 = vector.shape_cast %111 : vector<16x1xf32> to vector<16x1xf32>
    %113 = vector.broadcast %112 : vector<16x1xf32> to vector<16x32xf32>
    %114 = vector.extract_strided_slice %3 {offsets = [0, 1], sizes = [16, 1], strides = [1, 1]} : vector<16x8xf32> to vector<16x1xf32>
    %115 = vector.shape_cast %114 : vector<16x1xf32> to vector<16x1xf32>
    %116 = vector.broadcast %115 : vector<16x1xf32> to vector<16x32xf32>
    %117 = vector.extract_strided_slice %3 {offsets = [0, 2], sizes = [16, 1], strides = [1, 1]} : vector<16x8xf32> to vector<16x1xf32>
    %118 = vector.shape_cast %117 : vector<16x1xf32> to vector<16x1xf32>
    %119 = vector.broadcast %118 : vector<16x1xf32> to vector<16x32xf32>
    %120 = vector.extract_strided_slice %3 {offsets = [0, 3], sizes = [16, 1], strides = [1, 1]} : vector<16x8xf32> to vector<16x1xf32>
    %121 = vector.shape_cast %120 : vector<16x1xf32> to vector<16x1xf32>
    %122 = vector.broadcast %121 : vector<16x1xf32> to vector<16x32xf32>
    %123 = vector.extract_strided_slice %3 {offsets = [0, 4], sizes = [16, 1], strides = [1, 1]} : vector<16x8xf32> to vector<16x1xf32>
    %124 = vector.shape_cast %123 : vector<16x1xf32> to vector<16x1xf32>
    %125 = vector.broadcast %124 : vector<16x1xf32> to vector<16x32xf32>
    %126 = vector.extract_strided_slice %3 {offsets = [0, 5], sizes = [16, 1], strides = [1, 1]} : vector<16x8xf32> to vector<16x1xf32>
    %127 = vector.shape_cast %126 : vector<16x1xf32> to vector<16x1xf32>
    %128 = vector.broadcast %127 : vector<16x1xf32> to vector<16x32xf32>
    %129 = vector.extract_strided_slice %3 {offsets = [0, 6], sizes = [16, 1], strides = [1, 1]} : vector<16x8xf32> to vector<16x1xf32>
    %130 = vector.shape_cast %129 : vector<16x1xf32> to vector<16x1xf32>
    %131 = vector.broadcast %130 : vector<16x1xf32> to vector<16x32xf32>
    %132 = vector.extract_strided_slice %3 {offsets = [0, 7], sizes = [16, 1], strides = [1, 1]} : vector<16x8xf32> to vector<16x1xf32>
    %133 = vector.shape_cast %132 : vector<16x1xf32> to vector<16x1xf32>
    %134 = vector.broadcast %133 : vector<16x1xf32> to vector<16x32xf32>
    %135 = tpu.concatenate %113, %116, %119, %122, %125, %128, %131, %134 in 1 : vector<16x32xf32>, vector<16x32xf32>, vector<16x32xf32>, vector<16x32xf32>, vector<16x32xf32>, vector<16x32xf32>, vector<16x32xf32>, vector<16x32xf32> -> vector<16x256xf32>
    %136 = arith.mulf %110, %135 : vector<16x256xf32>
    %c0_36 = arith.constant 0 : index
    %c0_37 = arith.constant 0 : index
    %137 = vector.load %arg13[%c0_36, %c0_37] : memref<16x256xf32, #tpu.memory_space<vmem>>, vector<16x256xf32>
    tpu.vector_store %arg13[%c0_36, %c0_37], %136 {strides = array<i32>} : memref<16x256xf32, #tpu.memory_space<vmem>>, vector<16x256xf32>,
    return
  }
  func.func @transform_0(%arg0: i32) -> (i32, i32, i32) {
    %c0_i32 = arith.constant 0 : i32
    %c0_i32_0 = arith.constant 0 : i32
    %c0_i32_1 = arith.constant 0 : i32
    return %arg0, %c0_i32, %c0_i32_0 : i32, i32, i32
  }
  func.func @transform_1(%arg0: i32) -> (i32, i32, i32) {
    %c0_i32 = arith.constant 0 : i32
    %c0_i32_0 = arith.constant 0 : i32
    %c0_i32_1 = arith.constant 0 : i32
    return %arg0, %c0_i32, %c0_i32_0 : i32, i32, i32
  }
  func.func @transform_2(%arg0: i32) -> (i32, i32, i32) {
    %c0_i32 = arith.constant 0 : i32
    %c0_i32_0 = arith.constant 0 : i32
    %c0_i32_1 = arith.constant 0 : i32
    return %arg0, %c0_i32, %c0_i32_0 : i32, i32, i32
  }
  func.func @transform_3(%arg0: i32) -> (i32, i32) {
    %c0_i32 = arith.constant 0 : i32
    %c0_i32_0 = arith.constant 0 : i32
    return %arg0, %c0_i32 : i32, i32
  }
  func.func @transform_4(%arg0: i32) -> (i32, i32) {
    %c0_i32 = arith.constant 0 : i32
    %c0_i32_0 = arith.constant 0 : i32
    %c0_i32_1 = arith.constant 0 : i32
    return %c0_i32, %c0_i32_0 : i32, i32
  }
  func.func @transform_5(%arg0: i32) -> (i32, i32) {
    %c0_i32 = arith.constant 0 : i32
    %c0_i32_0 = arith.constant 0 : i32
    %c0_i32_1 = arith.constant 0 : i32
    return %c0_i32, %c0_i32_0 : i32, i32
  }
  func.func @transform_6(%arg0: i32) -> (i32, i32) {
    %c0_i32 = arith.constant 0 : i32
    %c0_i32_0 = arith.constant 0 : i32
    %c0_i32_1 = arith.constant 0 : i32
    return %c0_i32, %c0_i32_0 : i32, i32
  }
  func.func @transform_7(%arg0: i32) -> (i32, i32) {
    %c0_i32 = arith.constant 0 : i32
    %c0_i32_0 = arith.constant 0 : i32
    %c0_i32_1 = arith.constant 0 : i32
    return %c0_i32, %c0_i32_0 : i32, i32
  }
  func.func @transform_8(%arg0: i32) -> (i32, i32) {
    %c0_i32 = arith.constant 0 : i32
    %c0_i32_0 = arith.constant 0 : i32
    %c0_i32_1 = arith.constant 0 : i32
    return %c0_i32, %c0_i32_0 : i32, i32
  }
  func.func @transform_9(%arg0: i32) -> (i32, i32) {
    %c0_i32 = arith.constant 0 : i32
    %c0_i32_0 = arith.constant 0 : i32
    %c0_i32_1 = arith.constant 0 : i32
    return %c0_i32, %c0_i32_0 : i32, i32
  }
  func.func @transform_10(%arg0: i32) -> (i32, i32) {
    %c0_i32 = arith.constant 0 : i32
    %c0_i32_0 = arith.constant 0 : i32
    %c0_i32_1 = arith.constant 0 : i32
    return %c0_i32, %c0_i32_0 : i32, i32
  }
  func.func @transform_11(%arg0: i32) -> (i32, i32) {
    %c0_i32 = arith.constant 0 : i32
    %c0_i32_0 = arith.constant 0 : i32
    %c0_i32_1 = arith.constant 0 : i32
    return %c0_i32, %c0_i32_0 : i32, i32
  }
  func.func @transform_12(%arg0: i32) -> (i32, i32) {
    %c0_i32 = arith.constant 0 : i32
    %c0_i32_0 = arith.constant 0 : i32
    return %arg0, %c0_i32 : i32, i32
  }
}

</mosaic_0001>

<llo_original>
// kernel: tpu_custom_call.1
$region0: #{tpu_custom_call.1}
  #allocation0 [shape = 'u32[]', space=smem, size = 0x4, offset = 0x4, fixed_abs, tag = 'smem constant byte address 0x4 - core index']
  #allocation1 [shape = 'u32[144,128]{1,0:T(1,128)}', space=vmem, size = 0x12000, scoped, tag = 'internal scratch']
  %s0 = inlined_call_operand.vmem [shape: f32[32,8,32], index: 0, kind: input, shape index: {}]
  %s1 = inlined_call_operand.hbm [shape: f32[32,8,256], index: 1, kind: input, shape index: {}]
  %s2 = inlined_call_operand.vmem [shape: f32[32,8,8], index: 2, kind: input, shape index: {}]
  %s3 = inlined_call_operand.vmem [shape: f32[32,8], index: 3, kind: input, shape index: {}]
  %s4 = inlined_call_operand.hbm [shape: bf16[256,256], index: 4, kind: input, shape index: {}]
  %s5 = inlined_call_operand.vmem [shape: f32[1,256], index: 5, kind: input, shape index: {}]
  %s6 = inlined_call_operand.hbm [shape: bf16[256,256], index: 6, kind: input, shape index: {}]
  %s7 = inlined_call_operand.vmem [shape: f32[1,256], index: 7, kind: input, shape index: {}]
  %s8 = inlined_call_operand.hbm [shape: bf16[256,256], index: 8, kind: input, shape index: {}]
  %s9 = inlined_call_operand.hbm [shape: bf16[256,256], index: 9, kind: input, shape index: {}]
  %s10 = inlined_call_operand.hbm [shape: bf16[256,256], index: 10, kind: input, shape index: {}]
  %s11 = inlined_call_operand.vmem [shape: f32[1,256], index: 11, kind: input, shape index: {}]
  %s12 = inlined_call_operand.hbm [shape: f32[32,256], index: 12, kind: output, shape index: {}]
  %s13 = sld [smem:[#allocation0]]
  $region105: #{tpu_custom_call.1} parent=0
    _
  %s15 = ssub.s32 1, %s13
  %s16 = scalar_select 0, %s15, %s13
  $region1: #{tpu_custom_call.1} parent=0
    #allocation2 [shape = 'u8[262144]{0}', space=vmem, size = 0x40000, scoped, tag = 'input window, operand 1']
    #allocation3 [shape = 's32[2]{0}', space=sflag, size = 0x8, scoped, tag = 'scoped memory for tpu_custom_call.1']
    #allocation4 [shape = 's32[2]{0}', space=sflag, size = 0x8, scoped, tag = 'scoped memory for tpu_custom_call.1']
    #allocation5 [shape = 'u8[131072]{0}', space=vmem, size = 0x20000, scoped, tag = 'input window, operand 4, single buffered']
    #allocation6 [shape = 's32[1]{0}', space=sflag, size = 0x4, scoped, tag = 'scoped memory for tpu_custom_call.1']
    #allocation7 [shape = 'u8[131072]{0}', space=vmem, size = 0x20000, scoped, tag = 'input window, operand 6, single buffered']
    #allocation8 [shape = 'u8[131072]{0}', space=vmem, size = 0x20000, scoped, tag = 'input window, operand 8, single buffered']
    #allocation9 [shape = 's32[1]{0}', space=sflag, size = 0x4, scoped, tag = 'scoped memory for tpu_custom_call.1']
    #allocation10 [shape = 'u8[131072]{0}', space=vmem, size = 0x20000, scoped, tag = 'input window, operand 9, single buffered']
    #allocation11 [shape = 'u8[131072]{0}', space=vmem, size = 0x20000, scoped, tag = 'input window, operand 10, single buffered']
    #allocation12 [shape = 's32[1]{0}', space=sflag, size = 0x4, scoped, tag = 'scoped memory for tpu_custom_call.1']
    #allocation13 [shape = 'u8[32768]{0}', space=vmem, size = 0x8000, scoped, tag = 'output window, operand 0']
    %17 = vsyncpa [#allocation3], 0
    %s18 = scalar_lea.sflag [#allocation3], 1
    %19 = vsyncpa %s18, 0
    %20 = vsyncpa [#allocation6], 0
    %21 = vsyncpa [#allocation9], 0
    %22 = vsyncpa [#allocation12], 0
    %23 = vsyncpa [#allocation4], 0
    %s24 = scalar_lea.sflag [#allocation4], 1
    %25 = vsyncpa %s24, 0
    loop: start=0, step=1, limit=4
    $region2: #{tpu_custom_call.1} parent=1 // loop_pre_header
      _
    $region3: #{tpu_custom_call.1} parent=1 // loop_header
      %s27 = sphi 0, %s31
      %p28 = scmp.ge.s32.totalorder %s27, 4
      %s37 = sphi 0, %s39
      %s40 = sphi 0, %s37
      %s41 = sphi 0, %s40
      %s57 = sphi 0, %s41
      %s63 = sphi 0, %s65
      %s66 = sphi 0, %s63
      %s67 = sphi 0, %s66
      %s83 = sphi 0, %s67
      %s89 = sphi 0, %s91
      %s92 = sphi 0, %s89
      %s93 = sphi 0, %s92
      %s109 = sphi 0, %s93
      %s115 = sphi 0, %s117
      %s118 = sphi 0, %s115
      %s119 = sphi 0, %s118
      %s135 = sphi 0, %s119
      %s139 = sphi 0, %s139
      %s141 = sphi 0, %s139
      %s142 = sphi 0, %s141
      %s156 = sphi 0, %s142
      %s160 = sphi 0, %s160
      %s162 = sphi 0, %s160
      %s163 = sphi 0, %s162
      %s177 = sphi 0, %s163
      %s181 = sphi 0, %s181
      %s183 = sphi 0, %s181
      %s184 = sphi 0, %s183
      %s198 = sphi 0, %s184
      %s202 = sphi 0, %s202
      %s204 = sphi 0, %s202
      %s205 = sphi 0, %s204
      %s219 = sphi 0, %s205
      %s223 = sphi 0, %s223
      %s225 = sphi 0, %s223
      %s226 = sphi 0, %s225
      %s240 = sphi 0, %s226
      %s244 = sphi 0, %s244
      %s246 = sphi 0, %s244
      %s247 = sphi 0, %s246
      %s261 = sphi 0, %s247
      %s265 = sphi 0, %s265
      %s267 = sphi 0, %s265
      %s268 = sphi 0, %s267
      %s282 = sphi 0, %s268
      %s286 = sphi 0, %s286
      %s288 = sphi 0, %s286
      %s289 = sphi 0, %s288
      %s303 = sphi 0, %s289
      %s309 = sphi 0, %s311
      %s312 = sphi 0, %s309
      %s313 = sphi 0, %s312
      %s329 = sphi 0, %s313
    $region4: #{tpu_custom_call.1} parent=1 // loop_header_branch
      %30 = sbr.rel (%p28) target = $region8
    $region5: #{tpu_custom_call.1} parent=1 // loop_body
      %s32 = ssub.s32 %s27, 1
      %s33 = ssub.s32 %s27, 2
      %s34 = sadd.s32 %s27, 1
      %s35 = ssub.s32 %s27, %s34
      %p36 = scmp.eq.s32.totalorder %s35, 0
      %s38 = sadd.s32 %s37, 1
      %s39 = scalar_select %p36, %s37, %s38
      %p42 = pneg %p36
      %p43 = scmp.eq.s32.totalorder %s27, 1
      %p44 = por %p42, %p43
      %p45 = scmp.ne.s32.totalorder %s37, %s40
      %p46 = scmp.eq.s32.totalorder %s27, 0
      %p47 = por %p45, %p46
      %p48 = scmp.ne.s32.totalorder %s37, %s40
      %p49 = scmp.eq.s32.totalorder %s32, 1
      %p50 = por %p48, %p49
      %p51 = scmp.ne.s32.totalorder %s40, %s41
      %p52 = scmp.eq.s32.totalorder %s32, 0
      %p53 = por %p51, %p52
      %p54 = scmp.ne.s32.totalorder %s40, %s41
      %p55 = scmp.eq.s32.totalorder %s33, 1
      %p56 = por %p54, %p55
      %p58 = scmp.ne.s32.totalorder %s41, %s57
      %p59 = scmp.eq.s32.totalorder %s33, 0
      %p60 = por %p58, %p59
      %s61 = ssub.s32 %s27, %s34
      %p62 = scmp.eq.s32.totalorder %s61, 0
      %s64 = sadd.s32 %s63, 1
      %s65 = scalar_select %p62, %s63, %s64
      %p68 = pneg %p62
      %p69 = scmp.eq.s32.totalorder %s27, 1
      %p70 = por %p68, %p69
      %p71 = scmp.ne.s32.totalorder %s63, %s66
      %p72 = scmp.eq.s32.totalorder %s27, 0
      %p73 = por %p71, %p72
      %p74 = scmp.ne.s32.totalorder %s63, %s66
      %p75 = scmp.eq.s32.totalorder %s32, 1
      %p76 = por %p74, %p75
      %p77 = scmp.ne.s32.totalorder %s66, %s67
      %p78 = scmp.eq.s32.totalorder %s32, 0
      %p79 = por %p77, %p78
      %p80 = scmp.ne.s32.totalorder %s66, %s67
      %p81 = scmp.eq.s32.totalorder %s33, 1
      %p82 = por %p80, %p81
      %p84 = scmp.ne.s32.totalorder %s67, %s83
      %p85 = scmp.eq.s32.totalorder %s33, 0
      %p86 = por %p84, %p85
      %s87 = ssub.s32 %s27, %s34
      %p88 = scmp.eq.s32.totalorder %s87, 0
      %s90 = sadd.s32 %s89, 1
      %s91 = scalar_select %p88, %s89, %s90
      %p94 = pneg %p88
      %p95 = scmp.eq.s32.totalorder %s27, 1
      %p96 = por %p94, %p95
      %p97 = scmp.ne.s32.totalorder %s89, %s92
      %p98 = scmp.eq.s32.totalorder %s27, 0
      %p99 = por %p97, %p98
      %p100 = scmp.ne.s32.totalorder %s89, %s92
      %p101 = scmp.eq.s32.totalorder %s32, 1
      %p102 = por %p100, %p101
      %p103 = scmp.ne.s32.totalorder %s92, %s93
      %p104 = scmp.eq.s32.totalorder %s32, 0
      %p105 = por %p103, %p104
      %p106 = scmp.ne.s32.totalorder %s92, %s93
      %p107 = scmp.eq.s32.totalorder %s33, 1
      %p108 = por %p106, %p107
      %p110 = scmp.ne.s32.totalorder %s93, %s109
      %p111 = scmp.eq.s32.totalorder %s33, 0
      %p112 = por %p110, %p111
      %s113 = ssub.s32 %s27, %s34
      %p114 = scmp.eq.s32.totalorder %s113, 0
      %s116 = sadd.s32 %s115, 1
      %s117 = scalar_select %p114, %s115, %s116
      %p120 = pneg %p114
      %p121 = scmp.eq.s32.totalorder %s27, 1
      %p122 = por %p120, %p121
      %p123 = scmp.ne.s32.totalorder %s115, %s118
      %p124 = scmp.eq.s32.totalorder %s27, 0
      %p125 = por %p123, %p124
      %p126 = scmp.ne.s32.totalorder %s115, %s118
      %p127 = scmp.eq.s32.totalorder %s32, 1
      %p128 = por %p126, %p127
      %p129 = scmp.ne.s32.totalorder %s118, %s119
      %p130 = scmp.eq.s32.totalorder %s32, 0
      %p131 = por %p129, %p130
      %p132 = scmp.ne.s32.totalorder %s118, %s119
      %p133 = scmp.eq.s32.totalorder %s33, 1
      %p134 = por %p132, %p133
      %p136 = scmp.ne.s32.totalorder %s119, %s135
      %p137 = scmp.eq.s32.totalorder %s33, 0
      %p138 = por %p136, %p137
      %s140 = sadd.s32 %s139, 1
      %p143 = scmp.eq.s32.totalorder %s27, 1
      %p144 = scmp.ne.s32.totalorder %s139, %s141
      %p145 = scmp.eq.s32.totalorder %s27, 0
      %p146 = por %p144, %p145
      %p147 = scmp.ne.s32.totalorder %s139, %s141
      %p148 = scmp.eq.s32.totalorder %s32, 1
      %p149 = por %p147, %p148
      %p150 = scmp.ne.s32.totalorder %s141, %s142
      %p151 = scmp.eq.s32.totalorder %s32, 0
      %p152 = por %p150, %p151
      %p153 = scmp.ne.s32.totalorder %s141, %s142
      %p154 = scmp.eq.s32.totalorder %s33, 1
      %p155 = por %p153, %p154
      %p157 = scmp.ne.s32.totalorder %s142, %s156
      %p158 = scmp.eq.s32.totalorder %s33, 0
      %p159 = por %p157, %p158
      %s161 = sadd.s32 %s160, 1
      %p164 = scmp.eq.s32.totalorder %s27, 1
      %p165 = scmp.ne.s32.totalorder %s160, %s162
      %p166 = scmp.eq.s32.totalorder %s27, 0
      %p167 = por %p165, %p166
      %p168 = scmp.ne.s32.totalorder %s160, %s162
      %p169 = scmp.eq.s32.totalorder %s32, 1
      %p170 = por %p168, %p169
      %p171 = scmp.ne.s32.totalorder %s162, %s163
      %p172 = scmp.eq.s32.totalorder %s32, 0
      %p173 = por %p171, %p172
      %p174 = scmp.ne.s32.totalorder %s162, %s163
      %p175 = scmp.eq.s32.totalorder %s33, 1
      %p176 = por %p174, %p175
      %p178 = scmp.ne.s32.totalorder %s163, %s177
      %p179 = scmp.eq.s32.totalorder %s33, 0
      %p180 = por %p178, %p179
      %s182 = sadd.s32 %s181, 1
      %p185 = scmp.eq.s32.totalorder %s27, 1
      %p186 = scmp.ne.s32.totalorder %s181, %s183
      %p187 = scmp.eq.s32.totalorder %s27, 0
      %p188 = por %p186, %p187
      %p189 = scmp.ne.s32.totalorder %s181, %s183
      %p190 = scmp.eq.s32.totalorder %s32, 1
      %p191 = por %p189, %p190
      %p192 = scmp.ne.s32.totalorder %s183, %s184
      %p193 = scmp.eq.s32.totalorder %s32, 0
      %p194 = por %p192, %p193
      %p195 = scmp.ne.s32.totalorder %s183, %s184
      %p196 = scmp.eq.s32.totalorder %s33, 1
      %p197 = por %p195, %p196
      %p199 = scmp.ne.s32.totalorder %s184, %s198
      %p200 = scmp.eq.s32.totalorder %s33, 0
      %p201 = por %p199, %p200
      %s203 = sadd.s32 %s202, 1
      %p206 = scmp.eq.s32.totalorder %s27, 1
      %p207 = scmp.ne.s32.totalorder %s202, %s204
      %p208 = scmp.eq.s32.totalorder %s27, 0
      %p209 = por %p207, %p208
      %p210 = scmp.ne.s32.totalorder %s202, %s204
      %p211 = scmp.eq.s32.totalorder %s32, 1
      %p212 = por %p210, %p211
      %p213 = scmp.ne.s32.totalorder %s204, %s205
      %p214 = scmp.eq.s32.totalorder %s32, 0
      %p215 = por %p213, %p214
      %p216 = scmp.ne.s32.totalorder %s204, %s205
      %p217 = scmp.eq.s32.totalorder %s33, 1
      %p218 = por %p216, %p217
      %p220 = scmp.ne.s32.totalorder %s205, %s219
      %p221 = scmp.eq.s32.totalorder %s33, 0
      %p222 = por %p220, %p221
      %s224 = sadd.s32 %s223, 1
      %p227 = scmp.eq.s32.totalorder %s27, 1
      %p228 = scmp.ne.s32.totalorder %s223, %s225
      %p229 = scmp.eq.s32.totalorder %s27, 0
      %p230 = por %p228, %p229
      %p231 = scmp.ne.s32.totalorder %s223, %s225
      %p232 = scmp.eq.s32.totalorder %s32, 1
      %p233 = por %p231, %p232
      %p234 = scmp.ne.s32.totalorder %s225, %s226
      %p235 = scmp.eq.s32.totalorder %s32, 0
      %p236 = por %p234, %p235
      %p237 = scmp.ne.s32.totalorder %s225, %s226
      %p238 = scmp.eq.s32.totalorder %s33, 1
      %p239 = por %p237, %p238
      %p241 = scmp.ne.s32.totalorder %s226, %s240
      %p242 = scmp.eq.s32.totalorder %s33, 0
      %p243 = por %p241, %p242
      %s245 = sadd.s32 %s244, 1
      %p248 = scmp.eq.s32.totalorder %s27, 1
      %p249 = scmp.ne.s32.totalorder %s244, %s246
      %p250 = scmp.eq.s32.totalorder %s27, 0
      %p251 = por %p249, %p250
      %p252 = scmp.ne.s32.totalorder %s244, %s246
      %p253 = scmp.eq.s32.totalorder %s32, 1
      %p254 = por %p252, %p253
      %p255 = scmp.ne.s32.totalorder %s246, %s247
      %p256 = scmp.eq.s32.totalorder %s32, 0
      %p257 = por %p255, %p256
      %p258 = scmp.ne.s32.totalorder %s246, %s247
      %p259 = scmp.eq.s32.totalorder %s33, 1
      %p260 = por %p258, %p259
      %p262 = scmp.ne.s32.totalorder %s247, %s261
      %p263 = scmp.eq.s32.totalorder %s33, 0
      %p264 = por %p262, %p263
      %s266 = sadd.s32 %s265, 1
      %p269 = scmp.eq.s32.totalorder %s27, 1
      %p270 = scmp.ne.s32.totalorder %s265, %s267
      %p271 = scmp.eq.s32.totalorder %s27, 0
      %p272 = por %p270, %p271
      %p273 = scmp.ne.s32.totalorder %s265, %s267
      %p274 = scmp.eq.s32.totalorder %s32, 1
      %p275 = por %p273, %p274
      %p276 = scmp.ne.s32.totalorder %s267, %s268
      %p277 = scmp.eq.s32.totalorder %s32, 0
      %p278 = por %p276, %p277
      %p279 = scmp.ne.s32.totalorder %s267, %s268
      %p280 = scmp.eq.s32.totalorder %s33, 1
      %p281 = por %p279, %p280
      %p283 = scmp.ne.s32.totalorder %s268, %s282
      %p284 = scmp.eq.s32.totalorder %s33, 0
      %p285 = por %p283, %p284
      %s287 = sadd.s32 %s286, 1
      %p290 = scmp.eq.s32.totalorder %s27, 1
      %p291 = scmp.ne.s32.totalorder %s286, %s288
      %p292 = scmp.eq.s32.totalorder %s27, 0
      %p293 = por %p291, %p292
      %p294 = scmp.ne.s32.totalorder %s286, %s288
      %p295 = scmp.eq.s32.totalorder %s32, 1
      %p296 = por %p294, %p295
      %p297 = scmp.ne.s32.totalorder %s288, %s289
      %p298 = scmp.eq.s32.totalorder %s32, 0
      %p299 = por %p297, %p298
      %p300 = scmp.ne.s32.totalorder %s288, %s289
      %p301 = scmp.eq.s32.totalorder %s33, 1
      %p302 = por %p300, %p301
      %p304 = scmp.ne.s32.totalorder %s289, %s303
      %p305 = scmp.eq.s32.totalorder %s33, 0
      %p306 = por %p304, %p305
      %s307 = ssub.s32 %s27, %s34
      %p308 = scmp.eq.s32.totalorder %s307, 0
      %s310 = sadd.s32 %s309, 1
      %s311 = scalar_select %p308, %s309, %s310
      %p314 = pneg %p308
      %p315 = scmp.eq.s32.totalorder %s27, 1
      %p316 = por %p314, %p315
      %p317 = scmp.ne.s32.totalorder %s309, %s312
      %p318 = scmp.eq.s32.totalorder %s27, 0
      %p319 = por %p317, %p318
      %p320 = scmp.ne.s32.totalorder %s309, %s312
      %p321 = scmp.eq.s32.totalorder %s32, 1
      %p322 = por %p320, %p321
      %p323 = scmp.ne.s32.totalorder %s312, %s313
      %p324 = scmp.eq.s32.totalorder %s32, 0
      %p325 = por %p323, %p324
      %p326 = scmp.ne.s32.totalorder %s312, %s313
      %p327 = scmp.eq.s32.totalorder %s33, 1
      %p328 = por %p326, %p327
      %p330 = scmp.ne.s32.totalorder %s313, %s329
      %p331 = scmp.eq.s32.totalorder %s33, 0
      %p332 = por %p330, %p331
      %p333 = scmp.le.s32.totalorder 1, %s27
      %p334 = scmp.lt.s32.totalorder %s27, 3
      %p335 = pnand %p333, %p334
      %p336 = pneg %p335
      // Predicated region
      $region9: #{tpu_custom_call.1} parent=5 // pred_check
        _
      $region10: #{tpu_custom_call.1} parent=5 // pred_check_branch
        %338 = sbr.rel (%p335) target = $region12
      $region11: #{tpu_custom_call.1} parent=5 // pred_region
        %s339 = ssub.s32 %s27, 1
        // Predicated region
        $region13: #{tpu_custom_call.1} parent=11 // pred_check
          %p340 = pneg %p152
        $region14: #{tpu_custom_call.1} parent=11 // pred_check_branch
          %342 = sbr.rel (%p340) target = $region16
        $region15: #{tpu_custom_call.1} parent=11 // pred_region
          %s344 = ssub.s32 4096, 4096
          %345 = vsyncadd [#allocation6], %s344
          %s346 = sshll.u32 [#allocation5], 4
          %s347 = int_to_ptr.vmem [resolvable:$true] %s346
          %352 = dma.hbm_to_vmem [thread:$0]  %s4, 4096, %s347, [#allocation6], 128, 128, 8
        $region16: #{tpu_custom_call.1} parent=11 // pred_fallthru
          _
        // Predicated region
        $region17: #{tpu_custom_call.1} parent=11 // pred_check
          %p353 = pneg %p173
        $region18: #{tpu_custom_call.1} parent=11 // pred_check_branch
          %355 = sbr.rel (%p353) target = $region20
        $region19: #{tpu_custom_call.1} parent=11 // pred_region
          _
        $region20: #{tpu_custom_call.1} parent=11 // pred_fallthru
          _
        // Predicated region
        $region21: #{tpu_custom_call.1} parent=11 // pred_check
          %p356 = pneg %p194
        $region22: #{tpu_custom_call.1} parent=11 // pred_check_branch
          %358 = sbr.rel (%p356) target = $region24
        $region23: #{tpu_custom_call.1} parent=11 // pred_region
          %s360 = ssub.s32 4096, 4096
          %361 = vsyncadd [#allocation6], %s360
          %s362 = sshll.u32 [#allocation7], 4
          %s363 = int_to_ptr.vmem [resolvable:$true] %s362
          %368 = dma.hbm_to_vmem [thread:$0]  %s6, 4096, %s363, [#allocation6], 128, 128, 8
        $region24: #{tpu_custom_call.1} parent=11 // pred_fallthru
          _
        // Predicated region
        $region25: #{tpu_custom_call.1} parent=11 // pred_check
          %p369 = pneg %p215
        $region26: #{tpu_custom_call.1} parent=11 // pred_check_branch
          %371 = sbr.rel (%p369) target = $region28
        $region27: #{tpu_custom_call.1} parent=11 // pred_region
          _
        $region28: #{tpu_custom_call.1} parent=11 // pred_fallthru
          _
        // Predicated region
        $region29: #{tpu_custom_call.1} parent=11 // pred_check
          %p372 = pneg %p236
        $region30: #{tpu_custom_call.1} parent=11 // pred_check_branch
          %374 = sbr.rel (%p372) target = $region32
        $region31: #{tpu_custom_call.1} parent=11 // pred_region
          %s376 = ssub.s32 4096, 4096
          %377 = vsyncadd [#allocation9], %s376
          %s378 = sshll.u32 [#allocation8], 4
          %s379 = int_to_ptr.vmem [resolvable:$true] %s378
          %384 = dma.hbm_to_vmem [thread:$0]  %s8, 4096, %s379, [#allocation9], 128, 128, 8
        $region32: #{tpu_custom_call.1} parent=11 // pred_fallthru
          _
        // Predicated region
        $region33: #{tpu_custom_call.1} parent=11 // pred_check
          %p385 = pneg %p257
        $region34: #{tpu_custom_call.1} parent=11 // pred_check_branch
          %387 = sbr.rel (%p385) target = $region36
        $region35: #{tpu_custom_call.1} parent=11 // pred_region
          %s389 = ssub.s32 4096, 4096
          %390 = vsyncadd [#allocation9], %s389
          %s391 = sshll.u32 [#allocation10], 4
          %s392 = int_to_ptr.vmem [resolvable:$true] %s391
          %397 = dma.hbm_to_vmem [thread:$0]  %s9, 4096, %s392, [#allocation9], 128, 128, 8
        $region36: #{tpu_custom_call.1} parent=11 // pred_fallthru
          _
        // Predicated region
        $region37: #{tpu_custom_call.1} parent=11 // pred_check
          %p398 = pneg %p278
        $region38: #{tpu_custom_call.1} parent=11 // pred_check_branch
          %400 = sbr.rel (%p398) target = $region40
        $region39: #{tpu_custom_call.1} parent=11 // pred_region
          %s402 = ssub.s32 4096, 4096
          %403 = vsyncadd [#allocation12], %s402
          %s404 = sshll.u32 [#allocation11], 4
          %s405 = int_to_ptr.vmem [resolvable:$true] %s404
          %410 = dma.hbm_to_vmem [thread:$0]  %s10, 4096, %s405, [#allocation12], 128, 128, 8
        $region40: #{tpu_custom_call.1} parent=11 // pred_fallthru
          _
        // Predicated region
        $region41: #{tpu_custom_call.1} parent=11 // pred_check
          %p411 = pneg %p299
        $region42: #{tpu_custom_call.1} parent=11 // pred_check_branch
          %413 = sbr.rel (%p411) target = $region44
        $region43: #{tpu_custom_call.1} parent=11 // pred_region
          _
        $region44: #{tpu_custom_call.1} parent=11 // pred_fallthru
          _
      $region12: #{tpu_custom_call.1} parent=5 // pred_fallthru
        _
      %p414 = scmp.lt.s32.totalorder %s27, 2
      // Predicated region
      $region45: #{tpu_custom_call.1} parent=5 // pred_check
        %p415 = pneg %p414
      $region46: #{tpu_custom_call.1} parent=5 // pred_check_branch
        %417 = sbr.rel (%p415) target = $region48
      $region47: #{tpu_custom_call.1} parent=5 // pred_region
        // Predicated region
        $region49: #{tpu_custom_call.1} parent=47 // pred_check
          %p418 = pneg %p47
        $region50: #{tpu_custom_call.1} parent=47 // pred_check_branch
          %420 = sbr.rel (%p418) target = $region52
        $region51: #{tpu_custom_call.1} parent=47 // pred_region
          %s421 = smul.u32 16, %s27
          %p422 = scmp.lt.s32.totalorder %s421, 31
          %s423 = scalar_select %p422, %s421, 31
          %s424 = smul.addr %s423, 8
          %s425 = scalar_lea.vmem %s0, %s424
          %s426 = smul.u32 16, %s27
        $region52: #{tpu_custom_call.1} parent=47 // pred_fallthru
          _
        // Predicated region
        $region53: #{tpu_custom_call.1} parent=47 // pred_check
          %p427 = pneg %p73
        $region54: #{tpu_custom_call.1} parent=47 // pred_check_branch
          %429 = sbr.rel (%p427) target = $region56
        $region55: #{tpu_custom_call.1} parent=47 // pred_region
          %s430 = sand.u32 %s63, 1
          %s431 = scalar_lea.sflag [#allocation3], %s430
          %s432 = sand.u32 %s63, 1
          %s433 = smul.addr %s432, 256
          %s434 = scalar_lea.vmem [#allocation2], %s433
          %s435 = smul.u32 16, %s27
          %s437 = ssub.s32 4096, 4096
          %438 = vsyncadd %s431, %s437
          %s439 = smul.addr %s435, 2
          %s440 = smul.addr %s439, 128
          %s441 = scalar_lea.hbm %s1, %s440
          %s442 = sshll.u32 %s434, 4
          %s443 = int_to_ptr.vmem [resolvable:$true] %s442
          %448 = dma.hbm_to_vmem [thread:$0]  %s441, 4096, %s443, %s431, 256, 256, 16
        $region56: #{tpu_custom_call.1} parent=47 // pred_fallthru
          _
        // Predicated region
        $region57: #{tpu_custom_call.1} parent=47 // pred_check
          %p449 = pneg %p99
        $region58: #{tpu_custom_call.1} parent=47 // pred_check_branch
          %451 = sbr.rel (%p449) target = $region60
        $region59: #{tpu_custom_call.1} parent=47 // pred_region
          %s452 = smul.u32 16, %s27
          %p453 = scmp.lt.s32.totalorder %s452, 31
          %s454 = scalar_select %p453, %s452, 31
          %s455 = smul.addr %s454, 8
          %s456 = scalar_lea.vmem %s2, %s455
          %s457 = smul.u32 16, %s27
        $region60: #{tpu_custom_call.1} parent=47 // pred_fallthru
          _
        // Predicated region
        $region61: #{tpu_custom_call.1} parent=47 // pred_check
          %p458 = pneg %p125
        $region62: #{tpu_custom_call.1} parent=47 // pred_check_branch
          %460 = sbr.rel (%p458) target = $region64
        $region63: #{tpu_custom_call.1} parent=47 // pred_region
          %s461 = smul.u32 2, %s27
          %p462 = scmp.lt.s32.totalorder %s461, 3
          %s463 = scalar_select %p462, %s461, 3
          %s464 = smul.addr %s463, 8
          %s465 = scalar_lea.vmem %s3, %s464
          %s466 = smul.u32 2, %s27
        $region64: #{tpu_custom_call.1} parent=47 // pred_fallthru
          _
      $region48: #{tpu_custom_call.1} parent=5 // pred_fallthru
        _
      %p467 = scmp.le.s32.totalorder 1, %s27
      %p468 = scmp.lt.s32.totalorder %s27, 3
      %p469 = pnand %p467, %p468
      %p470 = pneg %p469
      // Predicated region
      $region65: #{tpu_custom_call.1} parent=5 // pred_check
        _
      $region66: #{tpu_custom_call.1} parent=5 // pred_check_branch
        %472 = sbr.rel (%p469) target = $region68
      $region67: #{tpu_custom_call.1} parent=5 // pred_region
        %s473 = ssub.s32 %s27, 1
        %s474 = sand.u32 %s66, 1
        %s475 = scalar_lea.sflag [#allocation3], %s474
        %s476 = sand.u32 %s66, 1
        %s477 = smul.addr %s476, 256
        %s478 = scalar_lea.vmem [#allocation2], %s477
        // Predicated region
        $region69: #{tpu_custom_call.1} parent=67 // pred_check
          %p479 = pneg %p79
        $region70: #{tpu_custom_call.1} parent=67 // pred_check_branch
          %481 = sbr.rel (%p479) target = $region72
        $region71: #{tpu_custom_call.1} parent=67 // pred_region
          %482 = dma.done %s475, 4096
        $region72: #{tpu_custom_call.1} parent=67 // pred_fallthru
          _
        // Predicated region
        $region73: #{tpu_custom_call.1} parent=67 // pred_check
          %p483 = pneg %p152
        $region74: #{tpu_custom_call.1} parent=67 // pred_check_branch
          %485 = sbr.rel (%p483) target = $region76
        $region75: #{tpu_custom_call.1} parent=67 // pred_region
          %486 = dma.done [#allocation6], 4096
        $region76: #{tpu_custom_call.1} parent=67 // pred_fallthru
          _
        // Predicated region
        $region77: #{tpu_custom_call.1} parent=67 // pred_check
          %p487 = pneg %p194
        $region78: #{tpu_custom_call.1} parent=67 // pred_check_branch
          %489 = sbr.rel (%p487) target = $region80
        $region79: #{tpu_custom_call.1} parent=67 // pred_region
          %490 = dma.done [#allocation6], 4096
        $region80: #{tpu_custom_call.1} parent=67 // pred_fallthru
          _
        // Predicated region
        $region81: #{tpu_custom_call.1} parent=67 // pred_check
          %p491 = pneg %p236
        $region82: #{tpu_custom_call.1} parent=67 // pred_check_branch
          %493 = sbr.rel (%p491) target = $region84
        $region83: #{tpu_custom_call.1} parent=67 // pred_region
          %494 = dma.done [#allocation9], 4096
        $region84: #{tpu_custom_call.1} parent=67 // pred_fallthru
          _
        // Predicated region
        $region85: #{tpu_custom_call.1} parent=67 // pred_check
          %p495 = pneg %p257
        $region86: #{tpu_custom_call.1} parent=67 // pred_check_branch
          %497 = sbr.rel (%p495) target = $region88
        $region87: #{tpu_custom_call.1} parent=67 // pred_region
          %498 = dma.done [#allocation9], 4096
        $region88: #{tpu_custom_call.1} parent=67 // pred_fallthru
          _
        // Predicated region
        $region89: #{tpu_custom_call.1} parent=67 // pred_check
          %p499 = pneg %p278
        $region90: #{tpu_custom_call.1} parent=67 // pred_check_branch
          %501 = sbr.rel (%p499) target = $region92
        $region91: #{tpu_custom_call.1} parent=67 // pred_region
          %502 = dma.done [#allocation12], 4096
        $region92: #{tpu_custom_call.1} parent=67 // pred_fallthru
          _
        %s503 = smul.u32 16, %s32
        %p504 = scmp.lt.s32.totalorder %s503, 31
        %s505 = scalar_select %p504, %s503, 31
        %s506 = smul.addr %s505, 8
        %s507 = scalar_lea.vmem %s0, %s506
        %p508 = pneg %p53
        %p509 = pneg %p50
        %s510 = sand.u32 %s66, 1
        %s511 = scalar_lea.sflag [#allocation3], %s510
        %s512 = sand.u32 %s66, 1
        %s513 = smul.addr %s512, 256
        %s514 = scalar_lea.vmem [#allocation2], %s513
        %p515 = pneg %p79
        %p516 = pneg %p76
        %s517 = smul.u32 16, %s32
        %p518 = scmp.lt.s32.totalorder %s517, 31
        %s519 = scalar_select %p518, %s517, 31
        %s520 = smul.addr %s519, 8
        %s521 = scalar_lea.vmem %s2, %s520
        %p522 = pneg %p105
        %p523 = pneg %p102
        %s524 = smul.u32 2, %s32
        %p525 = scmp.lt.s32.totalorder %s524, 3
        %s526 = scalar_select %p525, %s524, 3
        %s527 = smul.addr %s526, 8
        %s528 = scalar_lea.vmem %s3, %s527
        %p529 = pneg %p131
        %p530 = pneg %p128
        %p531 = pneg %p152
        %p532 = pneg %p149
        %p533 = pneg %p173
        %p534 = pneg %p170
        %p535 = pneg %p194
        %p536 = pneg %p191
        %p537 = pneg %p215
        %p538 = pneg %p212
        %p539 = pneg %p236
        %p540 = pneg %p233
        %p541 = pneg %p257
        %p542 = pneg %p254
        %p543 = pneg %p278
        %p544 = pneg %p275
        %p545 = pneg %p299
        %p546 = pneg %p296
        %p547 = pneg %p325
        %p548 = pneg %p322
        %s549 = sand.u32 %s312, 1
        %s550 = scalar_lea.sflag [#allocation4], %s549
        %s551 = sand.u32 %s312, 1
        %s552 = smul.addr %s551, 32
        %s553 = scalar_lea.vmem [#allocation13], %s552
        %s554 = smul.u32 16, %s32
        %p555 = scmp.lt.s32.totalorder %s554, 31
        %s556 = scalar_select %p555, %s554, 31
        %s557 = smul.addr %s556, 8
        %s558 = scalar_lea.vmem %s0, %s557
        %s559 = smul.u32 16, %s32
        %s560 = smul.u32 16, %s32
        %s561 = smul.u32 16, %s32
        %p562 = scmp.lt.s32.totalorder %s561, 31
        %s563 = scalar_select %p562, %s561, 31
        %s564 = smul.addr %s563, 8
        %s565 = scalar_lea.vmem %s2, %s564
        %s566 = smul.u32 16, %s32
        %s567 = smul.u32 2, %s32
        %p568 = scmp.lt.s32.totalorder %s567, 3
        %s569 = scalar_select %p568, %s567, 3
        %s570 = smul.addr %s569, 8
        %s571 = scalar_lea.vmem %s3, %s570
        %s572 = smul.u32 2, %s32
        %s573 = smul.u32 2, %s32
        %v574 = vld [vmem:[%s558] sm:$0xff]
        %v575 = vld [vmem:[%s558 + $0x8] sm:$0xff]
        %v576 = vld [vmem:[%s558 + $0x10] sm:$0xff]
        %v577 = vld [vmem:[%s558 + $0x18] sm:$0xff]
        %v578 = vld [vmem:[%s558 + $0x20] sm:$0xff]
        %v579 = vld [vmem:[%s558 + $0x28] sm:$0xff]
        %v580 = vld [vmem:[%s558 + $0x30] sm:$0xff]
        %v581 = vld [vmem:[%s558 + $0x38] sm:$0xff]
        %v582 = vld [vmem:[%s558 + $0x40] sm:$0xff]
        %v583 = vld [vmem:[%s558 + $0x48] sm:$0xff]
        %v584 = vld [vmem:[%s558 + $0x50] sm:$0xff]
        %v585 = vld [vmem:[%s558 + $0x58] sm:$0xff]
        %v586 = vld [vmem:[%s558 + $0x60] sm:$0xff]
        %v587 = vld [vmem:[%s558 + $0x68] sm:$0xff]
        %v588 = vld [vmem:[%s558 + $0x70] sm:$0xff]
        %v589 = vld [vmem:[%s558 + $0x78] sm:$0xff]
        %v590 = vld [vmem:[%s478] sm:$0xff]
        %v591 = vld [vmem:[%s478 + $0x8] sm:$0xff]
        %v592 = vld [vmem:[%s478 + $0x10] sm:$0xff]
        %v593 = vld [vmem:[%s478 + $0x18] sm:$0xff]
        %v594 = vld [vmem:[%s478 + $0x20] sm:$0xff]
        %v595 = vld [vmem:[%s478 + $0x28] sm:$0xff]
        %v596 = vld [vmem:[%s478 + $0x30] sm:$0xff]
        %v597 = vld [vmem:[%s478 + $0x38] sm:$0xff]
        %v598 = vld [vmem:[%s478 + $0x40] sm:$0xff]
        %v599 = vld [vmem:[%s478 + $0x48] sm:$0xff]
        %v600 = vld [vmem:[%s478 + $0x50] sm:$0xff]
        %v601 = vld [vmem:[%s478 + $0x58] sm:$0xff]
        %v602 = vld [vmem:[%s478 + $0x60] sm:$0xff]
        %v603 = vld [vmem:[%s478 + $0x68] sm:$0xff]
        %v604 = vld [vmem:[%s478 + $0x70] sm:$0xff]
        %v605 = vld [vmem:[%s478 + $0x78] sm:$0xff]
        %v606 = vld [vmem:[%s478 + $0x80] sm:$0xff]
        %v607 = vld [vmem:[%s478 + $0x88] sm:$0xff]
        %v608 = vld [vmem:[%s478 + $0x90] sm:$0xff]
        %v609 = vld [vmem:[%s478 + $0x98] sm:$0xff]
        %v610 = vld [vmem:[%s478 + $0xa0] sm:$0xff]
        %v611 = vld [vmem:[%s478 + $0xa8] sm:$0xff]
        %v612 = vld [vmem:[%s478 + $0xb0] sm:$0xff]
        %v613 = vld [vmem:[%s478 + $0xb8] sm:$0xff]
        %v614 = vld [vmem:[%s478 + $0xc0] sm:$0xff]
        %v615 = vld [vmem:[%s478 + $0xc8] sm:$0xff]
        %v616 = vld [vmem:[%s478 + $0xd0] sm:$0xff]
        %v617 = vld [vmem:[%s478 + $0xd8] sm:$0xff]
        %v618 = vld [vmem:[%s478 + $0xe0] sm:$0xff]
        %v619 = vld [vmem:[%s478 + $0xe8] sm:$0xff]
        %v620 = vld [vmem:[%s478 + $0xf0] sm:$0xff]
        %v621 = vld [vmem:[%s478 + $0xf8] sm:$0xff]
        %v622 = vld [vmem:[%s565] sm:$0xff]
        %v623 = vld [vmem:[%s565 + $0x8] sm:$0xff]
        %v624 = vld [vmem:[%s565 + $0x10] sm:$0xff]
        %v625 = vld [vmem:[%s565 + $0x18] sm:$0xff]
        %v626 = vld [vmem:[%s565 + $0x20] sm:$0xff]
        %v627 = vld [vmem:[%s565 + $0x28] sm:$0xff]
        %v628 = vld [vmem:[%s565 + $0x30] sm:$0xff]
        %v629 = vld [vmem:[%s565 + $0x38] sm:$0xff]
        %v630 = vld [vmem:[%s565 + $0x40] sm:$0xff]
        %v631 = vld [vmem:[%s565 + $0x48] sm:$0xff]
        %v632 = vld [vmem:[%s565 + $0x50] sm:$0xff]
        %v633 = vld [vmem:[%s565 + $0x58] sm:$0xff]
        %v634 = vld [vmem:[%s565 + $0x60] sm:$0xff]
        %v635 = vld [vmem:[%s565 + $0x68] sm:$0xff]
        %v636 = vld [vmem:[%s565 + $0x70] sm:$0xff]
        %v637 = vld [vmem:[%s565 + $0x78] sm:$0xff]
        %v638 = vld [vmem:[%s571] sm:$0xff]
        %v639 = vld [vmem:[%s571 + $0x8] sm:$0xff]
        %641 = vset.pattern.permute.xlu0 0
        %642 = vperm.xlu0 %641, %v622
        %v643 = vpop.permute.xlu0 %642
        %646 = vset.pattern.permute.xlu0 0
        %647 = vperm.xlu0 %646, %v623
        %v648 = vpop.permute.xlu0 %647
        %651 = vset.pattern.permute.xlu0 0
        %652 = vperm.xlu0 %651, %v624
        %v653 = vpop.permute.xlu0 %652
        %656 = vset.pattern.permute.xlu0 0
        %657 = vperm.xlu0 %656, %v625
        %v658 = vpop.permute.xlu0 %657
        %661 = vset.pattern.permute.xlu0 0
        %662 = vperm.xlu0 %661, %v626
        %v663 = vpop.permute.xlu0 %662
        %666 = vset.pattern.permute.xlu0 0
        %667 = vperm.xlu0 %666, %v627
        %v668 = vpop.permute.xlu0 %667
        %671 = vset.pattern.permute.xlu0 0
        %672 = vperm.xlu0 %671, %v628
        %v673 = vpop.permute.xlu0 %672
        %676 = vset.pattern.permute.xlu0 0
        %677 = vperm.xlu0 %676, %v629
        %v678 = vpop.permute.xlu0 %677
        %681 = vset.pattern.permute.xlu0 0
        %682 = vperm.xlu0 %681, %v630
        %v683 = vpop.permute.xlu0 %682
        %686 = vset.pattern.permute.xlu0 0
        %687 = vperm.xlu0 %686, %v631
        %v688 = vpop.permute.xlu0 %687
        %691 = vset.pattern.permute.xlu0 0
        %692 = vperm.xlu0 %691, %v632
        %v693 = vpop.permute.xlu0 %692
        %696 = vset.pattern.permute.xlu0 0
        %697 = vperm.xlu0 %696, %v633
        %v698 = vpop.permute.xlu0 %697
        %701 = vset.pattern.permute.xlu0 0
        %702 = vperm.xlu0 %701, %v634
        %v703 = vpop.permute.xlu0 %702
        %706 = vset.pattern.permute.xlu0 0
        %707 = vperm.xlu0 %706, %v635
        %v708 = vpop.permute.xlu0 %707
        %711 = vset.pattern.permute.xlu0 0
        %712 = vperm.xlu0 %711, %v636
        %v713 = vpop.permute.xlu0 %712
        %716 = vset.pattern.permute.xlu0 0
        %717 = vperm.xlu0 %716, %v637
        %v718 = vpop.permute.xlu0 %717
        %720 = vset.pattern.permute.xlu0 1
        %721 = vperm.xlu0 %720, %v622
        %v722 = vpop.permute.xlu0 %721
        %724 = vset.pattern.permute.xlu0 1
        %725 = vperm.xlu0 %724, %v623
        %v726 = vpop.permute.xlu0 %725
        %728 = vset.pattern.permute.xlu0 1
        %729 = vperm.xlu0 %728, %v624
        %v730 = vpop.permute.xlu0 %729
        %732 = vset.pattern.permute.xlu0 1
        %733 = vperm.xlu0 %732, %v625
        %v734 = vpop.permute.xlu0 %733
        %736 = vset.pattern.permute.xlu0 1
        %737 = vperm.xlu0 %736, %v626
        %v738 = vpop.permute.xlu0 %737
        %740 = vset.pattern.permute.xlu0 1
        %741 = vperm.xlu0 %740, %v627
        %v742 = vpop.permute.xlu0 %741
        %744 = vset.pattern.permute.xlu0 1
        %745 = vperm.xlu0 %744, %v628
        %v746 = vpop.permute.xlu0 %745
        %748 = vset.pattern.permute.xlu0 1
        %749 = vperm.xlu0 %748, %v629
        %v750 = vpop.permute.xlu0 %749
        %752 = vset.pattern.permute.xlu0 1
        %753 = vperm.xlu0 %752, %v630
        %v754 = vpop.permute.xlu0 %753
        %756 = vset.pattern.permute.xlu0 1
        %757 = vperm.xlu0 %756, %v631
        %v758 = vpop.permute.xlu0 %757
        %760 = vset.pattern.permute.xlu0 1
        %761 = vperm.xlu0 %760, %v632
        %v762 = vpop.permute.xlu0 %761
        %764 = vset.pattern.permute.xlu0 1
        %765 = vperm.xlu0 %764, %v633
        %v766 = vpop.permute.xlu0 %765
        %768 = vset.pattern.permute.xlu0 1
        %769 = vperm.xlu0 %768, %v634
        %v770 = vpop.permute.xlu0 %769
        %772 = vset.pattern.permute.xlu0 1
        %773 = vperm.xlu0 %772, %v635
        %v774 = vpop.permute.xlu0 %773
        %776 = vset.pattern.permute.xlu0 1
        %777 = vperm.xlu0 %776, %v636
        %v778 = vpop.permute.xlu0 %777
        %780 = vset.pattern.permute.xlu0 1
        %781 = vperm.xlu0 %780, %v637
        %v782 = vpop.permute.xlu0 %781
        %784 = vset.pattern.permute.xlu0 2
        %785 = vperm.xlu0 %784, %v622
        %v786 = vpop.permute.xlu0 %785
        %788 = vset.pattern.permute.xlu0 2
        %789 = vperm.xlu0 %788, %v623
        %v790 = vpop.permute.xlu0 %789
        %792 = vset.pattern.permute.xlu0 2
        %793 = vperm.xlu0 %792, %v624
        %v794 = vpop.permute.xlu0 %793
        %796 = vset.pattern.permute.xlu0 2
        %797 = vperm.xlu0 %796, %v625
        %v798 = vpop.permute.xlu0 %797
        %800 = vset.pattern.permute.xlu0 2
        %801 = vperm.xlu0 %800, %v626
        %v802 = vpop.permute.xlu0 %801
        %804 = vset.pattern.permute.xlu0 2
        %805 = vperm.xlu0 %804, %v627
        %v806 = vpop.permute.xlu0 %805
        %808 = vset.pattern.permute.xlu0 2
        %809 = vperm.xlu0 %808, %v628
        %v810 = vpop.permute.xlu0 %809
        %812 = vset.pattern.permute.xlu0 2
        %813 = vperm.xlu0 %812, %v629
        %v814 = vpop.permute.xlu0 %813
        %816 = vset.pattern.permute.xlu0 2
        %817 = vperm.xlu0 %816, %v630
        %v818 = vpop.permute.xlu0 %817
        %820 = vset.pattern.permute.xlu0 2
        %821 = vperm.xlu0 %820, %v631
        %v822 = vpop.permute.xlu0 %821
        %824 = vset.pattern.permute.xlu0 2
        %825 = vperm.xlu0 %824, %v632
        %v826 = vpop.permute.xlu0 %825
        %828 = vset.pattern.permute.xlu0 2
        %829 = vperm.xlu0 %828, %v633
        %v830 = vpop.permute.xlu0 %829
        %832 = vset.pattern.permute.xlu0 2
        %833 = vperm.xlu0 %832, %v634
        %v834 = vpop.permute.xlu0 %833
        %836 = vset.pattern.permute.xlu0 2
        %837 = vperm.xlu0 %836, %v635
        %v838 = vpop.permute.xlu0 %837
        %840 = vset.pattern.permute.xlu0 2
        %841 = vperm.xlu0 %840, %v636
        %v842 = vpop.permute.xlu0 %841
        %844 = vset.pattern.permute.xlu0 2
        %845 = vperm.xlu0 %844, %v637
        %v846 = vpop.permute.xlu0 %845
        %848 = vset.pattern.permute.xlu0 3
        %849 = vperm.xlu0 %848, %v622
        %v850 = vpop.permute.xlu0 %849
        %852 = vset.pattern.permute.xlu0 3
        %853 = vperm.xlu0 %852, %v623
        %v854 = vpop.permute.xlu0 %853
        %856 = vset.pattern.permute.xlu0 3
        %857 = vperm.xlu0 %856, %v624
        %v858 = vpop.permute.xlu0 %857
        %860 = vset.pattern.permute.xlu0 3
        %861 = vperm.xlu0 %860, %v625
        %v862 = vpop.permute.xlu0 %861
        %864 = vset.pattern.permute.xlu0 3
        %865 = vperm.xlu0 %864, %v626
        %v866 = vpop.permute.xlu0 %865
        %868 = vset.pattern.permute.xlu0 3
        %869 = vperm.xlu0 %868, %v627
        %v870 = vpop.permute.xlu0 %869
        %872 = vset.pattern.permute.xlu0 3
        %873 = vperm.xlu0 %872, %v628
        %v874 = vpop.permute.xlu0 %873
        %876 = vset.pattern.permute.xlu0 3
        %877 = vperm.xlu0 %876, %v629
        %v878 = vpop.permute.xlu0 %877
        %880 = vset.pattern.permute.xlu0 3
        %881 = vperm.xlu0 %880, %v630
        %v882 = vpop.permute.xlu0 %881
        %884 = vset.pattern.permute.xlu0 3
        %885 = vperm.xlu0 %884, %v631
        %v886 = vpop.permute.xlu0 %885
        %888 = vset.pattern.permute.xlu0 3
        %889 = vperm.xlu0 %888, %v632
        %v890 = vpop.permute.xlu0 %889
        %892 = vset.pattern.permute.xlu0 3
        %893 = vperm.xlu0 %892, %v633
        %v894 = vpop.permute.xlu0 %893
        %896 = vset.pattern.permute.xlu0 3
        %897 = vperm.xlu0 %896, %v634
        %v898 = vpop.permute.xlu0 %897
        %900 = vset.pattern.permute.xlu0 3
        %901 = vperm.xlu0 %900, %v635
        %v902 = vpop.permute.xlu0 %901
        %904 = vset.pattern.permute.xlu0 3
        %905 = vperm.xlu0 %904, %v636
        %v906 = vpop.permute.xlu0 %905
        %908 = vset.pattern.permute.xlu0 3
        %909 = vperm.xlu0 %908, %v637
        %v910 = vpop.permute.xlu0 %909
        %912 = vset.pattern.permute.xlu0 4
        %913 = vperm.xlu0 %912, %v622
        %v914 = vpop.permute.xlu0 %913
        %916 = vset.pattern.permute.xlu0 4
        %917 = vperm.xlu0 %916, %v623
        %v918 = vpop.permute.xlu0 %917
        %920 = vset.pattern.permute.xlu0 4
        %921 = vperm.xlu0 %920, %v624
        %v922 = vpop.permute.xlu0 %921
        %924 = vset.pattern.permute.xlu0 4
        %925 = vperm.xlu0 %924, %v625
        %v926 = vpop.permute.xlu0 %925
        %928 = vset.pattern.permute.xlu0 4
        %929 = vperm.xlu0 %928, %v626
        %v930 = vpop.permute.xlu0 %929
        %932 = vset.pattern.permute.xlu0 4
        %933 = vperm.xlu0 %932, %v627
        %v934 = vpop.permute.xlu0 %933
        %936 = vset.pattern.permute.xlu0 4
        %937 = vperm.xlu0 %936, %v628
        %v938 = vpop.permute.xlu0 %937
        %940 = vset.pattern.permute.xlu0 4
        %941 = vperm.xlu0 %940, %v629
        %v942 = vpop.permute.xlu0 %941
        %944 = vset.pattern.permute.xlu0 4
        %945 = vperm.xlu0 %944, %v630
        %v946 = vpop.permute.xlu0 %945
        %948 = vset.pattern.permute.xlu0 4
        %949 = vperm.xlu0 %948, %v631
        %v950 = vpop.permute.xlu0 %949
        %952 = vset.pattern.permute.xlu0 4
        %953 = vperm.xlu0 %952, %v632
        %v954 = vpop.permute.xlu0 %953
        %956 = vset.pattern.permute.xlu0 4
        %957 = vperm.xlu0 %956, %v633
        %v958 = vpop.permute.xlu0 %957
        %960 = vset.pattern.permute.xlu0 4
        %961 = vperm.xlu0 %960, %v634
        %v962 = vpop.permute.xlu0 %961
        %964 = vset.pattern.permute.xlu0 4
        %965 = vperm.xlu0 %964, %v635
        %v966 = vpop.permute.xlu0 %965
        %968 = vset.pattern.permute.xlu0 4
        %969 = vperm.xlu0 %968, %v636
        %v970 = vpop.permute.xlu0 %969
        %972 = vset.pattern.permute.xlu0 4
        %973 = vperm.xlu0 %972, %v637
        %v974 = vpop.permute.xlu0 %973
        %976 = vset.pattern.permute.xlu0 5
        %977 = vperm.xlu0 %976, %v622
        %v978 = vpop.permute.xlu0 %977
        %980 = vset.pattern.permute.xlu0 5
        %981 = vperm.xlu0 %980, %v623
        %v982 = vpop.permute.xlu0 %981
        %984 = vset.pattern.permute.xlu0 5
        %985 = vperm.xlu0 %984, %v624
        %v986 = vpop.permute.xlu0 %985
        %988 = vset.pattern.permute.xlu0 5
        %989 = vperm.xlu0 %988, %v625
        %v990 = vpop.permute.xlu0 %989
        %992 = vset.pattern.permute.xlu0 5
        %993 = vperm.xlu0 %992, %v626
        %v994 = vpop.permute.xlu0 %993
        %996 = vset.pattern.permute.xlu0 5
        %997 = vperm.xlu0 %996, %v627
        %v998 = vpop.permute.xlu0 %997
        %1000 = vset.pattern.permute.xlu0 5
        %1001 = vperm.xlu0 %1000, %v628
        %v1002 = vpop.permute.xlu0 %1001
        %1004 = vset.pattern.permute.xlu0 5
        %1005 = vperm.xlu0 %1004, %v629
        %v1006 = vpop.permute.xlu0 %1005
        %1008 = vset.pattern.permute.xlu0 5
        %1009 = vperm.xlu0 %1008, %v630
        %v1010 = vpop.permute.xlu0 %1009
        %1012 = vset.pattern.permute.xlu0 5
        %1013 = vperm.xlu0 %1012, %v631
        %v1014 = vpop.permute.xlu0 %1013
        %1016 = vset.pattern.permute.xlu0 5
        %1017 = vperm.xlu0 %1016, %v632
        %v1018 = vpop.permute.xlu0 %1017
        %1020 = vset.pattern.permute.xlu0 5
        %1021 = vperm.xlu0 %1020, %v633
        %v1022 = vpop.permute.xlu0 %1021
        %1024 = vset.pattern.permute.xlu0 5
        %1025 = vperm.xlu0 %1024, %v634
        %v1026 = vpop.permute.xlu0 %1025
        %1028 = vset.pattern.permute.xlu0 5
        %1029 = vperm.xlu0 %1028, %v635
        %v1030 = vpop.permute.xlu0 %1029
        %1032 = vset.pattern.permute.xlu0 5
        %1033 = vperm.xlu0 %1032, %v636
        %v1034 = vpop.permute.xlu0 %1033
        %1036 = vset.pattern.permute.xlu0 5
        %1037 = vperm.xlu0 %1036, %v637
        %v1038 = vpop.permute.xlu0 %1037
        %1040 = vset.pattern.permute.xlu0 6
        %1041 = vperm.xlu0 %1040, %v622
        %v1042 = vpop.permute.xlu0 %1041
        %1044 = vset.pattern.permute.xlu0 6
        %1045 = vperm.xlu0 %1044, %v623
        %v1046 = vpop.permute.xlu0 %1045
        %1048 = vset.pattern.permute.xlu0 6
        %1049 = vperm.xlu0 %1048, %v624
        %v1050 = vpop.permute.xlu0 %1049
        %1052 = vset.pattern.permute.xlu0 6
        %1053 = vperm.xlu0 %1052, %v625
        %v1054 = vpop.permute.xlu0 %1053
        %1056 = vset.pattern.permute.xlu0 6
        %1057 = vperm.xlu0 %1056, %v626
        %v1058 = vpop.permute.xlu0 %1057
        %1060 = vset.pattern.permute.xlu0 6
        %1061 = vperm.xlu0 %1060, %v627
        %v1062 = vpop.permute.xlu0 %1061
        %1064 = vset.pattern.permute.xlu0 6
        %1065 = vperm.xlu0 %1064, %v628
        %v1066 = vpop.permute.xlu0 %1065
        %1068 = vset.pattern.permute.xlu0 6
        %1069 = vperm.xlu0 %1068, %v629
        %v1070 = vpop.permute.xlu0 %1069
        %1072 = vset.pattern.permute.xlu0 6
        %1073 = vperm.xlu0 %1072, %v630
        %v1074 = vpop.permute.xlu0 %1073
        %1076 = vset.pattern.permute.xlu0 6
        %1077 = vperm.xlu0 %1076, %v631
        %v1078 = vpop.permute.xlu0 %1077
        %1080 = vset.pattern.permute.xlu0 6
        %1081 = vperm.xlu0 %1080, %v632
        %v1082 = vpop.permute.xlu0 %1081
        %1084 = vset.pattern.permute.xlu0 6
        %1085 = vperm.xlu0 %1084, %v633
        %v1086 = vpop.permute.xlu0 %1085
        %1088 = vset.pattern.permute.xlu0 6
        %1089 = vperm.xlu0 %1088, %v634
        %v1090 = vpop.permute.xlu0 %1089
        %1092 = vset.pattern.permute.xlu0 6
        %1093 = vperm.xlu0 %1092, %v635
        %v1094 = vpop.permute.xlu0 %1093
        %1096 = vset.pattern.permute.xlu0 6
        %1097 = vperm.xlu0 %1096, %v636
        %v1098 = vpop.permute.xlu0 %1097
        %1100 = vset.pattern.permute.xlu0 6
        %1101 = vperm.xlu0 %1100, %v637
        %v1102 = vpop.permute.xlu0 %1101
        %1104 = vset.pattern.permute.xlu0 7
        %1105 = vperm.xlu0 %1104, %v622
        %v1106 = vpop.permute.xlu0 %1105
        %1108 = vset.pattern.permute.xlu0 7
        %1109 = vperm.xlu0 %1108, %v623
        %v1110 = vpop.permute.xlu0 %1109
        %1112 = vset.pattern.permute.xlu0 7
        %1113 = vperm.xlu0 %1112, %v624
        %v1114 = vpop.permute.xlu0 %1113
        %1116 = vset.pattern.permute.xlu0 7
        %1117 = vperm.xlu0 %1116, %v625
        %v1118 = vpop.permute.xlu0 %1117
        %1120 = vset.pattern.permute.xlu0 7
        %1121 = vperm.xlu0 %1120, %v626
        %v1122 = vpop.permute.xlu0 %1121
        %1124 = vset.pattern.permute.xlu0 7
        %1125 = vperm.xlu0 %1124, %v627
        %v1126 = vpop.permute.xlu0 %1125
        %1128 = vset.pattern.permute.xlu0 7
        %1129 = vperm.xlu0 %1128, %v628
        %v1130 = vpop.permute.xlu0 %1129
        %1132 = vset.pattern.permute.xlu0 7
        %1133 = vperm.xlu0 %1132, %v629
        %v1134 = vpop.permute.xlu0 %1133
        %1136 = vset.pattern.permute.xlu0 7
        %1137 = vperm.xlu0 %1136, %v630
        %v1138 = vpop.permute.xlu0 %1137
        %1140 = vset.pattern.permute.xlu0 7
        %1141 = vperm.xlu0 %1140, %v631
        %v1142 = vpop.permute.xlu0 %1141
        %1144 = vset.pattern.permute.xlu0 7
        %1145 = vperm.xlu0 %1144, %v632
        %v1146 = vpop.permute.xlu0 %1145
        %1148 = vset.pattern.permute.xlu0 7
        %1149 = vperm.xlu0 %1148, %v633
        %v1150 = vpop.permute.xlu0 %1149
        %1152 = vset.pattern.permute.xlu0 7
        %1153 = vperm.xlu0 %1152, %v634
        %v1154 = vpop.permute.xlu0 %1153
        %1156 = vset.pattern.permute.xlu0 7
        %1157 = vperm.xlu0 %1156, %v635
        %v1158 = vpop.permute.xlu0 %1157
        %1160 = vset.pattern.permute.xlu0 7
        %1161 = vperm.xlu0 %1160, %v636
        %v1162 = vpop.permute.xlu0 %1161
        %1164 = vset.pattern.permute.xlu0 7
        %1165 = vperm.xlu0 %1164, %v637
        %v1166 = vpop.permute.xlu0 %1165
        %vm1168 = vcmask 261120
        %v1169 = vsel %vm1168, %v643, %v722
        %v1170 = vsel %vm1168, %v648, %v726
        %v1171 = vsel %vm1168, %v653, %v730
        %v1172 = vsel %vm1168, %v658, %v734
        %v1173 = vsel %vm1168, %v663, %v738
        %v1174 = vsel %vm1168, %v668, %v742
        %v1175 = vsel %vm1168, %v673, %v746
        %v1176 = vsel %vm1168, %v678, %v750
        %v1177 = vsel %vm1168, %v683, %v754
        %v1178 = vsel %vm1168, %v688, %v758
        %v1179 = vsel %vm1168, %v693, %v762
        %v1180 = vsel %vm1168, %v698, %v766
        %v1181 = vsel %vm1168, %v703, %v770
        %v1182 = vsel %vm1168, %v708, %v774
        %v1183 = vsel %vm1168, %v713, %v778
        %v1184 = vsel %vm1168, %v718, %v782
        %vm1185 = vcmask 523264
        %v1186 = vsel %vm1185, %v1169, %v786
        %v1187 = vsel %vm1185, %v1170, %v790
        %v1188 = vsel %vm1185, %v1171, %v794
        %v1189 = vsel %vm1185, %v1172, %v798
        %v1190 = vsel %vm1185, %v1173, %v802
        %v1191 = vsel %vm1185, %v1174, %v806
        %v1192 = vsel %vm1185, %v1175, %v810
        %v1193 = vsel %vm1185, %v1176, %v814
        %v1194 = vsel %vm1185, %v1177, %v818
        %v1195 = vsel %vm1185, %v1178, %v822
        %v1196 = vsel %vm1185, %v1179, %v826
        %v1197 = vsel %vm1185, %v1180, %v830
        %v1198 = vsel %vm1185, %v1181, %v834
        %v1199 = vsel %vm1185, %v1182, %v838
        %v1200 = vsel %vm1185, %v1183, %v842
        %v1201 = vsel %vm1185, %v1184, %v846
        %vm1202 = vcmask 785408
        %v1203 = vsel %vm1202, %v1186, %v850
        %v1204 = vsel %vm1202, %v1187, %v854
        %v1205 = vsel %vm1202, %v1188, %v858
        %v1206 = vsel %vm1202, %v1189, %v862
        %v1207 = vsel %vm1202, %v1190, %v866
        %v1208 = vsel %vm1202, %v1191, %v870
        %v1209 = vsel %vm1202, %v1192, %v874
        %v1210 = vsel %vm1202, %v1193, %v878
        %v1211 = vsel %vm1202, %v1194, %v882
        %v1212 = vsel %vm1202, %v1195, %v886
        %v1213 = vsel %vm1202, %v1196, %v890
        %v1214 = vsel %vm1202, %v1197, %v894
        %v1215 = vsel %vm1202, %v1198, %v898
        %v1216 = vsel %vm1202, %v1199, %v902
        %v1217 = vsel %vm1202, %v1200, %v906
        %v1218 = vsel %vm1202, %v1201, %v910
        %v1219 = vsel %vm1168, %v914, %v978
        %v1220 = vsel %vm1168, %v918, %v982
        %v1221 = vsel %vm1168, %v922, %v986
        %v1222 = vsel %vm1168, %v926, %v990
        %v1223 = vsel %vm1168, %v930, %v994
        %v1224 = vsel %vm1168, %v934, %v998
        %v1225 = vsel %vm1168, %v938, %v1002
        %v1226 = vsel %vm1168, %v942, %v1006
        %v1227 = vsel %vm1168, %v946, %v1010
        %v1228 = vsel %vm1168, %v950, %v1014
        %v1229 = vsel %vm1168, %v954, %v1018
        %v1230 = vsel %vm1168, %v958, %v1022
        %v1231 = vsel %vm1168, %v962, %v1026
        %v1232 = vsel %vm1168, %v966, %v1030
        %v1233 = vsel %vm1168, %v970, %v1034
        %v1234 = vsel %vm1168, %v974, %v1038
        %v1235 = vsel %vm1185, %v1219, %v1042
        %v1236 = vsel %vm1185, %v1220, %v1046
        %v1237 = vsel %vm1185, %v1221, %v1050
        %v1238 = vsel %vm1185, %v1222, %v1054
        %v1239 = vsel %vm1185, %v1223, %v1058
        %v1240 = vsel %vm1185, %v1224, %v1062
        %v1241 = vsel %vm1185, %v1225, %v1066
        %v1242 = vsel %vm1185, %v1226, %v1070
        %v1243 = vsel %vm1185, %v1227, %v1074
        %v1244 = vsel %vm1185, %v1228, %v1078
        %v1245 = vsel %vm1185, %v1229, %v1082
        %v1246 = vsel %vm1185, %v1230, %v1086
        %v1247 = vsel %vm1185, %v1231, %v1090
        %v1248 = vsel %vm1185, %v1232, %v1094
        %v1249 = vsel %vm1185, %v1233, %v1098
        %v1250 = vsel %vm1185, %v1234, %v1102
        %v1251 = vsel %vm1202, %v1235, %v1106
        %v1252 = vsel %vm1202, %v1236, %v1110
        %v1253 = vsel %vm1202, %v1237, %v1114
        %v1254 = vsel %vm1202, %v1238, %v1118
        %v1255 = vsel %vm1202, %v1239, %v1122
        %v1256 = vsel %vm1202, %v1240, %v1126
        %v1257 = vsel %vm1202, %v1241, %v1130
        %v1258 = vsel %vm1202, %v1242, %v1134
        %v1259 = vsel %vm1202, %v1243, %v1138
        %v1260 = vsel %vm1202, %v1244, %v1142
        %v1261 = vsel %vm1202, %v1245, %v1146
        %v1262 = vsel %vm1202, %v1246, %v1150
        %v1263 = vsel %vm1202, %v1247, %v1154
        %v1264 = vsel %vm1202, %v1248, %v1158
        %v1265 = vsel %vm1202, %v1249, %v1162
        %v1266 = vsel %vm1202, %v1250, %v1166
        %v1267 = vmul.f32 %v1203, %v590
        %v1268 = vmul.f32 %v1251, %v591
        %v1269 = vmul.f32 %v1204, %v592
        %v1270 = vmul.f32 %v1252, %v593
        %v1271 = vmul.f32 %v1205, %v594
        %v1272 = vmul.f32 %v1253, %v595
        %v1273 = vmul.f32 %v1206, %v596
        %v1274 = vmul.f32 %v1254, %v597
        %v1275 = vmul.f32 %v1207, %v598
        %v1276 = vmul.f32 %v1255, %v599
        %v1277 = vmul.f32 %v1208, %v600
        %v1278 = vmul.f32 %v1256, %v601
        %v1279 = vmul.f32 %v1209, %v602
        %v1280 = vmul.f32 %v1257, %v603
        %v1281 = vmul.f32 %v1210, %v604
        %v1282 = vmul.f32 %v1258, %v605
        %v1283 = vmul.f32 %v1211, %v606
        %v1284 = vmul.f32 %v1259, %v607
        %v1285 = vmul.f32 %v1212, %v608
        %v1286 = vmul.f32 %v1260, %v609
        %v1287 = vmul.f32 %v1213, %v610
        %v1288 = vmul.f32 %v1261, %v611
        %v1289 = vmul.f32 %v1214, %v612
        %v1290 = vmul.f32 %v1262, %v613
        %v1291 = vmul.f32 %v1215, %v614
        %v1292 = vmul.f32 %v1263, %v615
        %v1293 = vmul.f32 %v1216, %v616
        %v1294 = vmul.f32 %v1264, %v617
        %v1295 = vmul.f32 %v1217, %v618
        %v1296 = vmul.f32 %v1265, %v619
        %v1297 = vmul.f32 %v1218, %v620
        %v1298 = vmul.f32 %v1266, %v621
        %v1299 = vrot.slane %v1267, 4
        %v1300 = vadd.f32 %v1267, %v1299
        %v1301 = vrot.slane %v1300, 2
        %v1302 = vadd.f32 %v1300, %v1301
        %v1303 = vrot.slane %v1302, 1
        %v1304 = vadd.f32 %v1302, %v1303
        %v1305 = vrot.slane %v1268, 4
        %v1306 = vadd.f32 %v1268, %v1305
        %v1307 = vrot.slane %v1306, 2
        %v1308 = vadd.f32 %v1306, %v1307
        %v1309 = vrot.slane %v1308, 1
        %v1310 = vadd.f32 %v1308, %v1309
        %v1311 = vrot.slane %v1269, 4
        %v1312 = vadd.f32 %v1269, %v1311
        %v1313 = vrot.slane %v1312, 2
        %v1314 = vadd.f32 %v1312, %v1313
        %v1315 = vrot.slane %v1314, 1
        %v1316 = vadd.f32 %v1314, %v1315
        %v1317 = vrot.slane %v1270, 4
        %v1318 = vadd.f32 %v1270, %v1317
        %v1319 = vrot.slane %v1318, 2
        %v1320 = vadd.f32 %v1318, %v1319
        %v1321 = vrot.slane %v1320, 1
        %v1322 = vadd.f32 %v1320, %v1321
        %v1323 = vrot.slane %v1271, 4
        %v1324 = vadd.f32 %v1271, %v1323
        %v1325 = vrot.slane %v1324, 2
        %v1326 = vadd.f32 %v1324, %v1325
        %v1327 = vrot.slane %v1326, 1
        %v1328 = vadd.f32 %v1326, %v1327
        %v1329 = vrot.slane %v1272, 4
        %v1330 = vadd.f32 %v1272, %v1329
        %v1331 = vrot.slane %v1330, 2
        %v1332 = vadd.f32 %v1330, %v1331
        %v1333 = vrot.slane %v1332, 1
        %v1334 = vadd.f32 %v1332, %v1333
        %v1335 = vrot.slane %v1273, 4
        %v1336 = vadd.f32 %v1273, %v1335
        %v1337 = vrot.slane %v1336, 2
        %v1338 = vadd.f32 %v1336, %v1337
        %v1339 = vrot.slane %v1338, 1
        %v1340 = vadd.f32 %v1338, %v1339
        %v1341 = vrot.slane %v1274, 4
        %v1342 = vadd.f32 %v1274, %v1341
        %v1343 = vrot.slane %v1342, 2
        %v1344 = vadd.f32 %v1342, %v1343
        %v1345 = vrot.slane %v1344, 1
        %v1346 = vadd.f32 %v1344, %v1345
        %v1347 = vrot.slane %v1275, 4
        %v1348 = vadd.f32 %v1275, %v1347
        %v1349 = vrot.slane %v1348, 2
        %v1350 = vadd.f32 %v1348, %v1349
        %v1351 = vrot.slane %v1350, 1
        %v1352 = vadd.f32 %v1350, %v1351
        %v1353 = vrot.slane %v1276, 4
        %v1354 = vadd.f32 %v1276, %v1353
        %v1355 = vrot.slane %v1354, 2
        %v1356 = vadd.f32 %v1354, %v1355
        %v1357 = vrot.slane %v1356, 1
        %v1358 = vadd.f32 %v1356, %v1357
        %v1359 = vrot.slane %v1277, 4
        %v1360 = vadd.f32 %v1277, %v1359
        %v1361 = vrot.slane %v1360, 2
        %v1362 = vadd.f32 %v1360, %v1361
        %v1363 = vrot.slane %v1362, 1
        %v1364 = vadd.f32 %v1362, %v1363
        %v1365 = vrot.slane %v1278, 4
        %v1366 = vadd.f32 %v1278, %v1365
        %v1367 = vrot.slane %v1366, 2
        %v1368 = vadd.f32 %v1366, %v1367
        %v1369 = vrot.slane %v1368, 1
        %v1370 = vadd.f32 %v1368, %v1369
        %v1371 = vrot.slane %v1279, 4
        %v1372 = vadd.f32 %v1279, %v1371
        %v1373 = vrot.slane %v1372, 2
        %v1374 = vadd.f32 %v1372, %v1373
        %v1375 = vrot.slane %v1374, 1
        %v1376 = vadd.f32 %v1374, %v1375
        %v1377 = vrot.slane %v1280, 4
        %v1378 = vadd.f32 %v1280, %v1377
        %v1379 = vrot.slane %v1378, 2
        %v1380 = vadd.f32 %v1378, %v1379
        %v1381 = vrot.slane %v1380, 1
        %v1382 = vadd.f32 %v1380, %v1381
        %v1383 = vrot.slane %v1281, 4
        %v1384 = vadd.f32 %v1281, %v1383
        %v1385 = vrot.slane %v1384, 2
        %v1386 = vadd.f32 %v1384, %v1385
        %v1387 = vrot.slane %v1386, 1
        %v1388 = vadd.f32 %v1386, %v1387
        %v1389 = vrot.slane %v1282, 4
        %v1390 = vadd.f32 %v1282, %v1389
        %v1391 = vrot.slane %v1390, 2
        %v1392 = vadd.f32 %v1390, %v1391
        %v1393 = vrot.slane %v1392, 1
        %v1394 = vadd.f32 %v1392, %v1393
        %v1395 = vrot.slane %v1283, 4
        %v1396 = vadd.f32 %v1283, %v1395
        %v1397 = vrot.slane %v1396, 2
        %v1398 = vadd.f32 %v1396, %v1397
        %v1399 = vrot.slane %v1398, 1
        %v1400 = vadd.f32 %v1398, %v1399
        %v1401 = vrot.slane %v1284, 4
        %v1402 = vadd.f32 %v1284, %v1401
        %v1403 = vrot.slane %v1402, 2
        %v1404 = vadd.f32 %v1402, %v1403
        %v1405 = vrot.slane %v1404, 1
        %v1406 = vadd.f32 %v1404, %v1405
        %v1407 = vrot.slane %v1285, 4
        %v1408 = vadd.f32 %v1285, %v1407
        %v1409 = vrot.slane %v1408, 2
        %v1410 = vadd.f32 %v1408, %v1409
        %v1411 = vrot.slane %v1410, 1
        %v1412 = vadd.f32 %v1410, %v1411
        %v1413 = vrot.slane %v1286, 4
        %v1414 = vadd.f32 %v1286, %v1413
        %v1415 = vrot.slane %v1414, 2
        %v1416 = vadd.f32 %v1414, %v1415
        %v1417 = vrot.slane %v1416, 1
        %v1418 = vadd.f32 %v1416, %v1417
        %v1419 = vrot.slane %v1287, 4
        %v1420 = vadd.f32 %v1287, %v1419
        %v1421 = vrot.slane %v1420, 2
        %v1422 = vadd.f32 %v1420, %v1421
        %v1423 = vrot.slane %v1422, 1
        %v1424 = vadd.f32 %v1422, %v1423
        %v1425 = vrot.slane %v1288, 4
        %v1426 = vadd.f32 %v1288, %v1425
        %v1427 = vrot.slane %v1426, 2
        %v1428 = vadd.f32 %v1426, %v1427
        %v1429 = vrot.slane %v1428, 1
        %v1430 = vadd.f32 %v1428, %v1429
        %v1431 = vrot.slane %v1289, 4
        %v1432 = vadd.f32 %v1289, %v1431
        %v1433 = vrot.slane %v1432, 2
        %v1434 = vadd.f32 %v1432, %v1433
        %v1435 = vrot.slane %v1434, 1
        %v1436 = vadd.f32 %v1434, %v1435
        %v1437 = vrot.slane %v1290, 4
        %v1438 = vadd.f32 %v1290, %v1437
        %v1439 = vrot.slane %v1438, 2
        %v1440 = vadd.f32 %v1438, %v1439
        %v1441 = vrot.slane %v1440, 1
        %v1442 = vadd.f32 %v1440, %v1441
        %v1443 = vrot.slane %v1291, 4
        %v1444 = vadd.f32 %v1291, %v1443
        %v1445 = vrot.slane %v1444, 2
        %v1446 = vadd.f32 %v1444, %v1445
        %v1447 = vrot.slane %v1446, 1
        %v1448 = vadd.f32 %v1446, %v1447
        %v1449 = vrot.slane %v1292, 4
        %v1450 = vadd.f32 %v1292, %v1449
        %v1451 = vrot.slane %v1450, 2
        %v1452 = vadd.f32 %v1450, %v1451
        %v1453 = vrot.slane %v1452, 1
        %v1454 = vadd.f32 %v1452, %v1453
        %v1455 = vrot.slane %v1293, 4
        %v1456 = vadd.f32 %v1293, %v1455
        %v1457 = vrot.slane %v1456, 2
        %v1458 = vadd.f32 %v1456, %v1457
        %v1459 = vrot.slane %v1458, 1
        %v1460 = vadd.f32 %v1458, %v1459
        %v1461 = vrot.slane %v1294, 4
        %v1462 = vadd.f32 %v1294, %v1461
        %v1463 = vrot.slane %v1462, 2
        %v1464 = vadd.f32 %v1462, %v1463
        %v1465 = vrot.slane %v1464, 1
        %v1466 = vadd.f32 %v1464, %v1465
        %v1467 = vrot.slane %v1295, 4
        %v1468 = vadd.f32 %v1295, %v1467
        %v1469 = vrot.slane %v1468, 2
        %v1470 = vadd.f32 %v1468, %v1469
        %v1471 = vrot.slane %v1470, 1
        %v1472 = vadd.f32 %v1470, %v1471
        %v1473 = vrot.slane %v1296, 4
        %v1474 = vadd.f32 %v1296, %v1473
        %v1475 = vrot.slane %v1474, 2
        %v1476 = vadd.f32 %v1474, %v1475
        %v1477 = vrot.slane %v1476, 1
        %v1478 = vadd.f32 %v1476, %v1477
        %v1479 = vrot.slane %v1297, 4
        %v1480 = vadd.f32 %v1297, %v1479
        %v1481 = vrot.slane %v1480, 2
        %v1482 = vadd.f32 %v1480, %v1481
        %v1483 = vrot.slane %v1482, 1
        %v1484 = vadd.f32 %v1482, %v1483
        %v1485 = vrot.slane %v1298, 4
        %v1486 = vadd.f32 %v1298, %v1485
        %v1487 = vrot.slane %v1486, 2
        %v1488 = vadd.f32 %v1486, %v1487
        %v1489 = vrot.slane %v1488, 1
        %v1490 = vadd.f32 %v1488, %v1489
        %1507 = vrot.lane.b32.xlu0 %v574, 32
        %v1508 = vpop.permute.xlu0 %1507
        %1509 = vrot.lane.b32.xlu0 %v575, 32
        %v1510 = vpop.permute.xlu0 %1509
        %1511 = vrot.lane.b32.xlu0 %v576, 32
        %v1512 = vpop.permute.xlu0 %1511
        %1513 = vrot.lane.b32.xlu0 %v577, 32
        %v1514 = vpop.permute.xlu0 %1513
        %1515 = vrot.lane.b32.xlu0 %v578, 32
        %v1516 = vpop.permute.xlu0 %1515
        %1517 = vrot.lane.b32.xlu0 %v579, 32
        %v1518 = vpop.permute.xlu0 %1517
        %1519 = vrot.lane.b32.xlu0 %v580, 32
        %v1520 = vpop.permute.xlu0 %1519
        %1521 = vrot.lane.b32.xlu0 %v581, 32
        %v1522 = vpop.permute.xlu0 %1521
        %1523 = vrot.lane.b32.xlu0 %v582, 32
        %v1524 = vpop.permute.xlu0 %1523
        %1525 = vrot.lane.b32.xlu0 %v583, 32
        %v1526 = vpop.permute.xlu0 %1525
        %1527 = vrot.lane.b32.xlu0 %v584, 32
        %v1528 = vpop.permute.xlu0 %1527
        %1529 = vrot.lane.b32.xlu0 %v585, 32
        %v1530 = vpop.permute.xlu0 %1529
        %1531 = vrot.lane.b32.xlu0 %v586, 32
        %v1532 = vpop.permute.xlu0 %1531
        %1533 = vrot.lane.b32.xlu0 %v587, 32
        %v1534 = vpop.permute.xlu0 %1533
        %1535 = vrot.lane.b32.xlu0 %v588, 32
        %v1536 = vpop.permute.xlu0 %1535
        %1537 = vrot.lane.b32.xlu0 %v589, 32
        %v1538 = vpop.permute.xlu0 %1537
        %1555 = vrot.lane.b32.xlu0 %v574, 64
        %v1556 = vpop.permute.xlu0 %1555
        %1557 = vrot.lane.b32.xlu0 %v575, 64
        %v1558 = vpop.permute.xlu0 %1557
        %1559 = vrot.lane.b32.xlu0 %v576, 64
        %v1560 = vpop.permute.xlu0 %1559
        %1561 = vrot.lane.b32.xlu0 %v577, 64
        %v1562 = vpop.permute.xlu0 %1561
        %1563 = vrot.lane.b32.xlu0 %v578, 64
        %v1564 = vpop.permute.xlu0 %1563
        %1565 = vrot.lane.b32.xlu0 %v579, 64
        %v1566 = vpop.permute.xlu0 %1565
        %1567 = vrot.lane.b32.xlu0 %v580, 64
        %v1568 = vpop.permute.xlu0 %1567
        %1569 = vrot.lane.b32.xlu0 %v581, 64
        %v1570 = vpop.permute.xlu0 %1569
        %1571 = vrot.lane.b32.xlu0 %v582, 64
        %v1572 = vpop.permute.xlu0 %1571
        %1573 = vrot.lane.b32.xlu0 %v583, 64
        %v1574 = vpop.permute.xlu0 %1573
        %1575 = vrot.lane.b32.xlu0 %v584, 64
        %v1576 = vpop.permute.xlu0 %1575
        %1577 = vrot.lane.b32.xlu0 %v585, 64
        %v1578 = vpop.permute.xlu0 %1577
        %1579 = vrot.lane.b32.xlu0 %v586, 64
        %v1580 = vpop.permute.xlu0 %1579
        %1581 = vrot.lane.b32.xlu0 %v587, 64
        %v1582 = vpop.permute.xlu0 %1581
        %1583 = vrot.lane.b32.xlu0 %v588, 64
        %v1584 = vpop.permute.xlu0 %1583
        %1585 = vrot.lane.b32.xlu0 %v589, 64
        %v1586 = vpop.permute.xlu0 %1585
        %1603 = vrot.lane.b32.xlu0 %v574, 96
        %v1604 = vpop.permute.xlu0 %1603
        %1605 = vrot.lane.b32.xlu0 %v575, 96
        %v1606 = vpop.permute.xlu0 %1605
        %1607 = vrot.lane.b32.xlu0 %v576, 96
        %v1608 = vpop.permute.xlu0 %1607
        %1609 = vrot.lane.b32.xlu0 %v577, 96
        %v1610 = vpop.permute.xlu0 %1609
        %1611 = vrot.lane.b32.xlu0 %v578, 96
        %v1612 = vpop.permute.xlu0 %1611
        %1613 = vrot.lane.b32.xlu0 %v579, 96
        %v1614 = vpop.permute.xlu0 %1613
        %1615 = vrot.lane.b32.xlu0 %v580, 96
        %v1616 = vpop.permute.xlu0 %1615
        %1617 = vrot.lane.b32.xlu0 %v581, 96
        %v1618 = vpop.permute.xlu0 %1617
        %1619 = vrot.lane.b32.xlu0 %v582, 96
        %v1620 = vpop.permute.xlu0 %1619
        %1621 = vrot.lane.b32.xlu0 %v583, 96
        %v1622 = vpop.permute.xlu0 %1621
        %1623 = vrot.lane.b32.xlu0 %v584, 96
        %v1624 = vpop.permute.xlu0 %1623
        %1625 = vrot.lane.b32.xlu0 %v585, 96
        %v1626 = vpop.permute.xlu0 %1625
        %1627 = vrot.lane.b32.xlu0 %v586, 96
        %v1628 = vpop.permute.xlu0 %1627
        %1629 = vrot.lane.b32.xlu0 %v587, 96
        %v1630 = vpop.permute.xlu0 %1629
        %1631 = vrot.lane.b32.xlu0 %v588, 96
        %v1632 = vpop.permute.xlu0 %1631
        %1633 = vrot.lane.b32.xlu0 %v589, 96
        %v1634 = vpop.permute.xlu0 %1633
        %v1651 = vsel %vm1168, %v574, %v1508
        %v1652 = vsel %vm1168, %v575, %v1510
        %v1653 = vsel %vm1168, %v576, %v1512
        %v1654 = vsel %vm1168, %v577, %v1514
        %v1655 = vsel %vm1168, %v578, %v1516
        %v1656 = vsel %vm1168, %v579, %v1518
        %v1657 = vsel %vm1168, %v580, %v1520
        %v1658 = vsel %vm1168, %v581, %v1522
        %v1659 = vsel %vm1168, %v582, %v1524
        %v1660 = vsel %vm1168, %v583, %v1526
        %v1661 = vsel %vm1168, %v584, %v1528
        %v1662 = vsel %vm1168, %v585, %v1530
        %v1663 = vsel %vm1168, %v586, %v1532
        %v1664 = vsel %vm1168, %v587, %v1534
        %v1665 = vsel %vm1168, %v588, %v1536
        %v1666 = vsel %vm1168, %v589, %v1538
        %v1667 = vsel %vm1185, %v1651, %v1556
        %v1668 = vsel %vm1185, %v1652, %v1558
        %v1669 = vsel %vm1185, %v1653, %v1560
        %v1670 = vsel %vm1185, %v1654, %v1562
        %v1671 = vsel %vm1185, %v1655, %v1564
        %v1672 = vsel %vm1185, %v1656, %v1566
        %v1673 = vsel %vm1185, %v1657, %v1568
        %v1674 = vsel %vm1185, %v1658, %v1570
        %v1675 = vsel %vm1185, %v1659, %v1572
        %v1676 = vsel %vm1185, %v1660, %v1574
        %v1677 = vsel %vm1185, %v1661, %v1576
        %v1678 = vsel %vm1185, %v1662, %v1578
        %v1679 = vsel %vm1185, %v1663, %v1580
        %v1680 = vsel %vm1185, %v1664, %v1582
        %v1681 = vsel %vm1185, %v1665, %v1584
        %v1682 = vsel %vm1185, %v1666, %v1586
        %v1683 = vsel %vm1202, %v1667, %v1604
        %v1684 = vsel %vm1202, %v1668, %v1606
        %v1685 = vsel %vm1202, %v1669, %v1608
        %v1686 = vsel %vm1202, %v1670, %v1610
        %v1687 = vsel %vm1202, %v1671, %v1612
        %v1688 = vsel %vm1202, %v1672, %v1614
        %v1689 = vsel %vm1202, %v1673, %v1616
        %v1690 = vsel %vm1202, %v1674, %v1618
        %v1691 = vsel %vm1202, %v1675, %v1620
        %v1692 = vsel %vm1202, %v1676, %v1622
        %v1693 = vsel %vm1202, %v1677, %v1624
        %v1694 = vsel %vm1202, %v1678, %v1626
        %v1695 = vsel %vm1202, %v1679, %v1628
        %v1696 = vsel %vm1202, %v1680, %v1630
        %v1697 = vsel %vm1202, %v1681, %v1632
        %v1698 = vsel %vm1202, %v1682, %v1634
        %v1699 = vmul.f32 %v1203, %v1683
        %v1700 = vmul.f32 %v1251, %v1683
        %v1701 = vmul.f32 %v1204, %v1684
        %v1702 = vmul.f32 %v1252, %v1684
        %v1703 = vmul.f32 %v1205, %v1685
        %v1704 = vmul.f32 %v1253, %v1685
        %v1705 = vmul.f32 %v1206, %v1686
        %v1706 = vmul.f32 %v1254, %v1686
        %v1707 = vmul.f32 %v1207, %v1687
        %v1708 = vmul.f32 %v1255, %v1687
        %v1709 = vmul.f32 %v1208, %v1688
        %v1710 = vmul.f32 %v1256, %v1688
        %v1711 = vmul.f32 %v1209, %v1689
        %v1712 = vmul.f32 %v1257, %v1689
        %v1713 = vmul.f32 %v1210, %v1690
        %v1714 = vmul.f32 %v1258, %v1690
        %v1715 = vmul.f32 %v1211, %v1691
        %v1716 = vmul.f32 %v1259, %v1691
        %v1717 = vmul.f32 %v1212, %v1692
        %v1718 = vmul.f32 %v1260, %v1692
        %v1719 = vmul.f32 %v1213, %v1693
        %v1720 = vmul.f32 %v1261, %v1693
        %v1721 = vmul.f32 %v1214, %v1694
        %v1722 = vmul.f32 %v1262, %v1694
        %v1723 = vmul.f32 %v1215, %v1695
        %v1724 = vmul.f32 %v1263, %v1695
        %v1725 = vmul.f32 %v1216, %v1696
        %v1726 = vmul.f32 %v1264, %v1696
        %v1727 = vmul.f32 %v1217, %v1697
        %v1728 = vmul.f32 %v1265, %v1697
        %v1729 = vmul.f32 %v1218, %v1698
        %v1730 = vmul.f32 %v1266, %v1698
        %v1731 = vrot.slane %v1699, 4
        %v1732 = vadd.f32 %v1699, %v1731
        %v1733 = vrot.slane %v1732, 2
        %v1734 = vadd.f32 %v1732, %v1733
        %v1735 = vrot.slane %v1734, 1
        %v1736 = vadd.f32 %v1734, %v1735
        %v1737 = vrot.slane %v1700, 4
        %v1738 = vadd.f32 %v1700, %v1737
        %v1739 = vrot.slane %v1738, 2
        %v1740 = vadd.f32 %v1738, %v1739
        %v1741 = vrot.slane %v1740, 1
        %v1742 = vadd.f32 %v1740, %v1741
        %v1743 = vrot.slane %v1701, 4
        %v1744 = vadd.f32 %v1701, %v1743
        %v1745 = vrot.slane %v1744, 2
        %v1746 = vadd.f32 %v1744, %v1745
        %v1747 = vrot.slane %v1746, 1
        %v1748 = vadd.f32 %v1746, %v1747
        %v1749 = vrot.slane %v1702, 4
        %v1750 = vadd.f32 %v1702, %v1749
        %v1751 = vrot.slane %v1750, 2
        %v1752 = vadd.f32 %v1750, %v1751
        %v1753 = vrot.slane %v1752, 1
        %v1754 = vadd.f32 %v1752, %v1753
        %v1755 = vrot.slane %v1703, 4
        %v1756 = vadd.f32 %v1703, %v1755
        %v1757 = vrot.slane %v1756, 2
        %v1758 = vadd.f32 %v1756, %v1757
        %v1759 = vrot.slane %v1758, 1
        %v1760 = vadd.f32 %v1758, %v1759
        %v1761 = vrot.slane %v1704, 4
        %v1762 = vadd.f32 %v1704, %v1761
        %v1763 = vrot.slane %v1762, 2
        %v1764 = vadd.f32 %v1762, %v1763
        %v1765 = vrot.slane %v1764, 1
        %v1766 = vadd.f32 %v1764, %v1765
        %v1767 = vrot.slane %v1705, 4
        %v1768 = vadd.f32 %v1705, %v1767
        %v1769 = vrot.slane %v1768, 2
        %v1770 = vadd.f32 %v1768, %v1769
        %v1771 = vrot.slane %v1770, 1
        %v1772 = vadd.f32 %v1770, %v1771
        %v1773 = vrot.slane %v1706, 4
        %v1774 = vadd.f32 %v1706, %v1773
        %v1775 = vrot.slane %v1774, 2
        %v1776 = vadd.f32 %v1774, %v1775
        %v1777 = vrot.slane %v1776, 1
        %v1778 = vadd.f32 %v1776, %v1777
        %v1779 = vrot.slane %v1707, 4
        %v1780 = vadd.f32 %v1707, %v1779
        %v1781 = vrot.slane %v1780, 2
        %v1782 = vadd.f32 %v1780, %v1781
        %v1783 = vrot.slane %v1782, 1
        %v1784 = vadd.f32 %v1782, %v1783
        %v1785 = vrot.slane %v1708, 4
        %v1786 = vadd.f32 %v1708, %v1785
        %v1787 = vrot.slane %v1786, 2
        %v1788 = vadd.f32 %v1786, %v1787
        %v1789 = vrot.slane %v1788, 1
        %v1790 = vadd.f32 %v1788, %v1789
        %v1791 = vrot.slane %v1709, 4
        %v1792 = vadd.f32 %v1709, %v1791
        %v1793 = vrot.slane %v1792, 2
        %v1794 = vadd.f32 %v1792, %v1793
        %v1795 = vrot.slane %v1794, 1
        %v1796 = vadd.f32 %v1794, %v1795
        %v1797 = vrot.slane %v1710, 4
        %v1798 = vadd.f32 %v1710, %v1797
        %v1799 = vrot.slane %v1798, 2
        %v1800 = vadd.f32 %v1798, %v1799
        %v1801 = vrot.slane %v1800, 1
        %v1802 = vadd.f32 %v1800, %v1801
        %v1803 = vrot.slane %v1711, 4
        %v1804 = vadd.f32 %v1711, %v1803
        %v1805 = vrot.slane %v1804, 2
        %v1806 = vadd.f32 %v1804, %v1805
        %v1807 = vrot.slane %v1806, 1
        %v1808 = vadd.f32 %v1806, %v1807
        %v1809 = vrot.slane %v1712, 4
        %v1810 = vadd.f32 %v1712, %v1809
        %v1811 = vrot.slane %v1810, 2
        %v1812 = vadd.f32 %v1810, %v1811
        %v1813 = vrot.slane %v1812, 1
        %v1814 = vadd.f32 %v1812, %v1813
        %v1815 = vrot.slane %v1713, 4
        %v1816 = vadd.f32 %v1713, %v1815
        %v1817 = vrot.slane %v1816, 2
        %v1818 = vadd.f32 %v1816, %v1817
        %v1819 = vrot.slane %v1818, 1
        %v1820 = vadd.f32 %v1818, %v1819
        %v1821 = vrot.slane %v1714, 4
        %v1822 = vadd.f32 %v1714, %v1821
        %v1823 = vrot.slane %v1822, 2
        %v1824 = vadd.f32 %v1822, %v1823
        %v1825 = vrot.slane %v1824, 1
        %v1826 = vadd.f32 %v1824, %v1825
        %v1827 = vrot.slane %v1715, 4
        %v1828 = vadd.f32 %v1715, %v1827
        %v1829 = vrot.slane %v1828, 2
        %v1830 = vadd.f32 %v1828, %v1829
        %v1831 = vrot.slane %v1830, 1
        %v1832 = vadd.f32 %v1830, %v1831
        %v1833 = vrot.slane %v1716, 4
        %v1834 = vadd.f32 %v1716, %v1833
        %v1835 = vrot.slane %v1834, 2
        %v1836 = vadd.f32 %v1834, %v1835
        %v1837 = vrot.slane %v1836, 1
        %v1838 = vadd.f32 %v1836, %v1837
        %v1839 = vrot.slane %v1717, 4
        %v1840 = vadd.f32 %v1717, %v1839
        %v1841 = vrot.slane %v1840, 2
        %v1842 = vadd.f32 %v1840, %v1841
        %v1843 = vrot.slane %v1842, 1
        %v1844 = vadd.f32 %v1842, %v1843
        %v1845 = vrot.slane %v1718, 4
        %v1846 = vadd.f32 %v1718, %v1845
        %v1847 = vrot.slane %v1846, 2
        %v1848 = vadd.f32 %v1846, %v1847
        %v1849 = vrot.slane %v1848, 1
        %v1850 = vadd.f32 %v1848, %v1849
        %v1851 = vrot.slane %v1719, 4
        %v1852 = vadd.f32 %v1719, %v1851
        %v1853 = vrot.slane %v1852, 2
        %v1854 = vadd.f32 %v1852, %v1853
        %v1855 = vrot.slane %v1854, 1
        %v1856 = vadd.f32 %v1854, %v1855
        %v1857 = vrot.slane %v1720, 4
        %v1858 = vadd.f32 %v1720, %v1857
        %v1859 = vrot.slane %v1858, 2
        %v1860 = vadd.f32 %v1858, %v1859
        %v1861 = vrot.slane %v1860, 1
        %v1862 = vadd.f32 %v1860, %v1861
        %v1863 = vrot.slane %v1721, 4
        %v1864 = vadd.f32 %v1721, %v1863
        %v1865 = vrot.slane %v1864, 2
        %v1866 = vadd.f32 %v1864, %v1865
        %v1867 = vrot.slane %v1866, 1
        %v1868 = vadd.f32 %v1866, %v1867
        %v1869 = vrot.slane %v1722, 4
        %v1870 = vadd.f32 %v1722, %v1869
        %v1871 = vrot.slane %v1870, 2
        %v1872 = vadd.f32 %v1870, %v1871
        %v1873 = vrot.slane %v1872, 1
        %v1874 = vadd.f32 %v1872, %v1873
        %v1875 = vrot.slane %v1723, 4
        %v1876 = vadd.f32 %v1723, %v1875
        %v1877 = vrot.slane %v1876, 2
        %v1878 = vadd.f32 %v1876, %v1877
        %v1879 = vrot.slane %v1878, 1
        %v1880 = vadd.f32 %v1878, %v1879
        %v1881 = vrot.slane %v1724, 4
        %v1882 = vadd.f32 %v1724, %v1881
        %v1883 = vrot.slane %v1882, 2
        %v1884 = vadd.f32 %v1882, %v1883
        %v1885 = vrot.slane %v1884, 1
        %v1886 = vadd.f32 %v1884, %v1885
        %v1887 = vrot.slane %v1725, 4
        %v1888 = vadd.f32 %v1725, %v1887
        %v1889 = vrot.slane %v1888, 2
        %v1890 = vadd.f32 %v1888, %v1889
        %v1891 = vrot.slane %v1890, 1
        %v1892 = vadd.f32 %v1890, %v1891
        %v1893 = vrot.slane %v1726, 4
        %v1894 = vadd.f32 %v1726, %v1893
        %v1895 = vrot.slane %v1894, 2
        %v1896 = vadd.f32 %v1894, %v1895
        %v1897 = vrot.slane %v1896, 1
        %v1898 = vadd.f32 %v1896, %v1897
        %v1899 = vrot.slane %v1727, 4
        %v1900 = vadd.f32 %v1727, %v1899
        %v1901 = vrot.slane %v1900, 2
        %v1902 = vadd.f32 %v1900, %v1901
        %v1903 = vrot.slane %v1902, 1
        %v1904 = vadd.f32 %v1902, %v1903
        %v1905 = vrot.slane %v1728, 4
        %v1906 = vadd.f32 %v1728, %v1905
        %v1907 = vrot.slane %v1906, 2
        %v1908 = vadd.f32 %v1906, %v1907
        %v1909 = vrot.slane %v1908, 1
        %v1910 = vadd.f32 %v1908, %v1909
        %v1911 = vrot.slane %v1729, 4
        %v1912 = vadd.f32 %v1729, %v1911
        %v1913 = vrot.slane %v1912, 2
        %v1914 = vadd.f32 %v1912, %v1913
        %v1915 = vrot.slane %v1914, 1
        %v1916 = vadd.f32 %v1914, %v1915
        %v1917 = vrot.slane %v1730, 4
        %v1918 = vadd.f32 %v1730, %v1917
        %v1919 = vrot.slane %v1918, 2
        %v1920 = vadd.f32 %v1918, %v1919
        %v1921 = vrot.slane %v1920, 1
        %v1922 = vadd.f32 %v1920, %v1921
        %vm1923 = vcmask 64512
        %v1924 = vsel %vm1923, %v622, 0.0
        %v1925 = vrot.slane %v1924, 4
        %v1926 = vadd.f32 %v1924, %v1925
        %v1927 = vrot.slane %v1926, 2
        %v1928 = vadd.f32 %v1926, %v1927
        %v1929 = vrot.slane %v1928, 1
        %v1930 = vadd.f32 %v1928, %v1929
        %v1931 = vsel %vm1923, %v623, 0.0
        %v1932 = vrot.slane %v1931, 4
        %v1933 = vadd.f32 %v1931, %v1932
        %v1934 = vrot.slane %v1933, 2
        %v1935 = vadd.f32 %v1933, %v1934
        %v1936 = vrot.slane %v1935, 1
        %v1937 = vadd.f32 %v1935, %v1936
        %v1938 = vsel %vm1923, %v624, 0.0
        %v1939 = vrot.slane %v1938, 4
        %v1940 = vadd.f32 %v1938, %v1939
        %v1941 = vrot.slane %v1940, 2
        %v1942 = vadd.f32 %v1940, %v1941
        %v1943 = vrot.slane %v1942, 1
        %v1944 = vadd.f32 %v1942, %v1943
        %v1945 = vsel %vm1923, %v625, 0.0
        %v1946 = vrot.slane %v1945, 4
        %v1947 = vadd.f32 %v1945, %v1946
        %v1948 = vrot.slane %v1947, 2
        %v1949 = vadd.f32 %v1947, %v1948
        %v1950 = vrot.slane %v1949, 1
        %v1951 = vadd.f32 %v1949, %v1950
        %v1952 = vsel %vm1923, %v626, 0.0
        %v1953 = vrot.slane %v1952, 4
        %v1954 = vadd.f32 %v1952, %v1953
        %v1955 = vrot.slane %v1954, 2
        %v1956 = vadd.f32 %v1954, %v1955
        %v1957 = vrot.slane %v1956, 1
        %v1958 = vadd.f32 %v1956, %v1957
        %v1959 = vsel %vm1923, %v627, 0.0
        %v1960 = vrot.slane %v1959, 4
        %v1961 = vadd.f32 %v1959, %v1960
        %v1962 = vrot.slane %v1961, 2
        %v1963 = vadd.f32 %v1961, %v1962
        %v1964 = vrot.slane %v1963, 1
        %v1965 = vadd.f32 %v1963, %v1964
        %v1966 = vsel %vm1923, %v628, 0.0
        %v1967 = vrot.slane %v1966, 4
        %v1968 = vadd.f32 %v1966, %v1967
        %v1969 = vrot.slane %v1968, 2
        %v1970 = vadd.f32 %v1968, %v1969
        %v1971 = vrot.slane %v1970, 1
        %v1972 = vadd.f32 %v1970, %v1971
        %v1973 = vsel %vm1923, %v629, 0.0
        %v1974 = vrot.slane %v1973, 4
        %v1975 = vadd.f32 %v1973, %v1974
        %v1976 = vrot.slane %v1975, 2
        %v1977 = vadd.f32 %v1975, %v1976
        %v1978 = vrot.slane %v1977, 1
        %v1979 = vadd.f32 %v1977, %v1978
        %v1980 = vsel %vm1923, %v630, 0.0
        %v1981 = vrot.slane %v1980, 4
        %v1982 = vadd.f32 %v1980, %v1981
        %v1983 = vrot.slane %v1982, 2
        %v1984 = vadd.f32 %v1982, %v1983
        %v1985 = vrot.slane %v1984, 1
        %v1986 = vadd.f32 %v1984, %v1985
        %v1987 = vsel %vm1923, %v631, 0.0
        %v1988 = vrot.slane %v1987, 4
        %v1989 = vadd.f32 %v1987, %v1988
        %v1990 = vrot.slane %v1989, 2
        %v1991 = vadd.f32 %v1989, %v1990
        %v1992 = vrot.slane %v1991, 1
        %v1993 = vadd.f32 %v1991, %v1992
        %v1994 = vsel %vm1923, %v632, 0.0
        %v1995 = vrot.slane %v1994, 4
        %v1996 = vadd.f32 %v1994, %v1995
        %v1997 = vrot.slane %v1996, 2
        %v1998 = vadd.f32 %v1996, %v1997
        %v1999 = vrot.slane %v1998, 1
        %v2000 = vadd.f32 %v1998, %v1999
        %v2001 = vsel %vm1923, %v633, 0.0
        %v2002 = vrot.slane %v2001, 4
        %v2003 = vadd.f32 %v2001, %v2002
        %v2004 = vrot.slane %v2003, 2
        %v2005 = vadd.f32 %v2003, %v2004
        %v2006 = vrot.slane %v2005, 1
        %v2007 = vadd.f32 %v2005, %v2006
        %v2008 = vsel %vm1923, %v634, 0.0
        %v2009 = vrot.slane %v2008, 4
        %v2010 = vadd.f32 %v2008, %v2009
        %v2011 = vrot.slane %v2010, 2
        %v2012 = vadd.f32 %v2010, %v2011
        %v2013 = vrot.slane %v2012, 1
        %v2014 = vadd.f32 %v2012, %v2013
        %v2015 = vsel %vm1923, %v635, 0.0
        %v2016 = vrot.slane %v2015, 4
        %v2017 = vadd.f32 %v2015, %v2016
        %v2018 = vrot.slane %v2017, 2
        %v2019 = vadd.f32 %v2017, %v2018
        %v2020 = vrot.slane %v2019, 1
        %v2021 = vadd.f32 %v2019, %v2020
        %v2022 = vsel %vm1923, %v636, 0.0
        %v2023 = vrot.slane %v2022, 4
        %v2024 = vadd.f32 %v2022, %v2023
        %v2025 = vrot.slane %v2024, 2
        %v2026 = vadd.f32 %v2024, %v2025
        %v2027 = vrot.slane %v2026, 1
        %v2028 = vadd.f32 %v2026, %v2027
        %v2029 = vsel %vm1923, %v637, 0.0
        %v2030 = vrot.slane %v2029, 4
        %v2031 = vadd.f32 %v2029, %v2030
        %v2032 = vrot.slane %v2031, 2
        %v2033 = vadd.f32 %v2031, %v2032
        %v2034 = vrot.slane %v2033, 1
        %v2035 = vadd.f32 %v2033, %v2034
        %2037 = vset.pattern.permute.xlu0 0
        %2038 = vperm.xlu0 %2037, %v1930
        %v2039 = vpop.permute.xlu0 %2038
        %2041 = vset.pattern.permute.xlu0 0
        %2042 = vperm.xlu0 %2041, %v1937
        %v2043 = vpop.permute.xlu0 %2042
        %2045 = vset.pattern.permute.xlu0 0
        %2046 = vperm.xlu0 %2045, %v1944
        %v2047 = vpop.permute.xlu0 %2046
        %2049 = vset.pattern.permute.xlu0 0
        %2050 = vperm.xlu0 %2049, %v1951
        %v2051 = vpop.permute.xlu0 %2050
        %2053 = vset.pattern.permute.xlu0 0
        %2054 = vperm.xlu0 %2053, %v1958
        %v2055 = vpop.permute.xlu0 %2054
        %2057 = vset.pattern.permute.xlu0 0
        %2058 = vperm.xlu0 %2057, %v1965
        %v2059 = vpop.permute.xlu0 %2058
        %2061 = vset.pattern.permute.xlu0 0
        %2062 = vperm.xlu0 %2061, %v1972
        %v2063 = vpop.permute.xlu0 %2062
        %2065 = vset.pattern.permute.xlu0 0
        %2066 = vperm.xlu0 %2065, %v1979
        %v2067 = vpop.permute.xlu0 %2066
        %2069 = vset.pattern.permute.xlu0 0
        %2070 = vperm.xlu0 %2069, %v1986
        %v2071 = vpop.permute.xlu0 %2070
        %2073 = vset.pattern.permute.xlu0 0
        %2074 = vperm.xlu0 %2073, %v1993
        %v2075 = vpop.permute.xlu0 %2074
        %2077 = vset.pattern.permute.xlu0 0
        %2078 = vperm.xlu0 %2077, %v2000
        %v2079 = vpop.permute.xlu0 %2078
        %2081 = vset.pattern.permute.xlu0 0
        %2082 = vperm.xlu0 %2081, %v2007
        %v2083 = vpop.permute.xlu0 %2082
        %2085 = vset.pattern.permute.xlu0 0
        %2086 = vperm.xlu0 %2085, %v2014
        %v2087 = vpop.permute.xlu0 %2086
        %2089 = vset.pattern.permute.xlu0 0
        %2090 = vperm.xlu0 %2089, %v2021
        %v2091 = vpop.permute.xlu0 %2090
        %2093 = vset.pattern.permute.xlu0 0
        %2094 = vperm.xlu0 %2093, %v2028
        %v2095 = vpop.permute.xlu0 %2094
        %2097 = vset.pattern.permute.xlu0 0
        %2098 = vperm.xlu0 %2097, %v2035
        %v2099 = vpop.permute.xlu0 %2098
        %2100 = vset.pattern.permute.xlu0 1
        %2101 = vperm.xlu0 %2100, %v1930
        %v2102 = vpop.permute.xlu0 %2101
        %2103 = vset.pattern.permute.xlu0 1
        %2104 = vperm.xlu0 %2103, %v1937
        %v2105 = vpop.permute.xlu0 %2104
        %2106 = vset.pattern.permute.xlu0 1
        %2107 = vperm.xlu0 %2106, %v1944
        %v2108 = vpop.permute.xlu0 %2107
        %2109 = vset.pattern.permute.xlu0 1
        %2110 = vperm.xlu0 %2109, %v1951
        %v2111 = vpop.permute.xlu0 %2110
        %2112 = vset.pattern.permute.xlu0 1
        %2113 = vperm.xlu0 %2112, %v1958
        %v2114 = vpop.permute.xlu0 %2113
        %2115 = vset.pattern.permute.xlu0 1
        %2116 = vperm.xlu0 %2115, %v1965
        %v2117 = vpop.permute.xlu0 %2116
        %2118 = vset.pattern.permute.xlu0 1
        %2119 = vperm.xlu0 %2118, %v1972
        %v2120 = vpop.permute.xlu0 %2119
        %2121 = vset.pattern.permute.xlu0 1
        %2122 = vperm.xlu0 %2121, %v1979
        %v2123 = vpop.permute.xlu0 %2122
        %2124 = vset.pattern.permute.xlu0 1
        %2125 = vperm.xlu0 %2124, %v1986
        %v2126 = vpop.permute.xlu0 %2125
        %2127 = vset.pattern.permute.xlu0 1
        %2128 = vperm.xlu0 %2127, %v1993
        %v2129 = vpop.permute.xlu0 %2128
        %2130 = vset.pattern.permute.xlu0 1
        %2131 = vperm.xlu0 %2130, %v2000
        %v2132 = vpop.permute.xlu0 %2131
        %2133 = vset.pattern.permute.xlu0 1
        %2134 = vperm.xlu0 %2133, %v2007
        %v2135 = vpop.permute.xlu0 %2134
        %2136 = vset.pattern.permute.xlu0 1
        %2137 = vperm.xlu0 %2136, %v2014
        %v2138 = vpop.permute.xlu0 %2137
        %2139 = vset.pattern.permute.xlu0 1
        %2140 = vperm.xlu0 %2139, %v2021
        %v2141 = vpop.permute.xlu0 %2140
        %2142 = vset.pattern.permute.xlu0 1
        %2143 = vperm.xlu0 %2142, %v2028
        %v2144 = vpop.permute.xlu0 %2143
        %2145 = vset.pattern.permute.xlu0 1
        %2146 = vperm.xlu0 %2145, %v2035
        %v2147 = vpop.permute.xlu0 %2146
        %2148 = vset.pattern.permute.xlu0 2
        %2149 = vperm.xlu0 %2148, %v1930
        %v2150 = vpop.permute.xlu0 %2149
        %2151 = vset.pattern.permute.xlu0 2
        %2152 = vperm.xlu0 %2151, %v1937
        %v2153 = vpop.permute.xlu0 %2152
        %2154 = vset.pattern.permute.xlu0 2
        %2155 = vperm.xlu0 %2154, %v1944
        %v2156 = vpop.permute.xlu0 %2155
        %2157 = vset.pattern.permute.xlu0 2
        %2158 = vperm.xlu0 %2157, %v1951
        %v2159 = vpop.permute.xlu0 %2158
        %2160 = vset.pattern.permute.xlu0 2
        %2161 = vperm.xlu0 %2160, %v1958
        %v2162 = vpop.permute.xlu0 %2161
        %2163 = vset.pattern.permute.xlu0 2
        %2164 = vperm.xlu0 %2163, %v1965
        %v2165 = vpop.permute.xlu0 %2164
        %2166 = vset.pattern.permute.xlu0 2
        %2167 = vperm.xlu0 %2166, %v1972
        %v2168 = vpop.permute.xlu0 %2167
        %2169 = vset.pattern.permute.xlu0 2
        %2170 = vperm.xlu0 %2169, %v1979
        %v2171 = vpop.permute.xlu0 %2170
        %2172 = vset.pattern.permute.xlu0 2
        %2173 = vperm.xlu0 %2172, %v1986
        %v2174 = vpop.permute.xlu0 %2173
        %2175 = vset.pattern.permute.xlu0 2
        %2176 = vperm.xlu0 %2175, %v1993
        %v2177 = vpop.permute.xlu0 %2176
        %2178 = vset.pattern.permute.xlu0 2
        %2179 = vperm.xlu0 %2178, %v2000
        %v2180 = vpop.permute.xlu0 %2179
        %2181 = vset.pattern.permute.xlu0 2
        %2182 = vperm.xlu0 %2181, %v2007
        %v2183 = vpop.permute.xlu0 %2182
        %2184 = vset.pattern.permute.xlu0 2
        %2185 = vperm.xlu0 %2184, %v2014
        %v2186 = vpop.permute.xlu0 %2185
        %2187 = vset.pattern.permute.xlu0 2
        %2188 = vperm.xlu0 %2187, %v2021
        %v2189 = vpop.permute.xlu0 %2188
        %2190 = vset.pattern.permute.xlu0 2
        %2191 = vperm.xlu0 %2190, %v2028
        %v2192 = vpop.permute.xlu0 %2191
        %2193 = vset.pattern.permute.xlu0 2
        %2194 = vperm.xlu0 %2193, %v2035
        %v2195 = vpop.permute.xlu0 %2194
        %2196 = vset.pattern.permute.xlu0 3
        %2197 = vperm.xlu0 %2196, %v1930
        %v2198 = vpop.permute.xlu0 %2197
        %2199 = vset.pattern.permute.xlu0 3
        %2200 = vperm.xlu0 %2199, %v1937
        %v2201 = vpop.permute.xlu0 %2200
        %2202 = vset.pattern.permute.xlu0 3
        %2203 = vperm.xlu0 %2202, %v1944
        %v2204 = vpop.permute.xlu0 %2203
        %2205 = vset.pattern.permute.xlu0 3
        %2206 = vperm.xlu0 %2205, %v1951
        %v2207 = vpop.permute.xlu0 %2206
        %2208 = vset.pattern.permute.xlu0 3
        %2209 = vperm.xlu0 %2208, %v1958
        %v2210 = vpop.permute.xlu0 %2209
        %2211 = vset.pattern.permute.xlu0 3
        %2212 = vperm.xlu0 %2211, %v1965
        %v2213 = vpop.permute.xlu0 %2212
        %2214 = vset.pattern.permute.xlu0 3
        %2215 = vperm.xlu0 %2214, %v1972
        %v2216 = vpop.permute.xlu0 %2215
        %2217 = vset.pattern.permute.xlu0 3
        %2218 = vperm.xlu0 %2217, %v1979
        %v2219 = vpop.permute.xlu0 %2218
        %2220 = vset.pattern.permute.xlu0 3
        %2221 = vperm.xlu0 %2220, %v1986
        %v2222 = vpop.permute.xlu0 %2221
        %2223 = vset.pattern.permute.xlu0 3
        %2224 = vperm.xlu0 %2223, %v1993
        %v2225 = vpop.permute.xlu0 %2224
        %2226 = vset.pattern.permute.xlu0 3
        %2227 = vperm.xlu0 %2226, %v2000
        %v2228 = vpop.permute.xlu0 %2227
        %2229 = vset.pattern.permute.xlu0 3
        %2230 = vperm.xlu0 %2229, %v2007
        %v2231 = vpop.permute.xlu0 %2230
        %2232 = vset.pattern.permute.xlu0 3
        %2233 = vperm.xlu0 %2232, %v2014
        %v2234 = vpop.permute.xlu0 %2233
        %2235 = vset.pattern.permute.xlu0 3
        %2236 = vperm.xlu0 %2235, %v2021
        %v2237 = vpop.permute.xlu0 %2236
        %2238 = vset.pattern.permute.xlu0 3
        %2239 = vperm.xlu0 %2238, %v2028
        %v2240 = vpop.permute.xlu0 %2239
        %2241 = vset.pattern.permute.xlu0 3
        %2242 = vperm.xlu0 %2241, %v2035
        %v2243 = vpop.permute.xlu0 %2242
        %2244 = vset.pattern.permute.xlu0 4
        %2245 = vperm.xlu0 %2244, %v1930
        %v2246 = vpop.permute.xlu0 %2245
        %2247 = vset.pattern.permute.xlu0 4
        %2248 = vperm.xlu0 %2247, %v1937
        %v2249 = vpop.permute.xlu0 %2248
        %2250 = vset.pattern.permute.xlu0 4
        %2251 = vperm.xlu0 %2250, %v1944
        %v2252 = vpop.permute.xlu0 %2251
        %2253 = vset.pattern.permute.xlu0 4
        %2254 = vperm.xlu0 %2253, %v1951
        %v2255 = vpop.permute.xlu0 %2254
        %2256 = vset.pattern.permute.xlu0 4
        %2257 = vperm.xlu0 %2256, %v1958
        %v2258 = vpop.permute.xlu0 %2257
        %2259 = vset.pattern.permute.xlu0 4
        %2260 = vperm.xlu0 %2259, %v1965
        %v2261 = vpop.permute.xlu0 %2260
        %2262 = vset.pattern.permute.xlu0 4
        %2263 = vperm.xlu0 %2262, %v1972
        %v2264 = vpop.permute.xlu0 %2263
        %2265 = vset.pattern.permute.xlu0 4
        %2266 = vperm.xlu0 %2265, %v1979
        %v2267 = vpop.permute.xlu0 %2266
        %2268 = vset.pattern.permute.xlu0 4
        %2269 = vperm.xlu0 %2268, %v1986
        %v2270 = vpop.permute.xlu0 %2269
        %2271 = vset.pattern.permute.xlu0 4
        %2272 = vperm.xlu0 %2271, %v1993
        %v2273 = vpop.permute.xlu0 %2272
        %2274 = vset.pattern.permute.xlu0 4
        %2275 = vperm.xlu0 %2274, %v2000
        %v2276 = vpop.permute.xlu0 %2275
        %2277 = vset.pattern.permute.xlu0 4
        %2278 = vperm.xlu0 %2277, %v2007
        %v2279 = vpop.permute.xlu0 %2278
        %2280 = vset.pattern.permute.xlu0 4
        %2281 = vperm.xlu0 %2280, %v2014
        %v2282 = vpop.permute.xlu0 %2281
        %2283 = vset.pattern.permute.xlu0 4
        %2284 = vperm.xlu0 %2283, %v2021
        %v2285 = vpop.permute.xlu0 %2284
        %2286 = vset.pattern.permute.xlu0 4
        %2287 = vperm.xlu0 %2286, %v2028
        %v2288 = vpop.permute.xlu0 %2287
        %2289 = vset.pattern.permute.xlu0 4
        %2290 = vperm.xlu0 %2289, %v2035
        %v2291 = vpop.permute.xlu0 %2290
        %2292 = vset.pattern.permute.xlu0 5
        %2293 = vperm.xlu0 %2292, %v1930
        %v2294 = vpop.permute.xlu0 %2293
        %2295 = vset.pattern.permute.xlu0 5
        %2296 = vperm.xlu0 %2295, %v1937
        %v2297 = vpop.permute.xlu0 %2296
        %2298 = vset.pattern.permute.xlu0 5
        %2299 = vperm.xlu0 %2298, %v1944
        %v2300 = vpop.permute.xlu0 %2299
        %2301 = vset.pattern.permute.xlu0 5
        %2302 = vperm.xlu0 %2301, %v1951
        %v2303 = vpop.permute.xlu0 %2302
        %2304 = vset.pattern.permute.xlu0 5
        %2305 = vperm.xlu0 %2304, %v1958
        %v2306 = vpop.permute.xlu0 %2305
        %2307 = vset.pattern.permute.xlu0 5
        %2308 = vperm.xlu0 %2307, %v1965
        %v2309 = vpop.permute.xlu0 %2308
        %2310 = vset.pattern.permute.xlu0 5
        %2311 = vperm.xlu0 %2310, %v1972
        %v2312 = vpop.permute.xlu0 %2311
        %2313 = vset.pattern.permute.xlu0 5
        %2314 = vperm.xlu0 %2313, %v1979
        %v2315 = vpop.permute.xlu0 %2314
        %2316 = vset.pattern.permute.xlu0 5
        %2317 = vperm.xlu0 %2316, %v1986
        %v2318 = vpop.permute.xlu0 %2317
        %2319 = vset.pattern.permute.xlu0 5
        %2320 = vperm.xlu0 %2319, %v1993
        %v2321 = vpop.permute.xlu0 %2320
        %2322 = vset.pattern.permute.xlu0 5
        %2323 = vperm.xlu0 %2322, %v2000
        %v2324 = vpop.permute.xlu0 %2323
        %2325 = vset.pattern.permute.xlu0 5
        %2326 = vperm.xlu0 %2325, %v2007
        %v2327 = vpop.permute.xlu0 %2326
        %2328 = vset.pattern.permute.xlu0 5
        %2329 = vperm.xlu0 %2328, %v2014
        %v2330 = vpop.permute.xlu0 %2329
        %2331 = vset.pattern.permute.xlu0 5
        %2332 = vperm.xlu0 %2331, %v2021
        %v2333 = vpop.permute.xlu0 %2332
        %2334 = vset.pattern.permute.xlu0 5
        %2335 = vperm.xlu0 %2334, %v2028
        %v2336 = vpop.permute.xlu0 %2335
        %2337 = vset.pattern.permute.xlu0 5
        %2338 = vperm.xlu0 %2337, %v2035
        %v2339 = vpop.permute.xlu0 %2338
        %2340 = vset.pattern.permute.xlu0 6
        %2341 = vperm.xlu0 %2340, %v1930
        %v2342 = vpop.permute.xlu0 %2341
        %2343 = vset.pattern.permute.xlu0 6
        %2344 = vperm.xlu0 %2343, %v1937
        %v2345 = vpop.permute.xlu0 %2344
        %2346 = vset.pattern.permute.xlu0 6
        %2347 = vperm.xlu0 %2346, %v1944
        %v2348 = vpop.permute.xlu0 %2347
        %2349 = vset.pattern.permute.xlu0 6
        %2350 = vperm.xlu0 %2349, %v1951
        %v2351 = vpop.permute.xlu0 %2350
        %2352 = vset.pattern.permute.xlu0 6
        %2353 = vperm.xlu0 %2352, %v1958
        %v2354 = vpop.permute.xlu0 %2353
        %2355 = vset.pattern.permute.xlu0 6
        %2356 = vperm.xlu0 %2355, %v1965
        %v2357 = vpop.permute.xlu0 %2356
        %2358 = vset.pattern.permute.xlu0 6
        %2359 = vperm.xlu0 %2358, %v1972
        %v2360 = vpop.permute.xlu0 %2359
        %2361 = vset.pattern.permute.xlu0 6
        %2362 = vperm.xlu0 %2361, %v1979
        %v2363 = vpop.permute.xlu0 %2362
        %2364 = vset.pattern.permute.xlu0 6
        %2365 = vperm.xlu0 %2364, %v1986
        %v2366 = vpop.permute.xlu0 %2365
        %2367 = vset.pattern.permute.xlu0 6
        %2368 = vperm.xlu0 %2367, %v1993
        %v2369 = vpop.permute.xlu0 %2368
        %2370 = vset.pattern.permute.xlu0 6
        %2371 = vperm.xlu0 %2370, %v2000
        %v2372 = vpop.permute.xlu0 %2371
        %2373 = vset.pattern.permute.xlu0 6
        %2374 = vperm.xlu0 %2373, %v2007
        %v2375 = vpop.permute.xlu0 %2374
        %2376 = vset.pattern.permute.xlu0 6
        %2377 = vperm.xlu0 %2376, %v2014
        %v2378 = vpop.permute.xlu0 %2377
        %2379 = vset.pattern.permute.xlu0 6
        %2380 = vperm.xlu0 %2379, %v2021
        %v2381 = vpop.permute.xlu0 %2380
        %2382 = vset.pattern.permute.xlu0 6
        %2383 = vperm.xlu0 %2382, %v2028
        %v2384 = vpop.permute.xlu0 %2383
        %2385 = vset.pattern.permute.xlu0 6
        %2386 = vperm.xlu0 %2385, %v2035
        %v2387 = vpop.permute.xlu0 %2386
        %2388 = vset.pattern.permute.xlu0 7
        %2389 = vperm.xlu0 %2388, %v1930
        %v2390 = vpop.permute.xlu0 %2389
        %2391 = vset.pattern.permute.xlu0 7
        %2392 = vperm.xlu0 %2391, %v1937
        %v2393 = vpop.permute.xlu0 %2392
        %2394 = vset.pattern.permute.xlu0 7
        %2395 = vperm.xlu0 %2394, %v1944
        %v2396 = vpop.permute.xlu0 %2395
        %2397 = vset.pattern.permute.xlu0 7
        %2398 = vperm.xlu0 %2397, %v1951
        %v2399 = vpop.permute.xlu0 %2398
        %2400 = vset.pattern.permute.xlu0 7
        %2401 = vperm.xlu0 %2400, %v1958
        %v2402 = vpop.permute.xlu0 %2401
        %2403 = vset.pattern.permute.xlu0 7
        %2404 = vperm.xlu0 %2403, %v1965
        %v2405 = vpop.permute.xlu0 %2404
        %2406 = vset.pattern.permute.xlu0 7
        %2407 = vperm.xlu0 %2406, %v1972
        %v2408 = vpop.permute.xlu0 %2407
        %2409 = vset.pattern.permute.xlu0 7
        %2410 = vperm.xlu0 %2409, %v1979
        %v2411 = vpop.permute.xlu0 %2410
        %2412 = vset.pattern.permute.xlu0 7
        %2413 = vperm.xlu0 %2412, %v1986
        %v2414 = vpop.permute.xlu0 %2413
        %2415 = vset.pattern.permute.xlu0 7
        %2416 = vperm.xlu0 %2415, %v1993
        %v2417 = vpop.permute.xlu0 %2416
        %2418 = vset.pattern.permute.xlu0 7
        %2419 = vperm.xlu0 %2418, %v2000
        %v2420 = vpop.permute.xlu0 %2419
        %2421 = vset.pattern.permute.xlu0 7
        %2422 = vperm.xlu0 %2421, %v2007
        %v2423 = vpop.permute.xlu0 %2422
        %2424 = vset.pattern.permute.xlu0 7
        %2425 = vperm.xlu0 %2424, %v2014
        %v2426 = vpop.permute.xlu0 %2425
        %2427 = vset.pattern.permute.xlu0 7
        %2428 = vperm.xlu0 %2427, %v2021
        %v2429 = vpop.permute.xlu0 %2428
        %2430 = vset.pattern.permute.xlu0 7
        %2431 = vperm.xlu0 %2430, %v2028
        %v2432 = vpop.permute.xlu0 %2431
        %2433 = vset.pattern.permute.xlu0 7
        %2434 = vperm.xlu0 %2433, %v2035
        %v2435 = vpop.permute.xlu0 %2434
        %vm2436 = vcmask 1041409
        %v2437 = vsel %vm2436, %v2043, %v2039
        %vm2438 = vcmask 1042434
        %v2439 = vsel %vm2438, %v2047, %v2437
        %vm2440 = vcmask 1043459
        %v2441 = vsel %vm2440, %v2051, %v2439
        %vm2442 = vcmask 1044484
        %v2443 = vsel %vm2442, %v2055, %v2441
        %vm2444 = vcmask 1045509
        %v2445 = vsel %vm2444, %v2059, %v2443
        %vm2446 = vcmask 1046534
        %v2447 = vsel %vm2446, %v2063, %v2445
        %vm2448 = vcmask 1047559
        %v2449 = vsel %vm2448, %v2067, %v2447
        %v2450 = vsel %vm2436, %v2075, %v2071
        %v2451 = vsel %vm2438, %v2079, %v2450
        %v2452 = vsel %vm2440, %v2083, %v2451
        %v2453 = vsel %vm2442, %v2087, %v2452
        %v2454 = vsel %vm2444, %v2091, %v2453
        %v2455 = vsel %vm2446, %v2095, %v2454
        %v2456 = vsel %vm2448, %v2099, %v2455
        %v2459 = vsel %vm2436, %v2105, %v2102
        %v2460 = vsel %vm2438, %v2108, %v2459
        %v2461 = vsel %vm2440, %v2111, %v2460
        %v2462 = vsel %vm2442, %v2114, %v2461
        %v2463 = vsel %vm2444, %v2117, %v2462
        %v2464 = vsel %vm2446, %v2120, %v2463
        %v2465 = vsel %vm2448, %v2123, %v2464
        %v2466 = vsel %vm2436, %v2129, %v2126
        %v2467 = vsel %vm2438, %v2132, %v2466
        %v2468 = vsel %vm2440, %v2135, %v2467
        %v2469 = vsel %vm2442, %v2138, %v2468
        %v2470 = vsel %vm2444, %v2141, %v2469
        %v2471 = vsel %vm2446, %v2144, %v2470
        %v2472 = vsel %vm2448, %v2147, %v2471
        %v2475 = vsel %vm2436, %v2153, %v2150
        %v2476 = vsel %vm2438, %v2156, %v2475
        %v2477 = vsel %vm2440, %v2159, %v2476
        %v2478 = vsel %vm2442, %v2162, %v2477
        %v2479 = vsel %vm2444, %v2165, %v2478
        %v2480 = vsel %vm2446, %v2168, %v2479
        %v2481 = vsel %vm2448, %v2171, %v2480
        %v2482 = vsel %vm2436, %v2177, %v2174
        %v2483 = vsel %vm2438, %v2180, %v2482
        %v2484 = vsel %vm2440, %v2183, %v2483
        %v2485 = vsel %vm2442, %v2186, %v2484
        %v2486 = vsel %vm2444, %v2189, %v2485
        %v2487 = vsel %vm2446, %v2192, %v2486
        %v2488 = vsel %vm2448, %v2195, %v2487
        %v2491 = vsel %vm2436, %v2201, %v2198
        %v2492 = vsel %vm2438, %v2204, %v2491
        %v2493 = vsel %vm2440, %v2207, %v2492
        %v2494 = vsel %vm2442, %v2210, %v2493
        %v2495 = vsel %vm2444, %v2213, %v2494
        %v2496 = vsel %vm2446, %v2216, %v2495
        %v2497 = vsel %vm2448, %v2219, %v2496
        %v2498 = vsel %vm2436, %v2225, %v2222
        %v2499 = vsel %vm2438, %v2228, %v2498
        %v2500 = vsel %vm2440, %v2231, %v2499
        %v2501 = vsel %vm2442, %v2234, %v2500
        %v2502 = vsel %vm2444, %v2237, %v2501
        %v2503 = vsel %vm2446, %v2240, %v2502
        %v2504 = vsel %vm2448, %v2243, %v2503
        %v2507 = vsel %vm2436, %v2249, %v2246
        %v2508 = vsel %vm2438, %v2252, %v2507
        %v2509 = vsel %vm2440, %v2255, %v2508
        %v2510 = vsel %vm2442, %v2258, %v2509
        %v2511 = vsel %vm2444, %v2261, %v2510
        %v2512 = vsel %vm2446, %v2264, %v2511
        %v2513 = vsel %vm2448, %v2267, %v2512
        %v2514 = vsel %vm2436, %v2273, %v2270
        %v2515 = vsel %vm2438, %v2276, %v2514
        %v2516 = vsel %vm2440, %v2279, %v2515
        %v2517 = vsel %vm2442, %v2282, %v2516
        %v2518 = vsel %vm2444, %v2285, %v2517
        %v2519 = vsel %vm2446, %v2288, %v2518
        %v2520 = vsel %vm2448, %v2291, %v2519
        %v2523 = vsel %vm2436, %v2297, %v2294
        %v2524 = vsel %vm2438, %v2300, %v2523
        %v2525 = vsel %vm2440, %v2303, %v2524
        %v2526 = vsel %vm2442, %v2306, %v2525
        %v2527 = vsel %vm2444, %v2309, %v2526
        %v2528 = vsel %vm2446, %v2312, %v2527
        %v2529 = vsel %vm2448, %v2315, %v2528
        %v2530 = vsel %vm2436, %v2321, %v2318
        %v2531 = vsel %vm2438, %v2324, %v2530
        %v2532 = vsel %vm2440, %v2327, %v2531
        %v2533 = vsel %vm2442, %v2330, %v2532
        %v2534 = vsel %vm2444, %v2333, %v2533
        %v2535 = vsel %vm2446, %v2336, %v2534
        %v2536 = vsel %vm2448, %v2339, %v2535
        %v2539 = vsel %vm2436, %v2345, %v2342
        %v2540 = vsel %vm2438, %v2348, %v2539
        %v2541 = vsel %vm2440, %v2351, %v2540
        %v2542 = vsel %vm2442, %v2354, %v2541
        %v2543 = vsel %vm2444, %v2357, %v2542
        %v2544 = vsel %vm2446, %v2360, %v2543
        %v2545 = vsel %vm2448, %v2363, %v2544
        %v2546 = vsel %vm2436, %v2369, %v2366
        %v2547 = vsel %vm2438, %v2372, %v2546
        %v2548 = vsel %vm2440, %v2375, %v2547
        %v2549 = vsel %vm2442, %v2378, %v2548
        %v2550 = vsel %vm2444, %v2381, %v2549
        %v2551 = vsel %vm2446, %v2384, %v2550
        %v2552 = vsel %vm2448, %v2387, %v2551
        %v2555 = vsel %vm2436, %v2393, %v2390
        %v2556 = vsel %vm2438, %v2396, %v2555
        %v2557 = vsel %vm2440, %v2399, %v2556
        %v2558 = vsel %vm2442, %v2402, %v2557
        %v2559 = vsel %vm2444, %v2405, %v2558
        %v2560 = vsel %vm2446, %v2408, %v2559
        %v2561 = vsel %vm2448, %v2411, %v2560
        %v2562 = vsel %vm2436, %v2417, %v2414
        %v2563 = vsel %vm2438, %v2420, %v2562
        %v2564 = vsel %vm2440, %v2423, %v2563
        %v2565 = vsel %vm2442, %v2426, %v2564
        %v2566 = vsel %vm2444, %v2429, %v2565
        %v2567 = vsel %vm2446, %v2432, %v2566
        %v2568 = vsel %vm2448, %v2435, %v2567
        %v2571 = vsel %vm1168, %v2449, %v2465
        %v2572 = vsel %vm1168, %v2456, %v2472
        %v2573 = vsel %vm1185, %v2571, %v2481
        %v2574 = vsel %vm1185, %v2572, %v2488
        %v2575 = vsel %vm1202, %v2573, %v2497
        %v2576 = vsel %vm1202, %v2574, %v2504
        %v2577 = vsel %vm1168, %v2513, %v2529
        %v2578 = vsel %vm1168, %v2520, %v2536
        %v2579 = vsel %vm1185, %v2577, %v2545
        %v2580 = vsel %vm1185, %v2578, %v2552
        %v2581 = vsel %vm1202, %v2579, %v2561
        %v2582 = vsel %vm1202, %v2580, %v2568
        %v2583 = vrot.slane %v575, 7
        %v2584 = vsel %vm2436, %v2583, %v574
        %v2585 = vrot.slane %v576, 6
        %v2586 = vsel %vm2438, %v2585, %v2584
        %v2587 = vrot.slane %v577, 5
        %v2588 = vsel %vm2440, %v2587, %v2586
        %v2589 = vrot.slane %v578, 4
        %v2590 = vsel %vm2442, %v2589, %v2588
        %v2591 = vrot.slane %v579, 3
        %v2592 = vsel %vm2444, %v2591, %v2590
        %v2593 = vrot.slane %v580, 2
        %v2594 = vsel %vm2446, %v2593, %v2592
        %v2595 = vrot.slane %v581, 1
        %v2596 = vsel %vm2448, %v2595, %v2594
        %v2597 = vrot.slane %v583, 7
        %v2598 = vsel %vm2436, %v2597, %v582
        %v2599 = vrot.slane %v584, 6
        %v2600 = vsel %vm2438, %v2599, %v2598
        %v2601 = vrot.slane %v585, 5
        %v2602 = vsel %vm2440, %v2601, %v2600
        %v2603 = vrot.slane %v586, 4
        %v2604 = vsel %vm2442, %v2603, %v2602
        %v2605 = vrot.slane %v587, 3
        %v2606 = vsel %vm2444, %v2605, %v2604
        %v2607 = vrot.slane %v588, 2
        %v2608 = vsel %vm2446, %v2607, %v2606
        %v2609 = vrot.slane %v589, 1
        %v2610 = vsel %vm2448, %v2609, %v2608
        %v2613 = vrot.slane %v574, 1
        %v2614 = vsel %vm2436, %v575, %v2613
        %v2615 = vrot.slane %v576, 7
        %v2616 = vsel %vm2438, %v2615, %v2614
        %v2617 = vrot.slane %v577, 6
        %v2618 = vsel %vm2440, %v2617, %v2616
        %v2619 = vrot.slane %v578, 5
        %v2620 = vsel %vm2442, %v2619, %v2618
        %v2621 = vrot.slane %v579, 4
        %v2622 = vsel %vm2444, %v2621, %v2620
        %v2623 = vrot.slane %v580, 3
        %v2624 = vsel %vm2446, %v2623, %v2622
        %v2625 = vrot.slane %v581, 2
        %v2626 = vsel %vm2448, %v2625, %v2624
        %v2627 = vrot.slane %v582, 1
        %v2628 = vsel %vm2436, %v583, %v2627
        %v2629 = vrot.slane %v584, 7
        %v2630 = vsel %vm2438, %v2629, %v2628
        %v2631 = vrot.slane %v585, 6
        %v2632 = vsel %vm2440, %v2631, %v2630
        %v2633 = vrot.slane %v586, 5
        %v2634 = vsel %vm2442, %v2633, %v2632
        %v2635 = vrot.slane %v587, 4
        %v2636 = vsel %vm2444, %v2635, %v2634
        %v2637 = vrot.slane %v588, 3
        %v2638 = vsel %vm2446, %v2637, %v2636
        %v2639 = vrot.slane %v589, 2
        %v2640 = vsel %vm2448, %v2639, %v2638
        %2641 = vrot.lane.b32.xlu0 %v2626, 32
        %v2642 = vpop.permute.xlu0 %2641
        %2643 = vrot.lane.b32.xlu0 %v2640, 32
        %v2644 = vpop.permute.xlu0 %2643
        %v2647 = vrot.slane %v574, 2
        %v2648 = vrot.slane %v575, 1
        %v2649 = vsel %vm2436, %v2648, %v2647
        %v2650 = vsel %vm2438, %v576, %v2649
        %v2651 = vrot.slane %v577, 7
        %v2652 = vsel %vm2440, %v2651, %v2650
        %v2653 = vrot.slane %v578, 6
        %v2654 = vsel %vm2442, %v2653, %v2652
        %v2655 = vrot.slane %v579, 5
        %v2656 = vsel %vm2444, %v2655, %v2654
        %v2657 = vrot.slane %v580, 4
        %v2658 = vsel %vm2446, %v2657, %v2656
        %v2659 = vrot.slane %v581, 3
        %v2660 = vsel %vm2448, %v2659, %v2658
        %v2661 = vrot.slane %v582, 2
        %v2662 = vrot.slane %v583, 1
        %v2663 = vsel %vm2436, %v2662, %v2661
        %v2664 = vsel %vm2438, %v584, %v2663
        %v2665 = vrot.slane %v585, 7
        %v2666 = vsel %vm2440, %v2665, %v2664
        %v2667 = vrot.slane %v586, 6
        %v2668 = vsel %vm2442, %v2667, %v2666
        %v2669 = vrot.slane %v587, 5
        %v2670 = vsel %vm2444, %v2669, %v2668
        %v2671 = vrot.slane %v588, 4
        %v2672 = vsel %vm2446, %v2671, %v2670
        %v2673 = vrot.slane %v589, 3
        %v2674 = vsel %vm2448, %v2673, %v2672
        %2675 = vrot.lane.b32.xlu0 %v2660, 64
        %v2676 = vpop.permute.xlu0 %2675
        %2677 = vrot.lane.b32.xlu0 %v2674, 64
        %v2678 = vpop.permute.xlu0 %2677
        %v2681 = vrot.slane %v574, 3
        %v2682 = vrot.slane %v575, 2
        %v2683 = vsel %vm2436, %v2682, %v2681
        %v2684 = vrot.slane %v576, 1
        %v2685 = vsel %vm2438, %v2684, %v2683
        %v2686 = vsel %vm2440, %v577, %v2685
        %v2687 = vrot.slane %v578, 7
        %v2688 = vsel %vm2442, %v2687, %v2686
        %v2689 = vrot.slane %v579, 6
        %v2690 = vsel %vm2444, %v2689, %v2688
        %v2691 = vrot.slane %v580, 5
        %v2692 = vsel %vm2446, %v2691, %v2690
        %v2693 = vrot.slane %v581, 4
        %v2694 = vsel %vm2448, %v2693, %v2692
        %v2695 = vrot.slane %v582, 3
        %v2696 = vrot.slane %v583, 2
        %v2697 = vsel %vm2436, %v2696, %v2695
        %v2698 = vrot.slane %v584, 1
        %v2699 = vsel %vm2438, %v2698, %v2697
        %v2700 = vsel %vm2440, %v585, %v2699
        %v2701 = vrot.slane %v586, 7
        %v2702 = vsel %vm2442, %v2701, %v2700
        %v2703 = vrot.slane %v587, 6
        %v2704 = vsel %vm2444, %v2703, %v2702
        %v2705 = vrot.slane %v588, 5
        %v2706 = vsel %vm2446, %v2705, %v2704
        %v2707 = vrot.slane %v589, 4
        %v2708 = vsel %vm2448, %v2707, %v2706
        %2709 = vrot.lane.b32.xlu0 %v2694, 96
        %v2710 = vpop.permute.xlu0 %2709
        %2711 = vrot.lane.b32.xlu0 %v2708, 96
        %v2712 = vpop.permute.xlu0 %2711
        %v2715 = vrot.slane %v574, 4
        %v2716 = vrot.slane %v575, 3
        %v2717 = vsel %vm2436, %v2716, %v2715
        %v2718 = vrot.slane %v576, 2
        %v2719 = vsel %vm2438, %v2718, %v2717
        %v2720 = vrot.slane %v577, 1
        %v2721 = vsel %vm2440, %v2720, %v2719
        %v2722 = vsel %vm2442, %v578, %v2721
        %v2723 = vrot.slane %v579, 7
        %v2724 = vsel %vm2444, %v2723, %v2722
        %v2725 = vrot.slane %v580, 6
        %v2726 = vsel %vm2446, %v2725, %v2724
        %v2727 = vrot.slane %v581, 5
        %v2728 = vsel %vm2448, %v2727, %v2726
        %v2729 = vrot.slane %v582, 4
        %v2730 = vrot.slane %v583, 3
        %v2731 = vsel %vm2436, %v2730, %v2729
        %v2732 = vrot.slane %v584, 2
        %v2733 = vsel %vm2438, %v2732, %v2731
        %v2734 = vrot.slane %v585, 1
        %v2735 = vsel %vm2440, %v2734, %v2733
        %v2736 = vsel %vm2442, %v586, %v2735
        %v2737 = vrot.slane %v587, 7
        %v2738 = vsel %vm2444, %v2737, %v2736
        %v2739 = vrot.slane %v588, 6
        %v2740 = vsel %vm2446, %v2739, %v2738
        %v2741 = vrot.slane %v589, 5
        %v2742 = vsel %vm2448, %v2741, %v2740
        %v2745 = vrot.slane %v574, 5
        %v2746 = vrot.slane %v575, 4
        %v2747 = vsel %vm2436, %v2746, %v2745
        %v2748 = vrot.slane %v576, 3
        %v2749 = vsel %vm2438, %v2748, %v2747
        %v2750 = vrot.slane %v577, 2
        %v2751 = vsel %vm2440, %v2750, %v2749
        %v2752 = vrot.slane %v578, 1
        %v2753 = vsel %vm2442, %v2752, %v2751
        %v2754 = vsel %vm2444, %v579, %v2753
        %v2755 = vrot.slane %v580, 7
        %v2756 = vsel %vm2446, %v2755, %v2754
        %v2757 = vrot.slane %v581, 6
        %v2758 = vsel %vm2448, %v2757, %v2756
        %v2759 = vrot.slane %v582, 5
        %v2760 = vrot.slane %v583, 4
        %v2761 = vsel %vm2436, %v2760, %v2759
        %v2762 = vrot.slane %v584, 3
        %v2763 = vsel %vm2438, %v2762, %v2761
        %v2764 = vrot.slane %v585, 2
        %v2765 = vsel %vm2440, %v2764, %v2763
        %v2766 = vrot.slane %v586, 1
        %v2767 = vsel %vm2442, %v2766, %v2765
        %v2768 = vsel %vm2444, %v587, %v2767
        %v2769 = vrot.slane %v588, 7
        %v2770 = vsel %vm2446, %v2769, %v2768
        %v2771 = vrot.slane %v589, 6
        %v2772 = vsel %vm2448, %v2771, %v2770
        %2773 = vrot.lane.b32.xlu0 %v2758, 32
        %v2774 = vpop.permute.xlu0 %2773
        %2775 = vrot.lane.b32.xlu0 %v2772, 32
        %v2776 = vpop.permute.xlu0 %2775
        %v2779 = vrot.slane %v574, 6
        %v2780 = vrot.slane %v575, 5
        %v2781 = vsel %vm2436, %v2780, %v2779
        %v2782 = vrot.slane %v576, 4
        %v2783 = vsel %vm2438, %v2782, %v2781
        %v2784 = vrot.slane %v577, 3
        %v2785 = vsel %vm2440, %v2784, %v2783
        %v2786 = vrot.slane %v578, 2
        %v2787 = vsel %vm2442, %v2786, %v2785
        %v2788 = vrot.slane %v579, 1
        %v2789 = vsel %vm2444, %v2788, %v2787
        %v2790 = vsel %vm2446, %v580, %v2789
        %v2791 = vrot.slane %v581, 7
        %v2792 = vsel %vm2448, %v2791, %v2790
        %v2793 = vrot.slane %v582, 6
        %v2794 = vrot.slane %v583, 5
        %v2795 = vsel %vm2436, %v2794, %v2793
        %v2796 = vrot.slane %v584, 4
        %v2797 = vsel %vm2438, %v2796, %v2795
        %v2798 = vrot.slane %v585, 3
        %v2799 = vsel %vm2440, %v2798, %v2797
        %v2800 = vrot.slane %v586, 2
        %v2801 = vsel %vm2442, %v2800, %v2799
        %v2802 = vrot.slane %v587, 1
        %v2803 = vsel %vm2444, %v2802, %v2801
        %v2804 = vsel %vm2446, %v588, %v2803
        %v2805 = vrot.slane %v589, 7
        %v2806 = vsel %vm2448, %v2805, %v2804
        %2807 = vrot.lane.b32.xlu0 %v2792, 64
        %v2808 = vpop.permute.xlu0 %2807
        %2809 = vrot.lane.b32.xlu0 %v2806, 64
        %v2810 = vpop.permute.xlu0 %2809
        %v2813 = vrot.slane %v574, 7
        %v2814 = vrot.slane %v575, 6
        %v2815 = vsel %vm2436, %v2814, %v2813
        %v2816 = vrot.slane %v576, 5
        %v2817 = vsel %vm2438, %v2816, %v2815
        %v2818 = vrot.slane %v577, 4
        %v2819 = vsel %vm2440, %v2818, %v2817
        %v2820 = vrot.slane %v578, 3
        %v2821 = vsel %vm2442, %v2820, %v2819
        %v2822 = vrot.slane %v579, 2
        %v2823 = vsel %vm2444, %v2822, %v2821
        %v2824 = vrot.slane %v580, 1
        %v2825 = vsel %vm2446, %v2824, %v2823
        %v2826 = vsel %vm2448, %v581, %v2825
        %v2827 = vrot.slane %v582, 7
        %v2828 = vrot.slane %v583, 6
        %v2829 = vsel %vm2436, %v2828, %v2827
        %v2830 = vrot.slane %v584, 5
        %v2831 = vsel %vm2438, %v2830, %v2829
        %v2832 = vrot.slane %v585, 4
        %v2833 = vsel %vm2440, %v2832, %v2831
        %v2834 = vrot.slane %v586, 3
        %v2835 = vsel %vm2442, %v2834, %v2833
        %v2836 = vrot.slane %v587, 2
        %v2837 = vsel %vm2444, %v2836, %v2835
        %v2838 = vrot.slane %v588, 1
        %v2839 = vsel %vm2446, %v2838, %v2837
        %v2840 = vsel %vm2448, %v589, %v2839
        %2841 = vrot.lane.b32.xlu0 %v2826, 96
        %v2842 = vpop.permute.xlu0 %2841
        %2843 = vrot.lane.b32.xlu0 %v2840, 96
        %v2844 = vpop.permute.xlu0 %2843
        %v2847 = vsel %vm1168, %v2596, %v2642
        %v2848 = vsel %vm1168, %v2610, %v2644
        %v2849 = vsel %vm1185, %v2847, %v2676
        %v2850 = vsel %vm1185, %v2848, %v2678
        %v2851 = vsel %vm1202, %v2849, %v2710
        %v2852 = vsel %vm1202, %v2850, %v2712
        %v2853 = vsel %vm1168, %v2728, %v2774
        %v2854 = vsel %vm1168, %v2742, %v2776
        %v2855 = vsel %vm1185, %v2853, %v2808
        %v2856 = vsel %vm1185, %v2854, %v2810
        %v2857 = vsel %vm1202, %v2855, %v2842
        %v2858 = vsel %vm1202, %v2856, %v2844
        %v2859 = vpack.c.bf16 %v1304, %v1304
        %v2860 = vpack.c.bf16 %v1310, %v1310
        %v2861 = vpack.c.bf16 %v1316, %v1316
        %v2862 = vpack.c.bf16 %v1322, %v1322
        %v2863 = vpack.c.bf16 %v1328, %v1328
        %v2864 = vpack.c.bf16 %v1334, %v1334
        %v2865 = vpack.c.bf16 %v1340, %v1340
        %v2866 = vpack.c.bf16 %v1346, %v1346
        %v2867 = vpack.c.bf16 %v1352, %v1352
        %v2868 = vpack.c.bf16 %v1358, %v1358
        %v2869 = vpack.c.bf16 %v1364, %v1364
        %v2870 = vpack.c.bf16 %v1370, %v1370
        %v2871 = vpack.c.bf16 %v1376, %v1376
        %v2872 = vpack.c.bf16 %v1382, %v1382
        %v2873 = vpack.c.bf16 %v1388, %v1388
        %v2874 = vpack.c.bf16 %v1394, %v1394
        %v2875 = vpack.c.bf16 %v1400, %v1400
        %v2876 = vpack.c.bf16 %v1406, %v1406
        %v2877 = vpack.c.bf16 %v1412, %v1412
        %v2878 = vpack.c.bf16 %v1418, %v1418
        %v2879 = vpack.c.bf16 %v1424, %v1424
        %v2880 = vpack.c.bf16 %v1430, %v1430
        %v2881 = vpack.c.bf16 %v1436, %v1436
        %v2882 = vpack.c.bf16 %v1442, %v1442
        %v2883 = vpack.c.bf16 %v1448, %v1448
        %v2884 = vpack.c.bf16 %v1454, %v1454
        %v2885 = vpack.c.bf16 %v1460, %v1460
        %v2886 = vpack.c.bf16 %v1466, %v1466
        %v2887 = vpack.c.bf16 %v1472, %v1472
        %v2888 = vpack.c.bf16 %v1478, %v1478
        %v2889 = vpack.c.bf16 %v1484, %v1484
        %v2890 = vpack.c.bf16 %v1490, %v1490
        %v2891 = vld [vmem:[#allocation7] sm:$0xff]
        %v2892 = vld [vmem:[#allocation7 + $0x8] sm:$0xff]
        %v2893 = vld [vmem:[#allocation7 + $0x10] sm:$0xff]
        %v2894 = vld [vmem:[#allocation7 + $0x18] sm:$0xff]
        %v2895 = vld [vmem:[#allocation7 + $0x20] sm:$0xff]
        %v2896 = vld [vmem:[#allocation7 + $0x28] sm:$0xff]
        %v2897 = vld [vmem:[#allocation7 + $0x30] sm:$0xff]
        %v2898 = vld [vmem:[#allocation7 + $0x38] sm:$0xff]
        %v2899 = vld [vmem:[#allocation7 + $0x40] sm:$0xff]
        %v2900 = vld [vmem:[#allocation7 + $0x48] sm:$0xff]
        %v2901 = vld [vmem:[#allocation7 + $0x50] sm:$0xff]
        %v2902 = vld [vmem:[#allocation7 + $0x58] sm:$0xff]
        %v2903 = vld [vmem:[#allocation7 + $0x60] sm:$0xff]
        %v2904 = vld [vmem:[#allocation7 + $0x68] sm:$0xff]
        %v2905 = vld [vmem:[#allocation7 + $0x70] sm:$0xff]
        %v2906 = vld [vmem:[#allocation7 + $0x78] sm:$0xff]
        %v2907 = vld [vmem:[#allocation7 + $0x80] sm:$0xff]
        %v2908 = vld [vmem:[#allocation7 + $0x88] sm:$0xff]
        %v2909 = vld [vmem:[#allocation7 + $0x90] sm:$0xff]
        %v2910 = vld [vmem:[#allocation7 + $0x98] sm:$0xff]
        %v2911 = vld [vmem:[#allocation7 + $0xa0] sm:$0xff]
        %v2912 = vld [vmem:[#allocation7 + $0xa8] sm:$0xff]
        %v2913 = vld [vmem:[#allocation7 + $0xb0] sm:$0xff]
        %v2914 = vld [vmem:[#allocation7 + $0xb8] sm:$0xff]
        %v2915 = vld [vmem:[#allocation7 + $0xc0] sm:$0xff]
        %v2916 = vld [vmem:[#allocation7 + $0xc8] sm:$0xff]
        %v2917 = vld [vmem:[#allocation7 + $0xd0] sm:$0xff]
        %v2918 = vld [vmem:[#allocation7 + $0xd8] sm:$0xff]
        %v2919 = vld [vmem:[#allocation7 + $0xe0] sm:$0xff]
        %v2920 = vld [vmem:[#allocation7 + $0xe8] sm:$0xff]
        %v2921 = vld [vmem:[#allocation7 + $0xf0] sm:$0xff]
        %v2922 = vld [vmem:[#allocation7 + $0xf8] sm:$0xff]
        %v2923 = vld [vmem:[%s7] sm:$0x3]
        %v2925 = vlaneseq
        %v2926 = vshrl.u32 %v2925, 7
        %v2927 = vsub.s32 0, %v2926
        %v2928 = vrot.slane %v2923, %v2927
        %v2929 = vlaneseq
        %v2930 = vshrl.u32 %v2929, 7
        %v2931 = vsub.s32 1, %v2930
        %v2932 = vrot.slane %v2923, %v2931
        %v2935 = vmul.f32 %v2575, %v2928
        %v2936 = vmul.f32 %v2581, %v2932
        %v2937 = vmul.f32 %v2576, %v2928
        %v2938 = vmul.f32 %v2582, %v2932
        %v2971 = vunpack.c.l.b16 %v2859
        %v2972 = vunpack.c.l.b16 %v2860
        %v2973 = vunpack.c.l.b16 %v2861
        %v2974 = vunpack.c.l.b16 %v2862
        %v2975 = vunpack.c.l.b16 %v2863
        %v2976 = vunpack.c.l.b16 %v2864
        %v2977 = vunpack.c.l.b16 %v2865
        %v2978 = vunpack.c.l.b16 %v2866
        %v2979 = vunpack.c.l.b16 %v2867
        %v2980 = vunpack.c.l.b16 %v2868
        %v2981 = vunpack.c.l.b16 %v2869
        %v2982 = vunpack.c.l.b16 %v2870
        %v2983 = vunpack.c.l.b16 %v2871
        %v2984 = vunpack.c.l.b16 %v2872
        %v2985 = vunpack.c.l.b16 %v2873
        %v2986 = vunpack.c.l.b16 %v2874
        %v2987 = vunpack.c.l.b16 %v2875
        %v2988 = vunpack.c.l.b16 %v2876
        %v2989 = vunpack.c.l.b16 %v2877
        %v2990 = vunpack.c.l.b16 %v2878
        %v2991 = vunpack.c.l.b16 %v2879
        %v2992 = vunpack.c.l.b16 %v2880
        %v2993 = vunpack.c.l.b16 %v2881
        %v2994 = vunpack.c.l.b16 %v2882
        %v2995 = vunpack.c.l.b16 %v2883
        %v2996 = vunpack.c.l.b16 %v2884
        %v2997 = vunpack.c.l.b16 %v2885
        %v2998 = vunpack.c.l.b16 %v2886
        %v2999 = vunpack.c.l.b16 %v2887
        %v3000 = vunpack.c.l.b16 %v2888
        %v3001 = vunpack.c.l.b16 %v2889
        %v3002 = vunpack.c.l.b16 %v2890
        %v3003 = vsel %vm2436, %v2973, %v2971
        %v3004 = vsel %vm2438, %v2975, %v3003
        %v3005 = vsel %vm2440, %v2977, %v3004
        %v3006 = vsel %vm2442, %v2979, %v3005
        %v3007 = vsel %vm2444, %v2981, %v3006
        %v3008 = vsel %vm2446, %v2983, %v3007
        %v3009 = vsel %vm2448, %v2985, %v3008
        %v3010 = vsel %vm2436, %v2974, %v2972
        %v3011 = vsel %vm2438, %v2976, %v3010
        %v3012 = vsel %vm2440, %v2978, %v3011
        %v3013 = vsel %vm2442, %v2980, %v3012
        %v3014 = vsel %vm2444, %v2982, %v3013
        %v3015 = vsel %vm2446, %v2984, %v3014
        %v3016 = vsel %vm2448, %v2986, %v3015
        %v3017 = vsel %vm2436, %v2989, %v2987
        %v3018 = vsel %vm2438, %v2991, %v3017
        %v3019 = vsel %vm2440, %v2993, %v3018
        %v3020 = vsel %vm2442, %v2995, %v3019
        %v3021 = vsel %vm2444, %v2997, %v3020
        %v3022 = vsel %vm2446, %v2999, %v3021
        %v3023 = vsel %vm2448, %v3001, %v3022
        %v3024 = vsel %vm2436, %v2990, %v2988
        %v3025 = vsel %vm2438, %v2992, %v3024
        %v3026 = vsel %vm2440, %v2994, %v3025
        %v3027 = vsel %vm2442, %v2996, %v3026
        %v3028 = vsel %vm2444, %v2998, %v3027
        %v3029 = vsel %vm2446, %v3000, %v3028
        %v3030 = vsel %vm2448, %v3002, %v3029
        %v3031 = vpack.c.b16 %v3023, %v3009
        %v3032 = vpack.c.b16 %v3030, %v3016
        %v3067 = vunpack.c.l.b16 %v2891
        %v3068 = vunpack.c.h.b16 %v2891
        %v3069 = vunpack.c.l.b16 %v2892
        %v3070 = vunpack.c.h.b16 %v2892
        %v3071 = vunpack.c.l.b16 %v2893
        %v3072 = vunpack.c.h.b16 %v2893
        %v3073 = vunpack.c.l.b16 %v2894
        %v3074 = vunpack.c.h.b16 %v2894
        %v3075 = vunpack.c.l.b16 %v2895
        %v3076 = vunpack.c.h.b16 %v2895
        %v3077 = vunpack.c.l.b16 %v2896
        %v3078 = vunpack.c.h.b16 %v2896
        %v3079 = vunpack.c.l.b16 %v2897
        %v3080 = vunpack.c.h.b16 %v2897
        %v3081 = vunpack.c.l.b16 %v2898
        %v3082 = vunpack.c.h.b16 %v2898
        %v3083 = vunpack.c.l.b16 %v2899
        %v3084 = vunpack.c.h.b16 %v2899
        %v3085 = vunpack.c.l.b16 %v2900
        %v3086 = vunpack.c.h.b16 %v2900
        %v3087 = vunpack.c.l.b16 %v2901
        %v3088 = vunpack.c.h.b16 %v2901
        %v3089 = vunpack.c.l.b16 %v2902
        %v3090 = vunpack.c.h.b16 %v2902
        %v3091 = vunpack.c.l.b16 %v2903
        %v3092 = vunpack.c.h.b16 %v2903
        %v3093 = vunpack.c.l.b16 %v2904
        %v3094 = vunpack.c.h.b16 %v2904
        %v3095 = vunpack.c.l.b16 %v2905
        %v3096 = vunpack.c.h.b16 %v2905
        %v3097 = vunpack.c.l.b16 %v2906
        %v3098 = vunpack.c.h.b16 %v2906
        %v3099 = vunpack.c.l.b16 %v2907
        %v3100 = vunpack.c.h.b16 %v2907
        %v3101 = vunpack.c.l.b16 %v2908
        %v3102 = vunpack.c.h.b16 %v2908
        %v3103 = vunpack.c.l.b16 %v2909
        %v3104 = vunpack.c.h.b16 %v2909
        %v3105 = vunpack.c.l.b16 %v2910
        %v3106 = vunpack.c.h.b16 %v2910
        %v3107 = vunpack.c.l.b16 %v2911
        %v3108 = vunpack.c.h.b16 %v2911
        %v3109 = vunpack.c.l.b16 %v2912
        %v3110 = vunpack.c.h.b16 %v2912
        %v3111 = vunpack.c.l.b16 %v2913
        %v3112 = vunpack.c.h.b16 %v2913
        %v3113 = vunpack.c.l.b16 %v2914
        %v3114 = vunpack.c.h.b16 %v2914
        %v3115 = vunpack.c.l.b16 %v2915
        %v3116 = vunpack.c.h.b16 %v2915
        %v3117 = vunpack.c.l.b16 %v2916
        %v3118 = vunpack.c.h.b16 %v2916
        %v3119 = vunpack.c.l.b16 %v2917
        %v3120 = vunpack.c.h.b16 %v2917
        %v3121 = vunpack.c.l.b16 %v2918
        %v3122 = vunpack.c.h.b16 %v2918
        %v3123 = vunpack.c.l.b16 %v2919
        %v3124 = vunpack.c.h.b16 %v2919
        %v3125 = vunpack.c.l.b16 %v2920
        %v3126 = vunpack.c.h.b16 %v2920
        %v3127 = vunpack.c.l.b16 %v2921
        %v3128 = vunpack.c.h.b16 %v2921
        %v3129 = vunpack.c.l.b16 %v2922
        %v3130 = vunpack.c.h.b16 %v2922
        %v3131 = vpack.c.b16 %v3069, %v3067
        %v3132 = vpack.c.b16 %v3070, %v3068
        %v3133 = vpack.c.b16 %v3073, %v3071
        %v3134 = vpack.c.b16 %v3074, %v3072
        %v3135 = vpack.c.b16 %v3077, %v3075
        %v3136 = vpack.c.b16 %v3078, %v3076
        %v3137 = vpack.c.b16 %v3081, %v3079
        %v3138 = vpack.c.b16 %v3082, %v3080
        %v3139 = vpack.c.b16 %v3085, %v3083
        %v3140 = vpack.c.b16 %v3086, %v3084
        %v3141 = vpack.c.b16 %v3089, %v3087
        %v3142 = vpack.c.b16 %v3090, %v3088
        %v3143 = vpack.c.b16 %v3093, %v3091
        %v3144 = vpack.c.b16 %v3094, %v3092
        %v3145 = vpack.c.b16 %v3097, %v3095
        %v3146 = vpack.c.b16 %v3098, %v3096
        %v3147 = vpack.c.b16 %v3101, %v3099
        %v3148 = vpack.c.b16 %v3102, %v3100
        %v3149 = vpack.c.b16 %v3105, %v3103
        %v3150 = vpack.c.b16 %v3106, %v3104
        %v3151 = vpack.c.b16 %v3109, %v3107
        %v3152 = vpack.c.b16 %v3110, %v3108
        %v3153 = vpack.c.b16 %v3113, %v3111
        %v3154 = vpack.c.b16 %v3114, %v3112
        %v3155 = vpack.c.b16 %v3117, %v3115
        %v3156 = vpack.c.b16 %v3118, %v3116
        %v3157 = vpack.c.b16 %v3121, %v3119
        %v3158 = vpack.c.b16 %v3122, %v3120
        %v3159 = vpack.c.b16 %v3125, %v3123
        %v3160 = vpack.c.b16 %v3126, %v3124
        %v3161 = vpack.c.b16 %v3129, %v3127
        %v3162 = vpack.c.b16 %v3130, %v3128
        %3195 = vmatprep.subr.bf16.mxu0 %v3132
        %3196 = vmatpush1.bf16.msra.mxu0 %v3131
        %3197 = vmatprep.subr.bf16.mxu0 %v3134
        %3198 = vmatpush1.bf16.msra.mxu0 %v3133
        %3199 = vmatprep.subr.bf16.mxu0 %v3136
        %3200 = vmatpush1.bf16.msra.mxu0 %v3135
        %3201 = vmatprep.subr.bf16.mxu0 %v3138
        %3202 = vmatpush1.bf16.msra.mxu0 %v3137
        %3203 = vmatprep.subr.bf16.mxu0 %v3140
        %3204 = vmatpush1.bf16.msra.mxu0 %v3139
        %3205 = vmatprep.subr.bf16.mxu0 %v3142
        %3206 = vmatpush1.bf16.msra.mxu0 %v3141
        %3207 = vmatprep.subr.bf16.mxu0 %v3144
        %3208 = vmatpush1.bf16.msra.mxu0 %v3143
        %3209 = vmatprep.subr.bf16.mxu0 %v3146
        %3210 = vmatpush1.bf16.msra.mxu0 %v3145
        %3211 = vmatprep.subr.bf16.mxu0 %v3148
        %3212 = vmatpush1.bf16.msra.mxu0 %v3147
        %3213 = vmatprep.subr.bf16.mxu0 %v3150
        %3214 = vmatpush1.bf16.msra.mxu0 %v3149
        %3215 = vmatprep.subr.bf16.mxu0 %v3152
        %3216 = vmatpush1.bf16.msra.mxu0 %v3151
        %3217 = vmatprep.subr.bf16.mxu0 %v3154
        %3218 = vmatpush1.bf16.msra.mxu0 %v3153
        %3219 = vmatprep.subr.bf16.mxu0 %v3156
        %3220 = vmatpush1.bf16.msra.mxu0 %v3155
        %3221 = vmatprep.subr.bf16.mxu0 %v3158
        %3222 = vmatpush1.bf16.msra.mxu0 %v3157
        %3223 = vmatprep.subr.bf16.mxu0 %v3160
        %3224 = vmatpush1.bf16.msra.mxu0 %v3159
        %3225 = vmatprep.subr.bf16.mxu0 %v3162
        %3226 = vmatpush1.bf16.msra.mxu0 %v3161
        %3227 = vmatprep.mubr.bf16.mxu0 %v3032
        %3228 = vmatmul.mubr.bf16.gmra.mrb[0].mxu0 %v3031
        %v3229 = vpop.f32.mrb[0].mxu0
        %v3230 = vadd.f32 %v2935, %v3229
        %v3231 = vpop.f32.mrb[0].mxu0
        %v3232 = vadd.f32 %v2936, %v3231
        %v3233 = vpop.f32.mrb[0].mxu0
        %v3234 = vadd.f32 %v2937, %v3233
        %v3235 = vpop.f32.mrb[0].mxu0
        %v3236 = vadd.f32 %v2938, %v3235
        %3237 = vdwg.mxu0
        %v3238 = vpack.c.bf16 %v1736, %v1736
        %v3239 = vpack.c.bf16 %v1742, %v1742
        %v3240 = vpack.c.bf16 %v1748, %v1748
        %v3241 = vpack.c.bf16 %v1754, %v1754
        %v3242 = vpack.c.bf16 %v1760, %v1760
        %v3243 = vpack.c.bf16 %v1766, %v1766
        %v3244 = vpack.c.bf16 %v1772, %v1772
        %v3245 = vpack.c.bf16 %v1778, %v1778
        %v3246 = vpack.c.bf16 %v1784, %v1784
        %v3247 = vpack.c.bf16 %v1790, %v1790
        %v3248 = vpack.c.bf16 %v1796, %v1796
        %v3249 = vpack.c.bf16 %v1802, %v1802
        %v3250 = vpack.c.bf16 %v1808, %v1808
        %v3251 = vpack.c.bf16 %v1814, %v1814
        %v3252 = vpack.c.bf16 %v1820, %v1820
        %v3253 = vpack.c.bf16 %v1826, %v1826
        %v3254 = vpack.c.bf16 %v1832, %v1832
        %v3255 = vpack.c.bf16 %v1838, %v1838
        %v3256 = vpack.c.bf16 %v1844, %v1844
        %v3257 = vpack.c.bf16 %v1850, %v1850
        %v3258 = vpack.c.bf16 %v1856, %v1856
        %v3259 = vpack.c.bf16 %v1862, %v1862
        %v3260 = vpack.c.bf16 %v1868, %v1868
        %v3261 = vpack.c.bf16 %v1874, %v1874
        %v3262 = vpack.c.bf16 %v1880, %v1880
        %v3263 = vpack.c.bf16 %v1886, %v1886
        %v3264 = vpack.c.bf16 %v1892, %v1892
        %v3265 = vpack.c.bf16 %v1898, %v1898
        %v3266 = vpack.c.bf16 %v1904, %v1904
        %v3267 = vpack.c.bf16 %v1910, %v1910
        %v3268 = vpack.c.bf16 %v1916, %v1916
        %v3269 = vpack.c.bf16 %v1922, %v1922
        %v3270 = vld [vmem:[#allocation5] sm:$0xff]
        %v3271 = vld [vmem:[#allocation5 + $0x8] sm:$0xff]
        %v3272 = vld [vmem:[#allocation5 + $0x10] sm:$0xff]
        %v3273 = vld [vmem:[#allocation5 + $0x18] sm:$0xff]
        %v3274 = vld [vmem:[#allocation5 + $0x20] sm:$0xff]
        %v3275 = vld [vmem:[#allocation5 + $0x28] sm:$0xff]
        %v3276 = vld [vmem:[#allocation5 + $0x30] sm:$0xff]
        %v3277 = vld [vmem:[#allocation5 + $0x38] sm:$0xff]
        %v3278 = vld [vmem:[#allocation5 + $0x40] sm:$0xff]
        %v3279 = vld [vmem:[#allocation5 + $0x48] sm:$0xff]
        %v3280 = vld [vmem:[#allocation5 + $0x50] sm:$0xff]
        %v3281 = vld [vmem:[#allocation5 + $0x58] sm:$0xff]
        %v3282 = vld [vmem:[#allocation5 + $0x60] sm:$0xff]
        %v3283 = vld [vmem:[#allocation5 + $0x68] sm:$0xff]
        %v3284 = vld [vmem:[#allocation5 + $0x70] sm:$0xff]
        %v3285 = vld [vmem:[#allocation5 + $0x78] sm:$0xff]
        %v3286 = vld [vmem:[#allocation5 + $0x80] sm:$0xff]
        %v3287 = vld [vmem:[#allocation5 + $0x88] sm:$0xff]
        %v3288 = vld [vmem:[#allocation5 + $0x90] sm:$0xff]
        %v3289 = vld [vmem:[#allocation5 + $0x98] sm:$0xff]
        %v3290 = vld [vmem:[#allocation5 + $0xa0] sm:$0xff]
        %v3291 = vld [vmem:[#allocation5 + $0xa8] sm:$0xff]
        %v3292 = vld [vmem:[#allocation5 + $0xb0] sm:$0xff]
        %v3293 = vld [vmem:[#allocation5 + $0xb8] sm:$0xff]
        %v3294 = vld [vmem:[#allocation5 + $0xc0] sm:$0xff]
        %v3295 = vld [vmem:[#allocation5 + $0xc8] sm:$0xff]
        %v3296 = vld [vmem:[#allocation5 + $0xd0] sm:$0xff]
        %v3297 = vld [vmem:[#allocation5 + $0xd8] sm:$0xff]
        %v3298 = vld [vmem:[#allocation5 + $0xe0] sm:$0xff]
        %v3299 = vld [vmem:[#allocation5 + $0xe8] sm:$0xff]
        %v3300 = vld [vmem:[#allocation5 + $0xf0] sm:$0xff]
        %v3301 = vld [vmem:[#allocation5 + $0xf8] sm:$0xff]
        %v3302 = vld [vmem:[%s5] sm:$0x3]
        %v3304 = vlaneseq
        %v3305 = vshrl.u32 %v3304, 7
        %v3306 = vsub.s32 0, %v3305
        %v3307 = vrot.slane %v3302, %v3306
        %v3308 = vlaneseq
        %v3309 = vshrl.u32 %v3308, 7
        %v3310 = vsub.s32 1, %v3309
        %v3311 = vrot.slane %v3302, %v3310
        %v3314 = vmul.f32 %v2575, %v3307
        %v3315 = vmul.f32 %v2581, %v3311
        %v3316 = vmul.f32 %v2576, %v3307
        %v3317 = vmul.f32 %v2582, %v3311
        %v3350 = vunpack.c.l.b16 %v3238
        %v3351 = vunpack.c.l.b16 %v3239
        %v3352 = vunpack.c.l.b16 %v3240
        %v3353 = vunpack.c.l.b16 %v3241
        %v3354 = vunpack.c.l.b16 %v3242
        %v3355 = vunpack.c.l.b16 %v3243
        %v3356 = vunpack.c.l.b16 %v3244
        %v3357 = vunpack.c.l.b16 %v3245
        %v3358 = vunpack.c.l.b16 %v3246
        %v3359 = vunpack.c.l.b16 %v3247
        %v3360 = vunpack.c.l.b16 %v3248
        %v3361 = vunpack.c.l.b16 %v3249
        %v3362 = vunpack.c.l.b16 %v3250
        %v3363 = vunpack.c.l.b16 %v3251
        %v3364 = vunpack.c.l.b16 %v3252
        %v3365 = vunpack.c.l.b16 %v3253
        %v3366 = vunpack.c.l.b16 %v3254
        %v3367 = vunpack.c.l.b16 %v3255
        %v3368 = vunpack.c.l.b16 %v3256
        %v3369 = vunpack.c.l.b16 %v3257
        %v3370 = vunpack.c.l.b16 %v3258
        %v3371 = vunpack.c.l.b16 %v3259
        %v3372 = vunpack.c.l.b16 %v3260
        %v3373 = vunpack.c.l.b16 %v3261
        %v3374 = vunpack.c.l.b16 %v3262
        %v3375 = vunpack.c.l.b16 %v3263
        %v3376 = vunpack.c.l.b16 %v3264
        %v3377 = vunpack.c.l.b16 %v3265
        %v3378 = vunpack.c.l.b16 %v3266
        %v3379 = vunpack.c.l.b16 %v3267
        %v3380 = vunpack.c.l.b16 %v3268
        %v3381 = vunpack.c.l.b16 %v3269
        %v3382 = vsel %vm2436, %v3352, %v3350
        %v3383 = vsel %vm2438, %v3354, %v3382
        %v3384 = vsel %vm2440, %v3356, %v3383
        %v3385 = vsel %vm2442, %v3358, %v3384
        %v3386 = vsel %vm2444, %v3360, %v3385
        %v3387 = vsel %vm2446, %v3362, %v3386
        %v3388 = vsel %vm2448, %v3364, %v3387
        %v3389 = vsel %vm2436, %v3353, %v3351
        %v3390 = vsel %vm2438, %v3355, %v3389
        %v3391 = vsel %vm2440, %v3357, %v3390
        %v3392 = vsel %vm2442, %v3359, %v3391
        %v3393 = vsel %vm2444, %v3361, %v3392
        %v3394 = vsel %vm2446, %v3363, %v3393
        %v3395 = vsel %vm2448, %v3365, %v3394
        %v3396 = vsel %vm2436, %v3368, %v3366
        %v3397 = vsel %vm2438, %v3370, %v3396
        %v3398 = vsel %vm2440, %v3372, %v3397
        %v3399 = vsel %vm2442, %v3374, %v3398
        %v3400 = vsel %vm2444, %v3376, %v3399
        %v3401 = vsel %vm2446, %v3378, %v3400
        %v3402 = vsel %vm2448, %v3380, %v3401
        %v3403 = vsel %vm2436, %v3369, %v3367
        %v3404 = vsel %vm2438, %v3371, %v3403
        %v3405 = vsel %vm2440, %v3373, %v3404
        %v3406 = vsel %vm2442, %v3375, %v3405
        %v3407 = vsel %vm2444, %v3377, %v3406
        %v3408 = vsel %vm2446, %v3379, %v3407
        %v3409 = vsel %vm2448, %v3381, %v3408
        %v3410 = vpack.c.b16 %v3402, %v3388
        %v3411 = vpack.c.b16 %v3409, %v3395
        %v3446 = vunpack.c.l.b16 %v3270
        %v3447 = vunpack.c.h.b16 %v3270
        %v3448 = vunpack.c.l.b16 %v3271
        %v3449 = vunpack.c.h.b16 %v3271
        %v3450 = vunpack.c.l.b16 %v3272
        %v3451 = vunpack.c.h.b16 %v3272
        %v3452 = vunpack.c.l.b16 %v3273
        %v3453 = vunpack.c.h.b16 %v3273
        %v3454 = vunpack.c.l.b16 %v3274
        %v3455 = vunpack.c.h.b16 %v3274
        %v3456 = vunpack.c.l.b16 %v3275
        %v3457 = vunpack.c.h.b16 %v3275
        %v3458 = vunpack.c.l.b16 %v3276
        %v3459 = vunpack.c.h.b16 %v3276
        %v3460 = vunpack.c.l.b16 %v3277
        %v3461 = vunpack.c.h.b16 %v3277
        %v3462 = vunpack.c.l.b16 %v3278
        %v3463 = vunpack.c.h.b16 %v3278
        %v3464 = vunpack.c.l.b16 %v3279
        %v3465 = vunpack.c.h.b16 %v3279
        %v3466 = vunpack.c.l.b16 %v3280
        %v3467 = vunpack.c.h.b16 %v3280
        %v3468 = vunpack.c.l.b16 %v3281
        %v3469 = vunpack.c.h.b16 %v3281
        %v3470 = vunpack.c.l.b16 %v3282
        %v3471 = vunpack.c.h.b16 %v3282
        %v3472 = vunpack.c.l.b16 %v3283
        %v3473 = vunpack.c.h.b16 %v3283
        %v3474 = vunpack.c.l.b16 %v3284
        %v3475 = vunpack.c.h.b16 %v3284
        %v3476 = vunpack.c.l.b16 %v3285
        %v3477 = vunpack.c.h.b16 %v3285
        %v3478 = vunpack.c.l.b16 %v3286
        %v3479 = vunpack.c.h.b16 %v3286
        %v3480 = vunpack.c.l.b16 %v3287
        %v3481 = vunpack.c.h.b16 %v3287
        %v3482 = vunpack.c.l.b16 %v3288
        %v3483 = vunpack.c.h.b16 %v3288
        %v3484 = vunpack.c.l.b16 %v3289
        %v3485 = vunpack.c.h.b16 %v3289
        %v3486 = vunpack.c.l.b16 %v3290
        %v3487 = vunpack.c.h.b16 %v3290
        %v3488 = vunpack.c.l.b16 %v3291
        %v3489 = vunpack.c.h.b16 %v3291
        %v3490 = vunpack.c.l.b16 %v3292
        %v3491 = vunpack.c.h.b16 %v3292
        %v3492 = vunpack.c.l.b16 %v3293
        %v3493 = vunpack.c.h.b16 %v3293
        %v3494 = vunpack.c.l.b16 %v3294
        %v3495 = vunpack.c.h.b16 %v3294
        %v3496 = vunpack.c.l.b16 %v3295
        %v3497 = vunpack.c.h.b16 %v3295
        %v3498 = vunpack.c.l.b16 %v3296
        %v3499 = vunpack.c.h.b16 %v3296
        %v3500 = vunpack.c.l.b16 %v3297
        %v3501 = vunpack.c.h.b16 %v3297
        %v3502 = vunpack.c.l.b16 %v3298
        %v3503 = vunpack.c.h.b16 %v3298
        %v3504 = vunpack.c.l.b16 %v3299
        %v3505 = vunpack.c.h.b16 %v3299
        %v3506 = vunpack.c.l.b16 %v3300
        %v3507 = vunpack.c.h.b16 %v3300
        %v3508 = vunpack.c.l.b16 %v3301
        %v3509 = vunpack.c.h.b16 %v3301
        %v3510 = vpack.c.b16 %v3448, %v3446
        %v3511 = vpack.c.b16 %v3449, %v3447
        %v3512 = vpack.c.b16 %v3452, %v3450
        %v3513 = vpack.c.b16 %v3453, %v3451
        %v3514 = vpack.c.b16 %v3456, %v3454
        %v3515 = vpack.c.b16 %v3457, %v3455
        %v3516 = vpack.c.b16 %v3460, %v3458
        %v3517 = vpack.c.b16 %v3461, %v3459
        %v3518 = vpack.c.b16 %v3464, %v3462
        %v3519 = vpack.c.b16 %v3465, %v3463
        %v3520 = vpack.c.b16 %v3468, %v3466
        %v3521 = vpack.c.b16 %v3469, %v3467
        %v3522 = vpack.c.b16 %v3472, %v3470
        %v3523 = vpack.c.b16 %v3473, %v3471
        %v3524 = vpack.c.b16 %v3476, %v3474
        %v3525 = vpack.c.b16 %v3477, %v3475
        %v3526 = vpack.c.b16 %v3480, %v3478
        %v3527 = vpack.c.b16 %v3481, %v3479
        %v3528 = vpack.c.b16 %v3484, %v3482
        %v3529 = vpack.c.b16 %v3485, %v3483
        %v3530 = vpack.c.b16 %v3488, %v3486
        %v3531 = vpack.c.b16 %v3489, %v3487
        %v3532 = vpack.c.b16 %v3492, %v3490
        %v3533 = vpack.c.b16 %v3493, %v3491
        %v3534 = vpack.c.b16 %v3496, %v3494
        %v3535 = vpack.c.b16 %v3497, %v3495
        %v3536 = vpack.c.b16 %v3500, %v3498
        %v3537 = vpack.c.b16 %v3501, %v3499
        %v3538 = vpack.c.b16 %v3504, %v3502
        %v3539 = vpack.c.b16 %v3505, %v3503
        %v3540 = vpack.c.b16 %v3508, %v3506
        %v3541 = vpack.c.b16 %v3509, %v3507
        %3574 = vmatprep.subr.bf16.mxu0 %v3511
        %3575 = vmatpush1.bf16.msra.mxu0 %v3510
        %3576 = vmatprep.subr.bf16.mxu0 %v3513
        %3577 = vmatpush1.bf16.msra.mxu0 %v3512
        %3578 = vmatprep.subr.bf16.mxu0 %v3515
        %3579 = vmatpush1.bf16.msra.mxu0 %v3514
        %3580 = vmatprep.subr.bf16.mxu0 %v3517
        %3581 = vmatpush1.bf16.msra.mxu0 %v3516
        %3582 = vmatprep.subr.bf16.mxu0 %v3519
        %3583 = vmatpush1.bf16.msra.mxu0 %v3518
        %3584 = vmatprep.subr.bf16.mxu0 %v3521
        %3585 = vmatpush1.bf16.msra.mxu0 %v3520
        %3586 = vmatprep.subr.bf16.mxu0 %v3523
        %3587 = vmatpush1.bf16.msra.mxu0 %v3522
        %3588 = vmatprep.subr.bf16.mxu0 %v3525
        %3589 = vmatpush1.bf16.msra.mxu0 %v3524
        %3590 = vmatprep.subr.bf16.mxu0 %v3527
        %3591 = vmatpush1.bf16.msra.mxu0 %v3526
        %3592 = vmatprep.subr.bf16.mxu0 %v3529
        %3593 = vmatpush1.bf16.msra.mxu0 %v3528
        %3594 = vmatprep.subr.bf16.mxu0 %v3531
        %3595 = vmatpush1.bf16.msra.mxu0 %v3530
        %3596 = vmatprep.subr.bf16.mxu0 %v3533
        %3597 = vmatpush1.bf16.msra.mxu0 %v3532
        %3598 = vmatprep.subr.bf16.mxu0 %v3535
        %3599 = vmatpush1.bf16.msra.mxu0 %v3534
        %3600 = vmatprep.subr.bf16.mxu0 %v3537
        %3601 = vmatpush1.bf16.msra.mxu0 %v3536
        %3602 = vmatprep.subr.bf16.mxu0 %v3539
        %3603 = vmatpush1.bf16.msra.mxu0 %v3538
        %3604 = vmatprep.subr.bf16.mxu0 %v3541
        %3605 = vmatpush1.bf16.msra.mxu0 %v3540
        %3606 = vmatprep.mubr.bf16.mxu0 %v3411
        %3607 = vmatmul.mubr.bf16.gmra.mrb[0].mxu0 %v3410
        %v3608 = vpop.f32.mrb[0].mxu0
        %v3609 = vadd.f32 %v3314, %v3608
        %v3610 = vpop.f32.mrb[0].mxu0
        %v3611 = vadd.f32 %v3315, %v3610
        %v3612 = vpop.f32.mrb[0].mxu0
        %v3613 = vadd.f32 %v3316, %v3612
        %v3614 = vpop.f32.mrb[0].mxu0
        %v3615 = vadd.f32 %v3317, %v3614
        %3616 = vdwg.mxu0
        %v3617 = vmax.f32 %v3609, 0.0
        %v3618 = vmax.f32 %v3611, 0.0
        %v3619 = vmax.f32 %v3613, 0.0
        %v3620 = vmax.f32 %v3615, 0.0
        %v3621 = vpack.c.bf16 %v3619, %v3617
        %v3622 = vpack.c.bf16 %v3620, %v3618
        %v3623 = vld [vmem:[#allocation8] sm:$0xff]
        %v3624 = vld [vmem:[#allocation8 + $0x8] sm:$0xff]
        %v3625 = vld [vmem:[#allocation8 + $0x10] sm:$0xff]
        %v3626 = vld [vmem:[#allocation8 + $0x18] sm:$0xff]
        %v3627 = vld [vmem:[#allocation8 + $0x20] sm:$0xff]
        %v3628 = vld [vmem:[#allocation8 + $0x28] sm:$0xff]
        %v3629 = vld [vmem:[#allocation8 + $0x30] sm:$0xff]
        %v3630 = vld [vmem:[#allocation8 + $0x38] sm:$0xff]
        %v3631 = vld [vmem:[#allocation8 + $0x40] sm:$0xff]
        %v3632 = vld [vmem:[#allocation8 + $0x48] sm:$0xff]
        %v3633 = vld [vmem:[#allocation8 + $0x50] sm:$0xff]
        %v3634 = vld [vmem:[#allocation8 + $0x58] sm:$0xff]
        %v3635 = vld [vmem:[#allocation8 + $0x60] sm:$0xff]
        %v3636 = vld [vmem:[#allocation8 + $0x68] sm:$0xff]
        %v3637 = vld [vmem:[#allocation8 + $0x70] sm:$0xff]
        %v3638 = vld [vmem:[#allocation8 + $0x78] sm:$0xff]
        %v3639 = vld [vmem:[#allocation8 + $0x80] sm:$0xff]
        %v3640 = vld [vmem:[#allocation8 + $0x88] sm:$0xff]
        %v3641 = vld [vmem:[#allocation8 + $0x90] sm:$0xff]
        %v3642 = vld [vmem:[#allocation8 + $0x98] sm:$0xff]
        %v3643 = vld [vmem:[#allocation8 + $0xa0] sm:$0xff]
        %v3644 = vld [vmem:[#allocation8 + $0xa8] sm:$0xff]
        %v3645 = vld [vmem:[#allocation8 + $0xb0] sm:$0xff]
        %v3646 = vld [vmem:[#allocation8 + $0xb8] sm:$0xff]
        %v3647 = vld [vmem:[#allocation8 + $0xc0] sm:$0xff]
        %v3648 = vld [vmem:[#allocation8 + $0xc8] sm:$0xff]
        %v3649 = vld [vmem:[#allocation8 + $0xd0] sm:$0xff]
        %v3650 = vld [vmem:[#allocation8 + $0xd8] sm:$0xff]
        %v3651 = vld [vmem:[#allocation8 + $0xe0] sm:$0xff]
        %v3652 = vld [vmem:[#allocation8 + $0xe8] sm:$0xff]
        %v3653 = vld [vmem:[#allocation8 + $0xf0] sm:$0xff]
        %v3654 = vld [vmem:[#allocation8 + $0xf8] sm:$0xff]
        %v3655 = vmax.f32 %v3230, 0.0
        %v3656 = vmax.f32 %v3232, 0.0
        %v3657 = vmax.f32 %v3234, 0.0
        %v3658 = vmax.f32 %v3236, 0.0
        %v3659 = vpack.c.bf16 %v3657, %v3655
        %v3660 = vpack.c.bf16 %v3658, %v3656
        %v3661 = vld [vmem:[#allocation10] sm:$0xff]
        %v3662 = vld [vmem:[#allocation10 + $0x8] sm:$0xff]
        %v3663 = vld [vmem:[#allocation10 + $0x10] sm:$0xff]
        %v3664 = vld [vmem:[#allocation10 + $0x18] sm:$0xff]
        %v3665 = vld [vmem:[#allocation10 + $0x20] sm:$0xff]
        %v3666 = vld [vmem:[#allocation10 + $0x28] sm:$0xff]
        %v3667 = vld [vmem:[#allocation10 + $0x30] sm:$0xff]
        %v3668 = vld [vmem:[#allocation10 + $0x38] sm:$0xff]
        %v3669 = vld [vmem:[#allocation10 + $0x40] sm:$0xff]
        %v3670 = vld [vmem:[#allocation10 + $0x48] sm:$0xff]
        %v3671 = vld [vmem:[#allocation10 + $0x50] sm:$0xff]
        %v3672 = vld [vmem:[#allocation10 + $0x58] sm:$0xff]
        %v3673 = vld [vmem:[#allocation10 + $0x60] sm:$0xff]
        %v3674 = vld [vmem:[#allocation10 + $0x68] sm:$0xff]
        %v3675 = vld [vmem:[#allocation10 + $0x70] sm:$0xff]
        %v3676 = vld [vmem:[#allocation10 + $0x78] sm:$0xff]
        %v3677 = vld [vmem:[#allocation10 + $0x80] sm:$0xff]
        %v3678 = vld [vmem:[#allocation10 + $0x88] sm:$0xff]
        %v3679 = vld [vmem:[#allocation10 + $0x90] sm:$0xff]
        %v3680 = vld [vmem:[#allocation10 + $0x98] sm:$0xff]
        %v3681 = vld [vmem:[#allocation10 + $0xa0] sm:$0xff]
        %v3682 = vld [vmem:[#allocation10 + $0xa8] sm:$0xff]
        %v3683 = vld [vmem:[#allocation10 + $0xb0] sm:$0xff]
        %v3684 = vld [vmem:[#allocation10 + $0xb8] sm:$0xff]
        %v3685 = vld [vmem:[#allocation10 + $0xc0] sm:$0xff]
        %v3686 = vld [vmem:[#allocation10 + $0xc8] sm:$0xff]
        %v3687 = vld [vmem:[#allocation10 + $0xd0] sm:$0xff]
        %v3688 = vld [vmem:[#allocation10 + $0xd8] sm:$0xff]
        %v3689 = vld [vmem:[#allocation10 + $0xe0] sm:$0xff]
        %v3690 = vld [vmem:[#allocation10 + $0xe8] sm:$0xff]
        %v3691 = vld [vmem:[#allocation10 + $0xf0] sm:$0xff]
        %v3692 = vld [vmem:[#allocation10 + $0xf8] sm:$0xff]
        %v3725 = vunpack.c.l.b16 %v3661
        %v3726 = vunpack.c.h.b16 %v3661
        %v3727 = vunpack.c.l.b16 %v3662
        %v3728 = vunpack.c.h.b16 %v3662
        %v3729 = vunpack.c.l.b16 %v3663
        %v3730 = vunpack.c.h.b16 %v3663
        %v3731 = vunpack.c.l.b16 %v3664
        %v3732 = vunpack.c.h.b16 %v3664
        %v3733 = vunpack.c.l.b16 %v3665
        %v3734 = vunpack.c.h.b16 %v3665
        %v3735 = vunpack.c.l.b16 %v3666
        %v3736 = vunpack.c.h.b16 %v3666
        %v3737 = vunpack.c.l.b16 %v3667
        %v3738 = vunpack.c.h.b16 %v3667
        %v3739 = vunpack.c.l.b16 %v3668
        %v3740 = vunpack.c.h.b16 %v3668
        %v3741 = vunpack.c.l.b16 %v3669
        %v3742 = vunpack.c.h.b16 %v3669
        %v3743 = vunpack.c.l.b16 %v3670
        %v3744 = vunpack.c.h.b16 %v3670
        %v3745 = vunpack.c.l.b16 %v3671
        %v3746 = vunpack.c.h.b16 %v3671
        %v3747 = vunpack.c.l.b16 %v3672
        %v3748 = vunpack.c.h.b16 %v3672
        %v3749 = vunpack.c.l.b16 %v3673
        %v3750 = vunpack.c.h.b16 %v3673
        %v3751 = vunpack.c.l.b16 %v3674
        %v3752 = vunpack.c.h.b16 %v3674
        %v3753 = vunpack.c.l.b16 %v3675
        %v3754 = vunpack.c.h.b16 %v3675
        %v3755 = vunpack.c.l.b16 %v3676
        %v3756 = vunpack.c.h.b16 %v3676
        %v3757 = vunpack.c.l.b16 %v3677
        %v3758 = vunpack.c.h.b16 %v3677
        %v3759 = vunpack.c.l.b16 %v3678
        %v3760 = vunpack.c.h.b16 %v3678
        %v3761 = vunpack.c.l.b16 %v3679
        %v3762 = vunpack.c.h.b16 %v3679
        %v3763 = vunpack.c.l.b16 %v3680
        %v3764 = vunpack.c.h.b16 %v3680
        %v3765 = vunpack.c.l.b16 %v3681
        %v3766 = vunpack.c.h.b16 %v3681
        %v3767 = vunpack.c.l.b16 %v3682
        %v3768 = vunpack.c.h.b16 %v3682
        %v3769 = vunpack.c.l.b16 %v3683
        %v3770 = vunpack.c.h.b16 %v3683
        %v3771 = vunpack.c.l.b16 %v3684
        %v3772 = vunpack.c.h.b16 %v3684
        %v3773 = vunpack.c.l.b16 %v3685
        %v3774 = vunpack.c.h.b16 %v3685
        %v3775 = vunpack.c.l.b16 %v3686
        %v3776 = vunpack.c.h.b16 %v3686
        %v3777 = vunpack.c.l.b16 %v3687
        %v3778 = vunpack.c.h.b16 %v3687
        %v3779 = vunpack.c.l.b16 %v3688
        %v3780 = vunpack.c.h.b16 %v3688
        %v3781 = vunpack.c.l.b16 %v3689
        %v3782 = vunpack.c.h.b16 %v3689
        %v3783 = vunpack.c.l.b16 %v3690
        %v3784 = vunpack.c.h.b16 %v3690
        %v3785 = vunpack.c.l.b16 %v3691
        %v3786 = vunpack.c.h.b16 %v3691
        %v3787 = vunpack.c.l.b16 %v3692
        %v3788 = vunpack.c.h.b16 %v3692
        %v3789 = vpack.c.b16 %v3727, %v3725
        %v3790 = vpack.c.b16 %v3728, %v3726
        %v3791 = vpack.c.b16 %v3731, %v3729
        %v3792 = vpack.c.b16 %v3732, %v3730
        %v3793 = vpack.c.b16 %v3735, %v3733
        %v3794 = vpack.c.b16 %v3736, %v3734
        %v3795 = vpack.c.b16 %v3739, %v3737
        %v3796 = vpack.c.b16 %v3740, %v3738
        %v3797 = vpack.c.b16 %v3743, %v3741
        %v3798 = vpack.c.b16 %v3744, %v3742
        %v3799 = vpack.c.b16 %v3747, %v3745
        %v3800 = vpack.c.b16 %v3748, %v3746
        %v3801 = vpack.c.b16 %v3751, %v3749
        %v3802 = vpack.c.b16 %v3752, %v3750
        %v3803 = vpack.c.b16 %v3755, %v3753
        %v3804 = vpack.c.b16 %v3756, %v3754
        %v3805 = vpack.c.b16 %v3759, %v3757
        %v3806 = vpack.c.b16 %v3760, %v3758
        %v3807 = vpack.c.b16 %v3763, %v3761
        %v3808 = vpack.c.b16 %v3764, %v3762
        %v3809 = vpack.c.b16 %v3767, %v3765
        %v3810 = vpack.c.b16 %v3768, %v3766
        %v3811 = vpack.c.b16 %v3771, %v3769
        %v3812 = vpack.c.b16 %v3772, %v3770
        %v3813 = vpack.c.b16 %v3775, %v3773
        %v3814 = vpack.c.b16 %v3776, %v3774
        %v3815 = vpack.c.b16 %v3779, %v3777
        %v3816 = vpack.c.b16 %v3780, %v3778
        %v3817 = vpack.c.b16 %v3783, %v3781
        %v3818 = vpack.c.b16 %v3784, %v3782
        %v3819 = vpack.c.b16 %v3787, %v3785
        %v3820 = vpack.c.b16 %v3788, %v3786
        %3853 = vmatprep.subr.bf16.mxu0 %v3790
        %3854 = vmatpush1.bf16.msra.mxu0 %v3789
        %3855 = vmatprep.subr.bf16.mxu0 %v3792
        %3856 = vmatpush1.bf16.msra.mxu0 %v3791
        %3857 = vmatprep.subr.bf16.mxu0 %v3794
        %3858 = vmatpush1.bf16.msra.mxu0 %v3793
        %3859 = vmatprep.subr.bf16.mxu0 %v3796
        %3860 = vmatpush1.bf16.msra.mxu0 %v3795
        %3861 = vmatprep.subr.bf16.mxu0 %v3798
        %3862 = vmatpush1.bf16.msra.mxu0 %v3797
        %3863 = vmatprep.subr.bf16.mxu0 %v3800
        %3864 = vmatpush1.bf16.msra.mxu0 %v3799
        %3865 = vmatprep.subr.bf16.mxu0 %v3802
        %3866 = vmatpush1.bf16.msra.mxu0 %v3801
        %3867 = vmatprep.subr.bf16.mxu0 %v3804
        %3868 = vmatpush1.bf16.msra.mxu0 %v3803
        %3869 = vmatprep.subr.bf16.mxu0 %v3806
        %3870 = vmatpush1.bf16.msra.mxu0 %v3805
        %3871 = vmatprep.subr.bf16.mxu0 %v3808
        %3872 = vmatpush1.bf16.msra.mxu0 %v3807
        %3873 = vmatprep.subr.bf16.mxu0 %v3810
        %3874 = vmatpush1.bf16.msra.mxu0 %v3809
        %3875 = vmatprep.subr.bf16.mxu0 %v3812
        %3876 = vmatpush1.bf16.msra.mxu0 %v3811
        %3877 = vmatprep.subr.bf16.mxu0 %v3814
        %3878 = vmatpush1.bf16.msra.mxu0 %v3813
        %3879 = vmatprep.subr.bf16.mxu0 %v3816
        %3880 = vmatpush1.bf16.msra.mxu0 %v3815
        %3881 = vmatprep.subr.bf16.mxu0 %v3818
        %3882 = vmatpush1.bf16.msra.mxu0 %v3817
        %3883 = vmatprep.subr.bf16.mxu0 %v3820
        %3884 = vmatpush1.bf16.msra.mxu0 %v3819
        %3885 = vmatprep.mubr.bf16.mxu0 %v3660
        %3886 = vmatmul.mubr.bf16.gmra.mrb[0].mxu0 %v3659
        %v3887 = vpop.f32.mrb[0].mxu0
        %v3888 = vadd.f32 0.0, %v3887
        %v3889 = vpop.f32.mrb[0].mxu0
        %v3890 = vadd.f32 0.0, %v3889
        %v3891 = vpop.f32.mrb[0].mxu0
        %v3892 = vadd.f32 0.0, %v3891
        %v3893 = vpop.f32.mrb[0].mxu0
        %v3894 = vadd.f32 0.0, %v3893
        %3895 = vdwg.mxu0
        %v3928 = vunpack.c.l.b16 %v3623
        %v3929 = vunpack.c.h.b16 %v3623
        %v3930 = vunpack.c.l.b16 %v3624
        %v3931 = vunpack.c.h.b16 %v3624
        %v3932 = vunpack.c.l.b16 %v3625
        %v3933 = vunpack.c.h.b16 %v3625
        %v3934 = vunpack.c.l.b16 %v3626
        %v3935 = vunpack.c.h.b16 %v3626
        %v3936 = vunpack.c.l.b16 %v3627
        %v3937 = vunpack.c.h.b16 %v3627
        %v3938 = vunpack.c.l.b16 %v3628
        %v3939 = vunpack.c.h.b16 %v3628
        %v3940 = vunpack.c.l.b16 %v3629
        %v3941 = vunpack.c.h.b16 %v3629
        %v3942 = vunpack.c.l.b16 %v3630
        %v3943 = vunpack.c.h.b16 %v3630
        %v3944 = vunpack.c.l.b16 %v3631
        %v3945 = vunpack.c.h.b16 %v3631
        %v3946 = vunpack.c.l.b16 %v3632
        %v3947 = vunpack.c.h.b16 %v3632
        %v3948 = vunpack.c.l.b16 %v3633
        %v3949 = vunpack.c.h.b16 %v3633
        %v3950 = vunpack.c.l.b16 %v3634
        %v3951 = vunpack.c.h.b16 %v3634
        %v3952 = vunpack.c.l.b16 %v3635
        %v3953 = vunpack.c.h.b16 %v3635
        %v3954 = vunpack.c.l.b16 %v3636
        %v3955 = vunpack.c.h.b16 %v3636
        %v3956 = vunpack.c.l.b16 %v3637
        %v3957 = vunpack.c.h.b16 %v3637
        %v3958 = vunpack.c.l.b16 %v3638
        %v3959 = vunpack.c.h.b16 %v3638
        %v3960 = vunpack.c.l.b16 %v3639
        %v3961 = vunpack.c.h.b16 %v3639
        %v3962 = vunpack.c.l.b16 %v3640
        %v3963 = vunpack.c.h.b16 %v3640
        %v3964 = vunpack.c.l.b16 %v3641
        %v3965 = vunpack.c.h.b16 %v3641
        %v3966 = vunpack.c.l.b16 %v3642
        %v3967 = vunpack.c.h.b16 %v3642
        %v3968 = vunpack.c.l.b16 %v3643
        %v3969 = vunpack.c.h.b16 %v3643
        %v3970 = vunpack.c.l.b16 %v3644
        %v3971 = vunpack.c.h.b16 %v3644
        %v3972 = vunpack.c.l.b16 %v3645
        %v3973 = vunpack.c.h.b16 %v3645
        %v3974 = vunpack.c.l.b16 %v3646
        %v3975 = vunpack.c.h.b16 %v3646
        %v3976 = vunpack.c.l.b16 %v3647
        %v3977 = vunpack.c.h.b16 %v3647
        %v3978 = vunpack.c.l.b16 %v3648
        %v3979 = vunpack.c.h.b16 %v3648
        %v3980 = vunpack.c.l.b16 %v3649
        %v3981 = vunpack.c.h.b16 %v3649
        %v3982 = vunpack.c.l.b16 %v3650
        %v3983 = vunpack.c.h.b16 %v3650
        %v3984 = vunpack.c.l.b16 %v3651
        %v3985 = vunpack.c.h.b16 %v3651
        %v3986 = vunpack.c.l.b16 %v3652
        %v3987 = vunpack.c.h.b16 %v3652
        %v3988 = vunpack.c.l.b16 %v3653
        %v3989 = vunpack.c.h.b16 %v3653
        %v3990 = vunpack.c.l.b16 %v3654
        %v3991 = vunpack.c.h.b16 %v3654
        %v3992 = vpack.c.b16 %v3930, %v3928
        %v3993 = vpack.c.b16 %v3931, %v3929
        %v3994 = vpack.c.b16 %v3934, %v3932
        %v3995 = vpack.c.b16 %v3935, %v3933
        %v3996 = vpack.c.b16 %v3938, %v3936
        %v3997 = vpack.c.b16 %v3939, %v3937
        %v3998 = vpack.c.b16 %v3942, %v3940
        %v3999 = vpack.c.b16 %v3943, %v3941
        %v4000 = vpack.c.b16 %v3946, %v3944
        %v4001 = vpack.c.b16 %v3947, %v3945
        %v4002 = vpack.c.b16 %v3950, %v3948
        %v4003 = vpack.c.b16 %v3951, %v3949
        %v4004 = vpack.c.b16 %v3954, %v3952
        %v4005 = vpack.c.b16 %v3955, %v3953
        %v4006 = vpack.c.b16 %v3958, %v3956
        %v4007 = vpack.c.b16 %v3959, %v3957
        %v4008 = vpack.c.b16 %v3962, %v3960
        %v4009 = vpack.c.b16 %v3963, %v3961
        %v4010 = vpack.c.b16 %v3966, %v3964
        %v4011 = vpack.c.b16 %v3967, %v3965
        %v4012 = vpack.c.b16 %v3970, %v3968
        %v4013 = vpack.c.b16 %v3971, %v3969
        %v4014 = vpack.c.b16 %v3974, %v3972
        %v4015 = vpack.c.b16 %v3975, %v3973
        %v4016 = vpack.c.b16 %v3978, %v3976
        %v4017 = vpack.c.b16 %v3979, %v3977
        %v4018 = vpack.c.b16 %v3982, %v3980
        %v4019 = vpack.c.b16 %v3983, %v3981
        %v4020 = vpack.c.b16 %v3986, %v3984
        %v4021 = vpack.c.b16 %v3987, %v3985
        %v4022 = vpack.c.b16 %v3990, %v3988
        %v4023 = vpack.c.b16 %v3991, %v3989
        %4056 = vmatprep.subr.bf16.mxu0 %v3993
        %4057 = vmatpush1.bf16.msra.mxu0 %v3992
        %4058 = vmatprep.subr.bf16.mxu0 %v3995
        %4059 = vmatpush1.bf16.msra.mxu0 %v3994
        %4060 = vmatprep.subr.bf16.mxu0 %v3997
        %4061 = vmatpush1.bf16.msra.mxu0 %v3996
        %4062 = vmatprep.subr.bf16.mxu0 %v3999
        %4063 = vmatpush1.bf16.msra.mxu0 %v3998
        %4064 = vmatprep.subr.bf16.mxu0 %v4001
        %4065 = vmatpush1.bf16.msra.mxu0 %v4000
        %4066 = vmatprep.subr.bf16.mxu0 %v4003
        %4067 = vmatpush1.bf16.msra.mxu0 %v4002
        %4068 = vmatprep.subr.bf16.mxu0 %v4005
        %4069 = vmatpush1.bf16.msra.mxu0 %v4004
        %4070 = vmatprep.subr.bf16.mxu0 %v4007
        %4071 = vmatpush1.bf16.msra.mxu0 %v4006
        %4072 = vmatprep.subr.bf16.mxu0 %v4009
        %4073 = vmatpush1.bf16.msra.mxu0 %v4008
        %4074 = vmatprep.subr.bf16.mxu0 %v4011
        %4075 = vmatpush1.bf16.msra.mxu0 %v4010
        %4076 = vmatprep.subr.bf16.mxu0 %v4013
        %4077 = vmatpush1.bf16.msra.mxu0 %v4012
        %4078 = vmatprep.subr.bf16.mxu0 %v4015
        %4079 = vmatpush1.bf16.msra.mxu0 %v4014
        %4080 = vmatprep.subr.bf16.mxu0 %v4017
        %4081 = vmatpush1.bf16.msra.mxu0 %v4016
        %4082 = vmatprep.subr.bf16.mxu0 %v4019
        %4083 = vmatpush1.bf16.msra.mxu0 %v4018
        %4084 = vmatprep.subr.bf16.mxu0 %v4021
        %4085 = vmatpush1.bf16.msra.mxu0 %v4020
        %4086 = vmatprep.subr.bf16.mxu0 %v4023
        %4087 = vmatpush1.bf16.msra.mxu0 %v4022
        %4088 = vmatprep.mubr.bf16.mxu0 %v3622
        %4089 = vmatmul.mubr.bf16.gmra.mrb[0].mxu0 %v3621
        %v4090 = vpop.f32.mrb[0].mxu0
        %v4091 = vadd.f32 %v3888, %v4090
        %v4092 = vpop.f32.mrb[0].mxu0
        %v4093 = vadd.f32 %v3890, %v4092
        %v4094 = vpop.f32.mrb[0].mxu0
        %v4095 = vadd.f32 %v3892, %v4094
        %v4096 = vpop.f32.mrb[0].mxu0
        %v4097 = vadd.f32 %v3894, %v4096
        %4098 = vdwg.mxu0
        %v4099 = vmax.f32 %v2851, 0.0
        %v4100 = vmax.f32 %v2857, 0.0
        %v4101 = vmax.f32 %v2852, 0.0
        %v4102 = vmax.f32 %v2858, 0.0
        %v4103 = vpack.c.bf16 %v4101, %v4099
        %v4104 = vpack.c.bf16 %v4102, %v4100
        %v4105 = vld [vmem:[#allocation11] sm:$0xff]
        %v4106 = vld [vmem:[#allocation11 + $0x8] sm:$0xff]
        %v4107 = vld [vmem:[#allocation11 + $0x10] sm:$0xff]
        %v4108 = vld [vmem:[#allocation11 + $0x18] sm:$0xff]
        %v4109 = vld [vmem:[#allocation11 + $0x20] sm:$0xff]
        %v4110 = vld [vmem:[#allocation11 + $0x28] sm:$0xff]
        %v4111 = vld [vmem:[#allocation11 + $0x30] sm:$0xff]
        %v4112 = vld [vmem:[#allocation11 + $0x38] sm:$0xff]
        %v4113 = vld [vmem:[#allocation11 + $0x40] sm:$0xff]
        %v4114 = vld [vmem:[#allocation11 + $0x48] sm:$0xff]
        %v4115 = vld [vmem:[#allocation11 + $0x50] sm:$0xff]
        %v4116 = vld [vmem:[#allocation11 + $0x58] sm:$0xff]
        %v4117 = vld [vmem:[#allocation11 + $0x60] sm:$0xff]
        %v4118 = vld [vmem:[#allocation11 + $0x68] sm:$0xff]
        %v4119 = vld [vmem:[#allocation11 + $0x70] sm:$0xff]
        %v4120 = vld [vmem:[#allocation11 + $0x78] sm:$0xff]
        %v4121 = vld [vmem:[#allocation11 + $0x80] sm:$0xff]
        %v4122 = vld [vmem:[#allocation11 + $0x88] sm:$0xff]
        %v4123 = vld [vmem:[#allocation11 + $0x90] sm:$0xff]
        %v4124 = vld [vmem:[#allocation11 + $0x98] sm:$0xff]
        %v4125 = vld [vmem:[#allocation11 + $0xa0] sm:$0xff]
        %v4126 = vld [vmem:[#allocation11 + $0xa8] sm:$0xff]
        %v4127 = vld [vmem:[#allocation11 + $0xb0] sm:$0xff]
        %v4128 = vld [vmem:[#allocation11 + $0xb8] sm:$0xff]
        %v4129 = vld [vmem:[#allocation11 + $0xc0] sm:$0xff]
        %v4130 = vld [vmem:[#allocation11 + $0xc8] sm:$0xff]
        %v4131 = vld [vmem:[#allocation11 + $0xd0] sm:$0xff]
        %v4132 = vld [vmem:[#allocation11 + $0xd8] sm:$0xff]
        %v4133 = vld [vmem:[#allocation11 + $0xe0] sm:$0xff]
        %v4134 = vld [vmem:[#allocation11 + $0xe8] sm:$0xff]
        %v4135 = vld [vmem:[#allocation11 + $0xf0] sm:$0xff]
        %v4136 = vld [vmem:[#allocation11 + $0xf8] sm:$0xff]
        %v4169 = vunpack.c.l.b16 %v4105
        %v4170 = vunpack.c.h.b16 %v4105
        %v4171 = vunpack.c.l.b16 %v4106
        %v4172 = vunpack.c.h.b16 %v4106
        %v4173 = vunpack.c.l.b16 %v4107
        %v4174 = vunpack.c.h.b16 %v4107
        %v4175 = vunpack.c.l.b16 %v4108
        %v4176 = vunpack.c.h.b16 %v4108
        %v4177 = vunpack.c.l.b16 %v4109
        %v4178 = vunpack.c.h.b16 %v4109
        %v4179 = vunpack.c.l.b16 %v4110
        %v4180 = vunpack.c.h.b16 %v4110
        %v4181 = vunpack.c.l.b16 %v4111
        %v4182 = vunpack.c.h.b16 %v4111
        %v4183 = vunpack.c.l.b16 %v4112
        %v4184 = vunpack.c.h.b16 %v4112
        %v4185 = vunpack.c.l.b16 %v4113
        %v4186 = vunpack.c.h.b16 %v4113
        %v4187 = vunpack.c.l.b16 %v4114
        %v4188 = vunpack.c.h.b16 %v4114
        %v4189 = vunpack.c.l.b16 %v4115
        %v4190 = vunpack.c.h.b16 %v4115
        %v4191 = vunpack.c.l.b16 %v4116
        %v4192 = vunpack.c.h.b16 %v4116
        %v4193 = vunpack.c.l.b16 %v4117
        %v4194 = vunpack.c.h.b16 %v4117
        %v4195 = vunpack.c.l.b16 %v4118
        %v4196 = vunpack.c.h.b16 %v4118
        %v4197 = vunpack.c.l.b16 %v4119
        %v4198 = vunpack.c.h.b16 %v4119
        %v4199 = vunpack.c.l.b16 %v4120
        %v4200 = vunpack.c.h.b16 %v4120
        %v4201 = vunpack.c.l.b16 %v4121
        %v4202 = vunpack.c.h.b16 %v4121
        %v4203 = vunpack.c.l.b16 %v4122
        %v4204 = vunpack.c.h.b16 %v4122
        %v4205 = vunpack.c.l.b16 %v4123
        %v4206 = vunpack.c.h.b16 %v4123
        %v4207 = vunpack.c.l.b16 %v4124
        %v4208 = vunpack.c.h.b16 %v4124
        %v4209 = vunpack.c.l.b16 %v4125
        %v4210 = vunpack.c.h.b16 %v4125
        %v4211 = vunpack.c.l.b16 %v4126
        %v4212 = vunpack.c.h.b16 %v4126
        %v4213 = vunpack.c.l.b16 %v4127
        %v4214 = vunpack.c.h.b16 %v4127
        %v4215 = vunpack.c.l.b16 %v4128
        %v4216 = vunpack.c.h.b16 %v4128
        %v4217 = vunpack.c.l.b16 %v4129
        %v4218 = vunpack.c.h.b16 %v4129
        %v4219 = vunpack.c.l.b16 %v4130
        %v4220 = vunpack.c.h.b16 %v4130
        %v4221 = vunpack.c.l.b16 %v4131
        %v4222 = vunpack.c.h.b16 %v4131
        %v4223 = vunpack.c.l.b16 %v4132
        %v4224 = vunpack.c.h.b16 %v4132
        %v4225 = vunpack.c.l.b16 %v4133
        %v4226 = vunpack.c.h.b16 %v4133
        %v4227 = vunpack.c.l.b16 %v4134
        %v4228 = vunpack.c.h.b16 %v4134
        %v4229 = vunpack.c.l.b16 %v4135
        %v4230 = vunpack.c.h.b16 %v4135
        %v4231 = vunpack.c.l.b16 %v4136
        %v4232 = vunpack.c.h.b16 %v4136
        %v4233 = vpack.c.b16 %v4171, %v4169
        %v4234 = vpack.c.b16 %v4172, %v4170
        %v4235 = vpack.c.b16 %v4175, %v4173
        %v4236 = vpack.c.b16 %v4176, %v4174
        %v4237 = vpack.c.b16 %v4179, %v4177
        %v4238 = vpack.c.b16 %v4180, %v4178
        %v4239 = vpack.c.b16 %v4183, %v4181
        %v4240 = vpack.c.b16 %v4184, %v4182
        %v4241 = vpack.c.b16 %v4187, %v4185
        %v4242 = vpack.c.b16 %v4188, %v4186
        %v4243 = vpack.c.b16 %v4191, %v4189
        %v4244 = vpack.c.b16 %v4192, %v4190
        %v4245 = vpack.c.b16 %v4195, %v4193
        %v4246 = vpack.c.b16 %v4196, %v4194
        %v4247 = vpack.c.b16 %v4199, %v4197
        %v4248 = vpack.c.b16 %v4200, %v4198
        %v4249 = vpack.c.b16 %v4203, %v4201
        %v4250 = vpack.c.b16 %v4204, %v4202
        %v4251 = vpack.c.b16 %v4207, %v4205
        %v4252 = vpack.c.b16 %v4208, %v4206
        %v4253 = vpack.c.b16 %v4211, %v4209
        %v4254 = vpack.c.b16 %v4212, %v4210
        %v4255 = vpack.c.b16 %v4215, %v4213
        %v4256 = vpack.c.b16 %v4216, %v4214
        %v4257 = vpack.c.b16 %v4219, %v4217
        %v4258 = vpack.c.b16 %v4220, %v4218
        %v4259 = vpack.c.b16 %v4223, %v4221
        %v4260 = vpack.c.b16 %v4224, %v4222
        %v4261 = vpack.c.b16 %v4227, %v4225
        %v4262 = vpack.c.b16 %v4228, %v4226
        %v4263 = vpack.c.b16 %v4231, %v4229
        %v4264 = vpack.c.b16 %v4232, %v4230
        %4297 = vmatprep.subr.bf16.mxu0 %v4234
        %4298 = vmatpush1.bf16.msra.mxu0 %v4233
        %4299 = vmatprep.subr.bf16.mxu0 %v4236
        %4300 = vmatpush1.bf16.msra.mxu0 %v4235
        %4301 = vmatprep.subr.bf16.mxu0 %v4238
        %4302 = vmatpush1.bf16.msra.mxu0 %v4237
        %4303 = vmatprep.subr.bf16.mxu0 %v4240
        %4304 = vmatpush1.bf16.msra.mxu0 %v4239
        %4305 = vmatprep.subr.bf16.mxu0 %v4242
        %4306 = vmatpush1.bf16.msra.mxu0 %v4241
        %4307 = vmatprep.subr.bf16.mxu0 %v4244
        %4308 = vmatpush1.bf16.msra.mxu0 %v4243
        %4309 = vmatprep.subr.bf16.mxu0 %v4246
        %4310 = vmatpush1.bf16.msra.mxu0 %v4245
        %4311 = vmatprep.subr.bf16.mxu0 %v4248
        %4312 = vmatpush1.bf16.msra.mxu0 %v4247
        %4313 = vmatprep.subr.bf16.mxu0 %v4250
        %4314 = vmatpush1.bf16.msra.mxu0 %v4249
        %4315 = vmatprep.subr.bf16.mxu0 %v4252
        %4316 = vmatpush1.bf16.msra.mxu0 %v4251
        %4317 = vmatprep.subr.bf16.mxu0 %v4254
        %4318 = vmatpush1.bf16.msra.mxu0 %v4253
        %4319 = vmatprep.subr.bf16.mxu0 %v4256
        %4320 = vmatpush1.bf16.msra.mxu0 %v4255
        %4321 = vmatprep.subr.bf16.mxu0 %v4258
        %4322 = vmatpush1.bf16.msra.mxu0 %v4257
        %4323 = vmatprep.subr.bf16.mxu0 %v4260
        %4324 = vmatpush1.bf16.msra.mxu0 %v4259
        %4325 = vmatprep.subr.bf16.mxu0 %v4262
        %4326 = vmatpush1.bf16.msra.mxu0 %v4261
        %4327 = vmatprep.subr.bf16.mxu0 %v4264
        %4328 = vmatpush1.bf16.msra.mxu0 %v4263
        %4329 = vmatprep.mubr.bf16.mxu0 %v4104
        %4330 = vmatmul.mubr.bf16.gmra.mrb[0].mxu0 %v4103
        %v4331 = vpop.f32.mrb[0].mxu0
        %v4332 = vadd.f32 0.0, %v4331
        %v4333 = vpop.f32.mrb[0].mxu0
        %v4334 = vadd.f32 0.0, %v4333
        %v4335 = vpop.f32.mrb[0].mxu0
        %v4336 = vadd.f32 0.0, %v4335
        %v4337 = vpop.f32.mrb[0].mxu0
        %v4338 = vadd.f32 0.0, %v4337
        %4339 = vdwg.mxu0
        %v4340 = vadd.f32 %v4091, %v4332
        %v4341 = vadd.f32 %v4093, %v4334
        %v4342 = vadd.f32 %v4095, %v4336
        %v4343 = vadd.f32 %v4097, %v4338
        %v4344 = vld [vmem:[%s11] sm:$0x3]
        %v4346 = vlaneseq
        %v4347 = vshrl.u32 %v4346, 7
        %v4348 = vsub.s32 0, %v4347
        %v4349 = vrot.slane %v4344, %v4348
        %v4350 = vlaneseq
        %v4351 = vshrl.u32 %v4350, 7
        %v4352 = vsub.s32 1, %v4351
        %v4353 = vrot.slane %v4344, %v4352
        %v4356 = vadd.f32 %v4340, %v4349
        %v4357 = vadd.f32 %v4341, %v4353
        %v4358 = vadd.f32 %v4342, %v4349
        %v4359 = vadd.f32 %v4343, %v4353
        %4361 = vset.pattern.permute.xlu0 0
        %4362 = vperm.xlu0 %4361, %v638
        %v4363 = vpop.permute.xlu0 %4362
        %4366 = vset.pattern.permute.xlu0 0
        %4367 = vperm.xlu0 %4366, %v639
        %v4368 = vpop.permute.xlu0 %4367
        %4370 = vset.pattern.permute.xlu0 1
        %4371 = vperm.xlu0 %4370, %v638
        %v4372 = vpop.permute.xlu0 %4371
        %4374 = vset.pattern.permute.xlu0 1
        %4375 = vperm.xlu0 %4374, %v639
        %v4376 = vpop.permute.xlu0 %4375
        %4378 = vset.pattern.permute.xlu0 2
        %4379 = vperm.xlu0 %4378, %v638
        %v4380 = vpop.permute.xlu0 %4379
        %4382 = vset.pattern.permute.xlu0 2
        %4383 = vperm.xlu0 %4382, %v639
        %v4384 = vpop.permute.xlu0 %4383
        %4386 = vset.pattern.permute.xlu0 3
        %4387 = vperm.xlu0 %4386, %v638
        %v4388 = vpop.permute.xlu0 %4387
        %4390 = vset.pattern.permute.xlu0 3
        %4391 = vperm.xlu0 %4390, %v639
        %v4392 = vpop.permute.xlu0 %4391
        %4394 = vset.pattern.permute.xlu0 4
        %4395 = vperm.xlu0 %4394, %v638
        %v4396 = vpop.permute.xlu0 %4395
        %4398 = vset.pattern.permute.xlu0 4
        %4399 = vperm.xlu0 %4398, %v639
        %v4400 = vpop.permute.xlu0 %4399
        %4402 = vset.pattern.permute.xlu0 5
        %4403 = vperm.xlu0 %4402, %v638
        %v4404 = vpop.permute.xlu0 %4403
        %4406 = vset.pattern.permute.xlu0 5
        %4407 = vperm.xlu0 %4406, %v639
        %v4408 = vpop.permute.xlu0 %4407
        %4410 = vset.pattern.permute.xlu0 6
        %4411 = vperm.xlu0 %4410, %v638
        %v4412 = vpop.permute.xlu0 %4411
        %4414 = vset.pattern.permute.xlu0 6
        %4415 = vperm.xlu0 %4414, %v639
        %v4416 = vpop.permute.xlu0 %4415
        %4418 = vset.pattern.permute.xlu0 7
        %4419 = vperm.xlu0 %4418, %v638
        %v4420 = vpop.permute.xlu0 %4419
        %4422 = vset.pattern.permute.xlu0 7
        %4423 = vperm.xlu0 %4422, %v639
        %v4424 = vpop.permute.xlu0 %4423
        %v4426 = vsel %vm1168, %v4363, %v4372
        %v4427 = vsel %vm1168, %v4368, %v4376
        %v4428 = vsel %vm1185, %v4426, %v4380
        %v4429 = vsel %vm1185, %v4427, %v4384
        %v4430 = vsel %vm1202, %v4428, %v4388
        %v4431 = vsel %vm1202, %v4429, %v4392
        %v4432 = vsel %vm1168, %v4396, %v4404
        %v4433 = vsel %vm1168, %v4400, %v4408
        %v4434 = vsel %vm1185, %v4432, %v4412
        %v4435 = vsel %vm1185, %v4433, %v4416
        %v4436 = vsel %vm1202, %v4434, %v4420
        %v4437 = vsel %vm1202, %v4435, %v4424
        %v4438 = vmul.f32 %v4356, %v4430
        %v4439 = vmul.f32 %v4357, %v4436
        %v4440 = vmul.f32 %v4358, %v4431
        %v4441 = vmul.f32 %v4359, %v4437
        %4442 = vst [vmem:[%s553] sm:$0xff] %v4438
        %4443 = vst [vmem:[%s553 + $0x8] sm:$0xff] %v4439
        %4444 = vst [vmem:[%s553 + $0x10] sm:$0xff] %v4440
        %4445 = vst [vmem:[%s553 + $0x18] sm:$0xff] %v4441
        %s4446 = sand.u32 %s312, 1
        %s4447 = scalar_lea.sflag [#allocation4], %s4446
        %s4448 = sand.u32 %s312, 1
        %s4449 = smul.addr %s4448, 32
        %s4450 = scalar_lea.vmem [#allocation13], %s4449
        // Predicated region
        $region93: #{tpu_custom_call.1} parent=67 // pred_check
          %p4451 = pneg %p322
        $region94: #{tpu_custom_call.1} parent=67 // pred_check_branch
          %4453 = sbr.rel (%p4451) target = $region96
        $region95: #{tpu_custom_call.1} parent=67 // pred_region
          %s4454 = smul.u32 2, %s32
          %s4456 = ssub.s32 512, 512
          %4457 = vsyncadd %s4447, %s4456
          %s4458 = smul.addr %s4454, 2
          %s4459 = smul.addr %s4458, 128
          %s4460 = scalar_lea.hbm %s12, %s4459
          %s4461 = sshll.u32 %s4450, 4
          %s4462 = int_to_ptr.vmem [resolvable:$true] %s4461
          %4467 = dma.vmem_to_hbm [thread:$0]  %s4462, 512, %s4460, %s4447, 256, 256, 16
        $region96: #{tpu_custom_call.1} parent=67 // pred_fallthru
          _
      $region68: #{tpu_custom_call.1} parent=5 // pred_fallthru
        _
      %p4468 = scmp.le.s32.totalorder 2, %s27
      // Predicated region
      $region97: #{tpu_custom_call.1} parent=5 // pred_check
        %p4469 = pneg %p4468
      $region98: #{tpu_custom_call.1} parent=5 // pred_check_branch
        %4471 = sbr.rel (%p4469) target = $region100
      $region99: #{tpu_custom_call.1} parent=5 // pred_region
        %s4472 = ssub.s32 %s27, 2
        // Predicated region
        $region101: #{tpu_custom_call.1} parent=99 // pred_check
          %p4473 = pneg %p328
        $region102: #{tpu_custom_call.1} parent=99 // pred_check_branch
          %4475 = sbr.rel (%p4473) target = $region104
        $region103: #{tpu_custom_call.1} parent=99 // pred_region
          %s4476 = sand.u32 %s313, 1
          %s4477 = scalar_lea.sflag [#allocation4], %s4476
          %s4478 = sand.u32 %s313, 1
          %s4479 = smul.addr %s4478, 32
          %s4480 = scalar_lea.vmem [#allocation13], %s4479
          %4481 = dma.done %s4477, 512
        $region104: #{tpu_custom_call.1} parent=99 // pred_fallthru
          _
      $region100: #{tpu_custom_call.1} parent=5 // pred_fallthru
        _
    $region6: #{tpu_custom_call.1} parent=1 // loop_footer
      %s31 = sadd.s32 1, %s27
    $region7: #{tpu_custom_call.1} parent=1 // loop_footer_branch
      %26 = sbr.rel target = $region3
    $region8: #{tpu_custom_call.1} parent=1 // loop_exit
      _
    %4482 = vsyncpa [#allocation3], 1
    %s4483 = scalar_lea.sflag [#allocation3], 1
    %4484 = vsyncpa %s4483, 1
    %4485 = vsyncpa [#allocation6], 1
    %4486 = vsyncpa [#allocation9], 1
    %4487 = vsyncpa [#allocation12], 1
    %4488 = vsyncpa [#allocation4], 1
    %s4489 = scalar_lea.sflag [#allocation4], 1
    %4490 = vsyncpa %s4489, 1

</llo_original>
